<compile_context>
chip_gen: v7x
topology: tpu7x:2x2x1
jax: 0.10.0
libtpu: 0.0.40
codegen_flags: <defaults>
</compile_context>

<pallas_src>
import jax
import jax.numpy as jnp
from jax import lax
from jax.experimental import pallas as pl
from jax.experimental.pallas import tpu as pltpu


def _round_up(x, m):
    return ((x + m - 1) // m) * m


# ---------------------------------------------------------------------------
# Static layout of packed operands (shared by pack_params and the kernel)
# ---------------------------------------------------------------------------
TAP = 5                                    # 5x5 kernels -> 5 kernel-height taps
W1_IN, W2_IN, W3_IN = 32, 168, 160         # real per-tap LHS widths (Win*Cin)
TP1, TP2, TP3 = 128, 256, 256              # lane-aligned padded tap widths
K1, K2, K3 = TAP * TP1, TAP * TP2, TAP * TP3   # folded contraction depths
N1, N2, N3 = 168, 160, 120                 # conv output widths (Wo*Cout)
WA_ROWS = K1 + K2                          # slab A: conv1 + conv2 weights
WB_W4_OFF = K3                             # slab B: conv3 | fc1 | fc2
WB_W5_OFF = K3 + 128
WB_ROWS = _round_up(WB_W5_OFF + 84, 16)


# ---------------------------------------------------------------------------
# One-time parameter packing (init time, NOT per forward call)
# ---------------------------------------------------------------------------
def _conv_taps(w, w_in):
    """Per-tap band matrices: (KH, Win*Cin, Wout*Cout);
    M_kh[wi*Cin+ci, wo*Cout+co] = w[co, ci, kh, wi-wo]."""
    cout, cin, kh_, kw_ = w.shape
    wo = w_in - kw_ + 1
    sel = (jnp.arange(w_in)[None, :, None]
           == jnp.arange(kw_)[:, None, None] + jnp.arange(wo)[None, None, :])
    sel = sel.astype(w.dtype)                              # (KW, Win, Wo)
    r = jnp.einsum("kiw,ochk->hicwo", sel, w)              # (KH, Win, Cin, Wo, Cout)
    return r.reshape(kh_, w_in * cin, wo * cout)


def _pool_col_matrix(w, c, dtype=jnp.float32):
    """2-wide/stride-2 average pool along the (w, c) lane axis: (w*c, (w//2)*c)."""
    wp = w // 2
    wo = jnp.arange(wp)[:, None]
    ch = jnp.arange(c)[None, :]
    cols = (wo * c + ch).reshape(-1)
    rows0 = (2 * wo * c + ch).reshape(-1)
    rows1 = ((2 * wo + 1) * c + ch).reshape(-1)
    p = jnp.zeros((w * c, wp * c), dtype)
    return p.at[rows0, cols].set(0.5).at[rows1, cols].set(0.5)


def _row_pool_blockdiag(h, batch, dtype=jnp.float32):
    """Block-diagonal (over batch) 2-row average pool: (batch*h/2, batch*h)."""
    hp = h // 2
    bb = jnp.repeat(jnp.arange(batch), hp)
    rr = jnp.tile(jnp.arange(hp), batch)
    rows = bb * hp + rr
    m = jnp.zeros((batch * hp, batch * h), dtype)
    m = m.at[rows, bb * h + 2 * rr].set(0.5)
    m = m.at[rows, bb * h + 2 * rr + 1].set(0.5)
    return m


def pack_params(params, batch):
    p = {k: v.astype(jnp.float32) for k, v in params.items()}

    t1 = _conv_taps(p["conv1_w"], 32)                     # (5,  32, 168)
    t2 = _conv_taps(p["conv2_w"], 14)                     # (5,  84, 160)
    t3 = _conv_taps(p["conv3_w"], 5)                      # (5,  80, 120)
    pw1 = _pool_col_matrix(28, 6)                         # (168, 84)
    pw2 = _pool_col_matrix(10, 16)                        # (160, 80)
    t2f = jnp.einsum("pk,hkn->hpn", pw1, t2)              # (5, 168, 160) pool-fused
    t3f = jnp.einsum("pk,hkn->hpn", pw2, t3)              # (5, 160, 120) pool-fused

    # Weight slab A: conv1 (tap blocks of 128 rows) + conv2 (tap blocks of 256).
    wa = jnp.zeros((WA_ROWS, N1), jnp.float32)
    for kh in range(TAP):
        wa = wa.at[kh * TP1: kh * TP1 + W1_IN, :N1].set(t1[kh])
        wa = wa.at[K1 + kh * TP2: K1 + kh * TP2 + W2_IN, :N2].set(t2f[kh])
    # Weight slab B: conv3 (tap blocks of 256) + fc1 + fc2.
    wb = jnp.zeros((WB_ROWS, 128), jnp.float32)
    for kh in range(TAP):
        wb = wb.at[kh * TP3: kh * TP3 + W3_IN, :N3].set(t3f[kh])
    wb = wb.at[WB_W4_OFF:WB_W4_OFF + 120, :84].set(p["fc1_w"].T)
    wb = wb.at[WB_W5_OFF:WB_W5_OFF + 84, :10].set(p["fc2_w"].T)

    # All five bias rows in one (8, 168) buffer.
    bias = jnp.zeros((8, N1), jnp.float32)
    bias = bias.at[0, :168].set(jnp.tile(p["conv1_b"], 28))
    bias = bias.at[1, :160].set(jnp.tile(p["conv2_b"], 10))
    bias = bias.at[2, :120].set(p["conv3_b"])
    bias = bias.at[3, :84].set(p["fc1_b"])
    bias = bias.at[4, :10].set(p["fc2_b"])

    # Both block-diagonal row-pool matrices in one buffer.
    ph1 = _row_pool_blockdiag(28, batch)                  # (14B, 28B)
    ph2 = _row_pool_blockdiag(10, batch)                  # ( 5B, 10B)
    off2 = _round_up(ph1.shape[0], 8)
    rows = _round_up(off2 + ph2.shape[0], 8)
    pool = jnp.zeros((rows, ph1.shape[1]), jnp.float32)
    pool = pool.at[:ph1.shape[0], :ph1.shape[1]].set(ph1)
    pool = pool.at[off2:off2 + ph2.shape[0], :ph2.shape[1]].set(ph2)

    return {"wa": wa.astype(jnp.bfloat16), "wb": wb.astype(jnp.bfloat16),
            "bias": bias, "pool": pool}


# ---------------------------------------------------------------------------
# Fused forward kernel (everything lives in VMEM; 7 MXU dots for the batch)
# ---------------------------------------------------------------------------
def _make_kernel(batch):
    ph2_off = _round_up(batch * 14, 8)
    bf16 = jnp.bfloat16
    f32 = jnp.float32

    def kernel(x_ref, wa_ref, wb_ref, bias_ref, pool_ref, o_ref,
               s1_ref, s2_ref, s3_ref):
        # Zero-init the padded LHS slabs once (padding lanes must be 0, not
        # stale VMEM, even though the matching weight rows are 0).
        s1_ref[...] = jnp.zeros_like(s1_ref)
        s2_ref[...] = jnp.zeros_like(s2_ref)
        s3_ref[...] = jnp.zeros_like(s3_ref)

        # ---- conv1 (+ReLU): one dot, taps folded into K -------------------
        for b in range(batch):
            for kh in range(TAP):
                s1_ref[pl.ds(b * 28, 28), pl.ds(kh * TP1, W1_IN)] = \
                    x_ref[pl.ds(b * 32 + kh, 28), :]
        y1 = jnp.dot(s1_ref[...].astype(bf16), wa_ref[pl.ds(0, K1), :],
                     preferred_element_type=f32)
        y1 = jnp.maximum(y1 + bias_ref[pl.ds(0, 1), :], 0.0)       # (B*28, 168)

        # ---- avgpool1: row pool only (column pool folded into conv2 weights)
        p1 = jnp.dot(pool_ref[pl.ds(0, batch * 14), pl.ds(0, batch * 28)], y1,
                     preferred_element_type=f32)                   # (B*14, 168)

        # ---- conv2 (+ReLU) -------------------------------------------------
        for b in range(batch):
            for kh in range(TAP):
                s2_ref[pl.ds(b * 10, 10), pl.ds(kh * TP2, W2_IN)] = \
                    p1[b * 14 + kh: b * 14 + kh + 10, :]
        y2 = jnp.dot(s2_ref[...].astype(bf16),
                     wa_ref[pl.ds(K1, K2), pl.ds(0, N2)],
                     preferred_element_type=f32)
        y2 = jnp.maximum(y2 + bias_ref[pl.ds(1, 1), pl.ds(0, N2)], 0.0)  # (B*10,160)

        # ---- avgpool2: row pool only ---------------------------------------
        p2 = jnp.dot(pool_ref[pl.ds(ph2_off, batch * 5), pl.ds(0, batch * 10)], y2,
                     preferred_element_type=f32)                   # (B*5, 160)

        # ---- conv3 (+ReLU) -> (B, 120) flattened features -------------------
        for b in range(batch):
            for kh in range(TAP):
                s3_ref[pl.ds(b, 1), pl.ds(kh * TP3, W3_IN)] = \
                    p2[b * 5 + kh: b * 5 + kh + 1, :]
        y3 = jnp.dot(s3_ref[...].astype(bf16),
                     wb_ref[pl.ds(0, K3), pl.ds(0, N3)],
                     preferred_element_type=f32)
        y3 = jnp.maximum(y3 + bias_ref[pl.ds(2, 1), pl.ds(0, N3)], 0.0)  # (B, 120)

        # ---- fc1 + ReLU, fc2, softmax (whole batch at once) -----------------
        h = jnp.dot(y3.astype(bf16),
                    wb_ref[pl.ds(WB_W4_OFF, 120), pl.ds(0, 84)],
                    preferred_element_type=f32)
        h = jnp.maximum(h + bias_ref[pl.ds(3, 1), pl.ds(0, 84)], 0.0)    # (B, 84)
        logits = jnp.dot(h.astype(bf16),
                         wb_ref[pl.ds(WB_W5_OFF, 84), pl.ds(0, 10)],
                         preferred_element_type=f32)
        logits = logits + bias_ref[pl.ds(4, 1), pl.ds(0, 10)]            # (B, 10)
        m = jnp.max(logits, axis=-1, keepdims=True)
        e = jnp.exp(logits - m)
        denom = jnp.sum(e, axis=-1, keepdims=True)
        o_ref[...] = e * pl.reciprocal(denom, approx=True)               # one store

    return kernel


def _full_spec(shape):
    n = len(shape)
    return pl.BlockSpec(shape, lambda i, _n=n: (0,) * _n)


def make_forward(batch):
    kernel = _make_kernel(batch)
    pool_rows = _round_up(_round_up(batch * 14, 8) + batch * 5, 8)
    pool_cols = batch * 28

    @jax.jit
    def forward(x, wa, wb, bias, pool):
        # x: (B, 1, 32, 32) NCHW, like the PyTorch module.
        x_hw = x[:, 0, :, :].reshape(batch * 32, 32).astype(jnp.float32)
        return pl.pallas_call(
            kernel,
            grid=(1,),
            out_shape=jax.ShapeDtypeStruct((batch, 10), jnp.float32),
            in_specs=[_full_spec((batch * 32, 32)),
                      _full_spec((WA_ROWS, N1)),
                      _full_spec((WB_ROWS, 128)),
                      _full_spec((8, N1)),
                      _full_spec((pool_rows, pool_cols))],
            out_specs=_full_spec((batch, 10)),
            scratch_shapes=[pltpu.VMEM((batch * 28, K1), jnp.float32),
                            pltpu.VMEM((batch * 10, K2), jnp.float32),
                            pltpu.VMEM((batch * 1, K3), jnp.float32)],
            compiler_params=pltpu.CompilerParams(
                dimension_semantics=("arbitrary",)),
        )(x_hw, wa, wb, bias, pool)

    return forward


# ---------------------------------------------------------------------------
# ConvNeuralNet forward (PyTorch semantics)
# ---------------------------------------------------------------------------
def init_params(key):
    ks = jax.random.split(key, 10)

    def u(k, shape, fan_in):
        bound = 1.0 / float(fan_in) ** 0.5
        return jax.random.uniform(k, shape, jnp.float32, -bound, bound)

    return {
        "conv1_w": u(ks[0], (6, 1, 5, 5), 25),     "conv1_b": u(ks[1], (6,), 25),
        "conv2_w": u(ks[2], (16, 6, 5, 5), 150),   "conv2_b": u(ks[3], (16,), 150),
        "conv3_w": u(ks[4], (120, 16, 5, 5), 400), "conv3_b": u(ks[5], (120,), 400),
        "fc1_w":   u(ks[6], (84, 120), 120),       "fc1_b":   u(ks[7], (84,), 120),
        "fc2_w":   u(ks[8], (10, 84), 84),         "fc2_b":   u(ks[9], (10,), 84),
    }


def convnet_forward(forward_fn, packed, x):
    B = x.shape[0]
    probs = forward_fn(x, packed["wa"], packed["wb"], packed["bias"], packed["pool"])
    # Shapes are data-independent; returned as static tuples (== x.size() in torch).
    return (probs, (B, 6, 28, 28), (B, 16, 10, 10), (B, 120, 1, 1))


# ---------------------------------------------------------------------------
# Pure-JAX f32 reference (for in-script numerical validation only)
# ---------------------------------------------------------------------------
def _reference_forward(params, x):
    hi = jax.lax.Precision.HIGHEST

    def conv(x, w, b):
        y = lax.conv_general_dilated(x, w, (1, 1), "VALID",
                                     dimension_numbers=("NCHW", "OIHW", "NCHW"),
                                     precision=hi)
        return jax.nn.relu(y + b[None, :, None, None])

    def pool(x):
        B, C, H, W = x.shape
        return x.reshape(B, C, H // 2, 2, W // 2, 2).mean(axis=(3, 5))

    x = pool(conv(x, params["conv1_w"], params["conv1_b"]))
    x = pool(conv(x, params["conv2_w"], params["conv2_b"]))
    x = conv(x, params["conv3_w"], params["conv3_b"])
    x = x.reshape(x.shape[0], -1)
    x = jax.nn.relu(jnp.dot(x, params["fc1_w"].T, precision=hi) + params["fc1_b"])
    x = jnp.dot(x, params["fc2_w"].T, precision=hi) + params["fc2_b"]
    return jax.nn.softmax(x, axis=1)


if __name__ == "__main__":
    key = jax.random.PRNGKey(0)
    pkey, xkey = jax.random.split(key)
    params = init_params(pkey)

    B = 2                                   # weights+activations stay well <1 MiB;
    packed = pack_params(params, B)         # larger B amortizes launch/DMA further.
    forward_fn = make_forward(B)

    # LeNet-5 requires 1x32x32 inputs so the flatten yields 120 features.
    x = jax.random.normal(xkey, (B, 1, 32, 32), dtype=jnp.float32)

    probs, sh1, sh2, sh3 = convnet_forward(forward_fn, packed, x)
    probs = jax.block_until_ready(probs)

    assert probs.shape == (B, 10)
    assert sh1 == (B, 6, 28, 28) and sh2 == (B, 16, 10, 10) and sh3 == (B, 120, 1, 1)
    # Rows sum to 1 (approx reciprocal in the softmax -> loose-ish tolerance).
    assert bool(jnp.all(jnp.abs(jnp.sum(probs, axis=1) - 1.0) < 1e-2))

    ref = _reference_forward(params, x)
    err = float(jnp.max(jnp.abs(probs - ref)))
    # bf16 MXU operands vs f32 HIGHEST reference: expected ~1e-3 drift.
    assert err < 2e-2, f"max |probs - ref| = {err}"
    print("KERNEL_OK")
</pallas_src>

<mosaic_0001>
module attributes {stable_mosaic.version = 11 : i64} {
  func.func @kernel(%arg0: i32, %arg1: memref<64x32xf32, #tpu.memory_space<vmem>>, %arg2: memref<1920x168xbf16, #tpu.memory_space<vmem>>, %arg3: memref<1504x128xbf16, #tpu.memory_space<vmem>>, %arg4: memref<8x168xf32, #tpu.memory_space<vmem>>, %arg5: memref<48x56xf32, #tpu.memory_space<vmem>>, %arg6: memref<2x10xf32, #tpu.memory_space<vmem>>, %arg7: memref<56x640xf32, #tpu.memory_space<vmem>>, %arg8: memref<20x1280xf32, #tpu.memory_space<vmem>>, %arg9: memref<2x1280xf32, #tpu.memory_space<vmem>>) attributes {dimension_semantics = [#tpu.dimension_semantics<arbitrary>], iteration_bounds = array<i64: 1>, scalar_prefetch = 0 : i64, scratch_operands = 3 : i64, tpu.core_type = #tpu.core_type<tc>, window_params = [{pipeline_mode = #tpu.pipeline_mode<synchronous>, transform_indices = @transform_0, window_bounds = array<i64: 64, 32>}, {pipeline_mode = #tpu.pipeline_mode<synchronous>, transform_indices = @transform_1, window_bounds = array<i64: 1920, 168>}, {pipeline_mode = #tpu.pipeline_mode<synchronous>, transform_indices = @transform_2, window_bounds = array<i64: 1504, 128>}, {pipeline_mode = #tpu.pipeline_mode<synchronous>, transform_indices = @transform_3, window_bounds = array<i64: 8, 168>}, {pipeline_mode = #tpu.pipeline_mode<synchronous>, transform_indices = @transform_4, window_bounds = array<i64: 48, 56>}, {pipeline_mode = #tpu.pipeline_mode<synchronous>, transform_indices = @transform_5, window_bounds = array<i64: 2, 10>}]} {
    %cst = arith.constant 0.000000e+00 : f32
    %0 = vector.broadcast %cst : f32 to vector<56x640xf32>
    %c0 = arith.constant 0 : index
    %c0_0 = arith.constant 0 : index
    %1 = vector.load %arg7[%c0, %c0_0] : memref<56x640xf32, #tpu.memory_space<vmem>>, vector<56x640xf32>
    tpu.vector_store %arg7[%c0, %c0_0], %0 {strides = array<i32>} : memref<56x640xf32, #tpu.memory_space<vmem>>, vector<56x640xf32>,
    %cst_1 = arith.constant 0.000000e+00 : f32
    %2 = vector.broadcast %cst_1 : f32 to vector<20x1280xf32>
    %c0_2 = arith.constant 0 : index
    %c0_3 = arith.constant 0 : index
    %3 = vector.load %arg8[%c0_2, %c0_3] : memref<20x1280xf32, #tpu.memory_space<vmem>>, vector<20x1280xf32>
    tpu.vector_store %arg8[%c0_2, %c0_3], %2 {strides = array<i32>} : memref<20x1280xf32, #tpu.memory_space<vmem>>, vector<20x1280xf32>,
    %cst_4 = arith.constant 0.000000e+00 : f32
    %4 = vector.broadcast %cst_4 : f32 to vector<2x1280xf32>
    %c0_5 = arith.constant 0 : index
    %c0_6 = arith.constant 0 : index
    %5 = vector.load %arg9[%c0_5, %c0_6] : memref<2x1280xf32, #tpu.memory_space<vmem>>, vector<2x1280xf32>
    tpu.vector_store %arg9[%c0_5, %c0_6], %4 {strides = array<i32>} : memref<2x1280xf32, #tpu.memory_space<vmem>>, vector<2x1280xf32>,
    %c0_7 = arith.constant 0 : index
    %c0_8 = arith.constant 0 : index
    %6 = vector.load %arg1[%c0_7, %c0_8] : memref<64x32xf32, #tpu.memory_space<vmem>>, vector<28x32xf32>
    %c0_9 = arith.constant 0 : index
    %c0_10 = arith.constant 0 : index
    %7 = vector.load %arg7[%c0_9, %c0_10] : memref<56x640xf32, #tpu.memory_space<vmem>>, vector<28x32xf32>
    tpu.vector_store %arg7[%c0_9, %c0_10], %6 {strides = array<i32>} : memref<56x640xf32, #tpu.memory_space<vmem>>, vector<28x32xf32>,
    %c1 = arith.constant 1 : index
    %c0_11 = arith.constant 0 : index
    %8 = vector.load %arg1[%c1, %c0_11] : memref<64x32xf32, #tpu.memory_space<vmem>>, vector<28x32xf32>
    %c0_12 = arith.constant 0 : index
    %c128 = arith.constant 128 : index
    %9 = vector.load %arg7[%c0_12, %c128] : memref<56x640xf32, #tpu.memory_space<vmem>>, vector<28x32xf32>
    tpu.vector_store %arg7[%c0_12, %c128], %8 {strides = array<i32>} : memref<56x640xf32, #tpu.memory_space<vmem>>, vector<28x32xf32>,
    %c2 = arith.constant 2 : index
    %c0_13 = arith.constant 0 : index
    %10 = vector.load %arg1[%c2, %c0_13] : memref<64x32xf32, #tpu.memory_space<vmem>>, vector<28x32xf32>
    %c0_14 = arith.constant 0 : index
    %c256 = arith.constant 256 : index
    %11 = vector.load %arg7[%c0_14, %c256] : memref<56x640xf32, #tpu.memory_space<vmem>>, vector<28x32xf32>
    tpu.vector_store %arg7[%c0_14, %c256], %10 {strides = array<i32>} : memref<56x640xf32, #tpu.memory_space<vmem>>, vector<28x32xf32>,
    %c3 = arith.constant 3 : index
    %c0_15 = arith.constant 0 : index
    %12 = vector.load %arg1[%c3, %c0_15] : memref<64x32xf32, #tpu.memory_space<vmem>>, vector<28x32xf32>
    %c0_16 = arith.constant 0 : index
    %c384 = arith.constant 384 : index
    %13 = vector.load %arg7[%c0_16, %c384] : memref<56x640xf32, #tpu.memory_space<vmem>>, vector<28x32xf32>
    tpu.vector_store %arg7[%c0_16, %c384], %12 {strides = array<i32>} : memref<56x640xf32, #tpu.memory_space<vmem>>, vector<28x32xf32>,
    %c4 = arith.constant 4 : index
    %c0_17 = arith.constant 0 : index
    %14 = vector.load %arg1[%c4, %c0_17] : memref<64x32xf32, #tpu.memory_space<vmem>>, vector<28x32xf32>
    %c0_18 = arith.constant 0 : index
    %c512 = arith.constant 512 : index
    %15 = vector.load %arg7[%c0_18, %c512] : memref<56x640xf32, #tpu.memory_space<vmem>>, vector<28x32xf32>
    tpu.vector_store %arg7[%c0_18, %c512], %14 {strides = array<i32>} : memref<56x640xf32, #tpu.memory_space<vmem>>, vector<28x32xf32>,
    %c32 = arith.constant 32 : index
    %c0_19 = arith.constant 0 : index
    %16 = vector.load %arg1[%c32, %c0_19] : memref<64x32xf32, #tpu.memory_space<vmem>>, vector<28x32xf32>
    %c28 = arith.constant 28 : index
    %c0_20 = arith.constant 0 : index
    %17 = vector.load %arg7[%c28, %c0_20] : memref<56x640xf32, #tpu.memory_space<vmem>>, vector<28x32xf32>
    tpu.vector_store %arg7[%c28, %c0_20], %16 {strides = array<i32>} : memref<56x640xf32, #tpu.memory_space<vmem>>, vector<28x32xf32>,
    %c33 = arith.constant 33 : index
    %c0_21 = arith.constant 0 : index
    %18 = vector.load %arg1[%c33, %c0_21] : memref<64x32xf32, #tpu.memory_space<vmem>>, vector<28x32xf32>
    %c28_22 = arith.constant 28 : index
    %c128_23 = arith.constant 128 : index
    %19 = vector.load %arg7[%c28_22, %c128_23] : memref<56x640xf32, #tpu.memory_space<vmem>>, vector<28x32xf32>
    tpu.vector_store %arg7[%c28_22, %c128_23], %18 {strides = array<i32>} : memref<56x640xf32, #tpu.memory_space<vmem>>, vector<28x32xf32>,
    %c34 = arith.constant 34 : index
    %c0_24 = arith.constant 0 : index
    %20 = vector.load %arg1[%c34, %c0_24] : memref<64x32xf32, #tpu.memory_space<vmem>>, vector<28x32xf32>
    %c28_25 = arith.constant 28 : index
    %c256_26 = arith.constant 256 : index
    %21 = vector.load %arg7[%c28_25, %c256_26] : memref<56x640xf32, #tpu.memory_space<vmem>>, vector<28x32xf32>
    tpu.vector_store %arg7[%c28_25, %c256_26], %20 {strides = array<i32>} : memref<56x640xf32, #tpu.memory_space<vmem>>, vector<28x32xf32>,
    %c35 = arith.constant 35 : index
    %c0_27 = arith.constant 0 : index
    %22 = vector.load %arg1[%c35, %c0_27] : memref<64x32xf32, #tpu.memory_space<vmem>>, vector<28x32xf32>
    %c28_28 = arith.constant 28 : index
    %c384_29 = arith.constant 384 : index
    %23 = vector.load %arg7[%c28_28, %c384_29] : memref<56x640xf32, #tpu.memory_space<vmem>>, vector<28x32xf32>
    tpu.vector_store %arg7[%c28_28, %c384_29], %22 {strides = array<i32>} : memref<56x640xf32, #tpu.memory_space<vmem>>, vector<28x32xf32>,
    %c36 = arith.constant 36 : index
    %c0_30 = arith.constant 0 : index
    %24 = vector.load %arg1[%c36, %c0_30] : memref<64x32xf32, #tpu.memory_space<vmem>>, vector<28x32xf32>
    %c28_31 = arith.constant 28 : index
    %c512_32 = arith.constant 512 : index
    %25 = vector.load %arg7[%c28_31, %c512_32] : memref<56x640xf32, #tpu.memory_space<vmem>>, vector<28x32xf32>
    tpu.vector_store %arg7[%c28_31, %c512_32], %24 {strides = array<i32>} : memref<56x640xf32, #tpu.memory_space<vmem>>, vector<28x32xf32>,
    %c0_33 = arith.constant 0 : index
    %c0_34 = arith.constant 0 : index
    %26 = vector.load %arg7[%c0_33, %c0_34] : memref<56x640xf32, #tpu.memory_space<vmem>>, vector<56x640xf32>
    %27 = arith.truncf %26 : vector<56x640xf32> to vector<56x640xbf16>
    %c0_35 = arith.constant 0 : index
    %c0_36 = arith.constant 0 : index
    %28 = vector.load %arg2[%c0_35, %c0_36] : memref<1920x168xbf16, #tpu.memory_space<vmem>>, vector<640x168xbf16>
    %cst_37 = arith.constant dense<0.000000e+00> : vector<56x168xf32>
    %29 = tpu.matmul %27, %28, %cst_37 {dimension_numbers = #tpu.dot_dimension_numbers<[1], [0], [0], [1], [0, 0, 1, 1], [], []>} : vector<56x640xbf16>, vector<640x168xbf16>, vector<56x168xf32> -> vector<56x168xf32>
    %c0_38 = arith.constant 0 : index
    %c0_39 = arith.constant 0 : index
    %30 = vector.load %arg4[%c0_38, %c0_39] : memref<8x168xf32, #tpu.memory_space<vmem>>, vector<1x168xf32>
    %31 = vector.broadcast %30 : vector<1x168xf32> to vector<56x168xf32>
    %32 = arith.addf %29, %31 : vector<56x168xf32>
    %cst_40 = arith.constant 0.000000e+00 : f32
    %33 = vector.broadcast %cst_40 : f32 to vector<56x168xf32>
    %34 = arith.maximumf %32, %33 : vector<56x168xf32>
    %c0_41 = arith.constant 0 : index
    %c0_42 = arith.constant 0 : index
    %35 = vector.load %arg5[%c0_41, %c0_42] : memref<48x56xf32, #tpu.memory_space<vmem>>, vector<28x56xf32>
    %cst_43 = arith.constant dense<0.000000e+00> : vector<28x168xf32>
    %36 = tpu.matmul %35, %34, %cst_43 {dimension_numbers = #tpu.dot_dimension_numbers<[1], [0], [0], [1], [0, 0, 1, 1], [], []>} : vector<28x56xf32>, vector<56x168xf32>, vector<28x168xf32> -> vector<28x168xf32>
    %37 = vector.extract_strided_slice %36 {offsets = [0, 0], sizes = [10, 168], strides = [1, 1]} : vector<28x168xf32> to vector<10x168xf32>
    %c0_44 = arith.constant 0 : index
    %c0_45 = arith.constant 0 : index
    %38 = vector.load %arg8[%c0_44, %c0_45] : memref<20x1280xf32, #tpu.memory_space<vmem>>, vector<10x168xf32>
    tpu.vector_store %arg8[%c0_44, %c0_45], %37 {strides = array<i32>} : memref<20x1280xf32, #tpu.memory_space<vmem>>, vector<10x168xf32>,
    %39 = vector.extract_strided_slice %36 {offsets = [1, 0], sizes = [10, 168], strides = [1, 1]} : vector<28x168xf32> to vector<10x168xf32>
    %c0_46 = arith.constant 0 : index
    %c256_47 = arith.constant 256 : index
    %40 = vector.load %arg8[%c0_46, %c256_47] : memref<20x1280xf32, #tpu.memory_space<vmem>>, vector<10x168xf32>
    tpu.vector_store %arg8[%c0_46, %c256_47], %39 {strides = array<i32>} : memref<20x1280xf32, #tpu.memory_space<vmem>>, vector<10x168xf32>,
    %41 = vector.extract_strided_slice %36 {offsets = [2, 0], sizes = [10, 168], strides = [1, 1]} : vector<28x168xf32> to vector<10x168xf32>
    %c0_48 = arith.constant 0 : index
    %c512_49 = arith.constant 512 : index
    %42 = vector.load %arg8[%c0_48, %c512_49] : memref<20x1280xf32, #tpu.memory_space<vmem>>, vector<10x168xf32>
    tpu.vector_store %arg8[%c0_48, %c512_49], %41 {strides = array<i32>} : memref<20x1280xf32, #tpu.memory_space<vmem>>, vector<10x168xf32>,
    %43 = vector.extract_strided_slice %36 {offsets = [3, 0], sizes = [10, 168], strides = [1, 1]} : vector<28x168xf32> to vector<10x168xf32>
    %c0_50 = arith.constant 0 : index
    %c768 = arith.constant 768 : index
    %44 = vector.load %arg8[%c0_50, %c768] : memref<20x1280xf32, #tpu.memory_space<vmem>>, vector<10x168xf32>
    tpu.vector_store %arg8[%c0_50, %c768], %43 {strides = array<i32>} : memref<20x1280xf32, #tpu.memory_space<vmem>>, vector<10x168xf32>,
    %45 = vector.extract_strided_slice %36 {offsets = [4, 0], sizes = [10, 168], strides = [1, 1]} : vector<28x168xf32> to vector<10x168xf32>
    %c0_51 = arith.constant 0 : index
    %c1024 = arith.constant 1024 : index
    %46 = vector.load %arg8[%c0_51, %c1024] : memref<20x1280xf32, #tpu.memory_space<vmem>>, vector<10x168xf32>
    tpu.vector_store %arg8[%c0_51, %c1024], %45 {strides = array<i32>} : memref<20x1280xf32, #tpu.memory_space<vmem>>, vector<10x168xf32>,
    %47 = vector.extract_strided_slice %36 {offsets = [14, 0], sizes = [10, 168], strides = [1, 1]} : vector<28x168xf32> to vector<10x168xf32>
    %c10 = arith.constant 10 : index
    %c0_52 = arith.constant 0 : index
    %48 = vector.load %arg8[%c10, %c0_52] : memref<20x1280xf32, #tpu.memory_space<vmem>>, vector<10x168xf32>
    tpu.vector_store %arg8[%c10, %c0_52], %47 {strides = array<i32>} : memref<20x1280xf32, #tpu.memory_space<vmem>>, vector<10x168xf32>,
    %49 = vector.extract_strided_slice %36 {offsets = [15, 0], sizes = [10, 168], strides = [1, 1]} : vector<28x168xf32> to vector<10x168xf32>
    %c10_53 = arith.constant 10 : index
    %c256_54 = arith.constant 256 : index
    %50 = vector.load %arg8[%c10_53, %c256_54] : memref<20x1280xf32, #tpu.memory_space<vmem>>, vector<10x168xf32>
    tpu.vector_store %arg8[%c10_53, %c256_54], %49 {strides = array<i32>} : memref<20x1280xf32, #tpu.memory_space<vmem>>, vector<10x168xf32>,
    %51 = vector.extract_strided_slice %36 {offsets = [16, 0], sizes = [10, 168], strides = [1, 1]} : vector<28x168xf32> to vector<10x168xf32>
    %c10_55 = arith.constant 10 : index
    %c512_56 = arith.constant 512 : index
    %52 = vector.load %arg8[%c10_55, %c512_56] : memref<20x1280xf32, #tpu.memory_space<vmem>>, vector<10x168xf32>
    tpu.vector_store %arg8[%c10_55, %c512_56], %51 {strides = array<i32>} : memref<20x1280xf32, #tpu.memory_space<vmem>>, vector<10x168xf32>,
    %53 = vector.extract_strided_slice %36 {offsets = [17, 0], sizes = [10, 168], strides = [1, 1]} : vector<28x168xf32> to vector<10x168xf32>
    %c10_57 = arith.constant 10 : index
    %c768_58 = arith.constant 768 : index
    %54 = vector.load %arg8[%c10_57, %c768_58] : memref<20x1280xf32, #tpu.memory_space<vmem>>, vector<10x168xf32>
    tpu.vector_store %arg8[%c10_57, %c768_58], %53 {strides = array<i32>} : memref<20x1280xf32, #tpu.memory_space<vmem>>, vector<10x168xf32>,
    %55 = vector.extract_strided_slice %36 {offsets = [18, 0], sizes = [10, 168], strides = [1, 1]} : vector<28x168xf32> to vector<10x168xf32>
    %c10_59 = arith.constant 10 : index
    %c1024_60 = arith.constant 1024 : index
    %56 = vector.load %arg8[%c10_59, %c1024_60] : memref<20x1280xf32, #tpu.memory_space<vmem>>, vector<10x168xf32>
    tpu.vector_store %arg8[%c10_59, %c1024_60], %55 {strides = array<i32>} : memref<20x1280xf32, #tpu.memory_space<vmem>>, vector<10x168xf32>,
    %c0_61 = arith.constant 0 : index
    %c0_62 = arith.constant 0 : index
    %57 = vector.load %arg8[%c0_61, %c0_62] : memref<20x1280xf32, #tpu.memory_space<vmem>>, vector<20x1280xf32>
    %58 = arith.truncf %57 : vector<20x1280xf32> to vector<20x1280xbf16>
    %c640 = arith.constant 640 : index
    %c0_63 = arith.constant 0 : index
    %59 = vector.load %arg2[%c640, %c0_63] : memref<1920x168xbf16, #tpu.memory_space<vmem>>, vector<1280x160xbf16>
    %cst_64 = arith.constant dense<0.000000e+00> : vector<20x160xf32>
    %60 = tpu.matmul %58, %59, %cst_64 {dimension_numbers = #tpu.dot_dimension_numbers<[1], [0], [0], [1], [0, 0, 1, 1], [], []>} : vector<20x1280xbf16>, vector<1280x160xbf16>, vector<20x160xf32> -> vector<20x160xf32>
    %c1_65 = arith.constant 1 : index
    %c0_66 = arith.constant 0 : index
    %61 = vector.load %arg4[%c1_65, %c0_66] : memref<8x168xf32, #tpu.memory_space<vmem>>, vector<1x160xf32>
    %62 = vector.broadcast %61 : vector<1x160xf32> to vector<20x160xf32>
    %63 = arith.addf %60, %62 : vector<20x160xf32>
    %cst_67 = arith.constant 0.000000e+00 : f32
    %64 = vector.broadcast %cst_67 : f32 to vector<20x160xf32>
    %65 = arith.maximumf %63, %64 : vector<20x160xf32>
    %c32_68 = arith.constant 32 : index
    %c0_69 = arith.constant 0 : index
    %66 = vector.load %arg5[%c32_68, %c0_69] : memref<48x56xf32, #tpu.memory_space<vmem>>, vector<10x20xf32>
    %cst_70 = arith.constant dense<0.000000e+00> : vector<10x160xf32>
    %67 = tpu.matmul %66, %65, %cst_70 {dimension_numbers = #tpu.dot_dimension_numbers<[1], [0], [0], [1], [0, 0, 1, 1], [], []>} : vector<10x20xf32>, vector<20x160xf32>, vector<10x160xf32> -> vector<10x160xf32>
    %68 = vector.extract_strided_slice %67 {offsets = [0, 0], sizes = [1, 160], strides = [1, 1]} : vector<10x160xf32> to vector<1x160xf32>
    %c0_71 = arith.constant 0 : index
    %c0_72 = arith.constant 0 : index
    %69 = vector.load %arg9[%c0_71, %c0_72] : memref<2x1280xf32, #tpu.memory_space<vmem>>, vector<1x160xf32>
    tpu.vector_store %arg9[%c0_71, %c0_72], %68 {strides = array<i32>} : memref<2x1280xf32, #tpu.memory_space<vmem>>, vector<1x160xf32>,
    %70 = vector.extract_strided_slice %67 {offsets = [1, 0], sizes = [1, 160], strides = [1, 1]} : vector<10x160xf32> to vector<1x160xf32>
    %c0_73 = arith.constant 0 : index
    %c256_74 = arith.constant 256 : index
    %71 = vector.load %arg9[%c0_73, %c256_74] : memref<2x1280xf32, #tpu.memory_space<vmem>>, vector<1x160xf32>
    tpu.vector_store %arg9[%c0_73, %c256_74], %70 {strides = array<i32>} : memref<2x1280xf32, #tpu.memory_space<vmem>>, vector<1x160xf32>,
    %72 = vector.extract_strided_slice %67 {offsets = [2, 0], sizes = [1, 160], strides = [1, 1]} : vector<10x160xf32> to vector<1x160xf32>
    %c0_75 = arith.constant 0 : index
    %c512_76 = arith.constant 512 : index
    %73 = vector.load %arg9[%c0_75, %c512_76] : memref<2x1280xf32, #tpu.memory_space<vmem>>, vector<1x160xf32>
    tpu.vector_store %arg9[%c0_75, %c512_76], %72 {strides = array<i32>} : memref<2x1280xf32, #tpu.memory_space<vmem>>, vector<1x160xf32>,
    %74 = vector.extract_strided_slice %67 {offsets = [3, 0], sizes = [1, 160], strides = [1, 1]} : vector<10x160xf32> to vector<1x160xf32>
    %c0_77 = arith.constant 0 : index
    %c768_78 = arith.constant 768 : index
    %75 = vector.load %arg9[%c0_77, %c768_78] : memref<2x1280xf32, #tpu.memory_space<vmem>>, vector<1x160xf32>
    tpu.vector_store %arg9[%c0_77, %c768_78], %74 {strides = array<i32>} : memref<2x1280xf32, #tpu.memory_space<vmem>>, vector<1x160xf32>,
    %76 = vector.extract_strided_slice %67 {offsets = [4, 0], sizes = [1, 160], strides = [1, 1]} : vector<10x160xf32> to vector<1x160xf32>
    %c0_79 = arith.constant 0 : index
    %c1024_80 = arith.constant 1024 : index
    %77 = vector.load %arg9[%c0_79, %c1024_80] : memref<2x1280xf32, #tpu.memory_space<vmem>>, vector<1x160xf32>
    tpu.vector_store %arg9[%c0_79, %c1024_80], %76 {strides = array<i32>} : memref<2x1280xf32, #tpu.memory_space<vmem>>, vector<1x160xf32>,
    %78 = vector.extract_strided_slice %67 {offsets = [5, 0], sizes = [1, 160], strides = [1, 1]} : vector<10x160xf32> to vector<1x160xf32>
    %c1_81 = arith.constant 1 : index
    %c0_82 = arith.constant 0 : index
    %79 = vector.load %arg9[%c1_81, %c0_82] : memref<2x1280xf32, #tpu.memory_space<vmem>>, vector<1x160xf32>
    tpu.vector_store %arg9[%c1_81, %c0_82], %78 {strides = array<i32>} : memref<2x1280xf32, #tpu.memory_space<vmem>>, vector<1x160xf32>,
    %80 = vector.extract_strided_slice %67 {offsets = [6, 0], sizes = [1, 160], strides = [1, 1]} : vector<10x160xf32> to vector<1x160xf32>
    %c1_83 = arith.constant 1 : index
    %c256_84 = arith.constant 256 : index
    %81 = vector.load %arg9[%c1_83, %c256_84] : memref<2x1280xf32, #tpu.memory_space<vmem>>, vector<1x160xf32>
    tpu.vector_store %arg9[%c1_83, %c256_84], %80 {strides = array<i32>} : memref<2x1280xf32, #tpu.memory_space<vmem>>, vector<1x160xf32>,
    %82 = vector.extract_strided_slice %67 {offsets = [7, 0], sizes = [1, 160], strides = [1, 1]} : vector<10x160xf32> to vector<1x160xf32>
    %c1_85 = arith.constant 1 : index
    %c512_86 = arith.constant 512 : index
    %83 = vector.load %arg9[%c1_85, %c512_86] : memref<2x1280xf32, #tpu.memory_space<vmem>>, vector<1x160xf32>
    tpu.vector_store %arg9[%c1_85, %c512_86], %82 {strides = array<i32>} : memref<2x1280xf32, #tpu.memory_space<vmem>>, vector<1x160xf32>,
    %84 = vector.extract_strided_slice %67 {offsets = [8, 0], sizes = [1, 160], strides = [1, 1]} : vector<10x160xf32> to vector<1x160xf32>
    %c1_87 = arith.constant 1 : index
    %c768_88 = arith.constant 768 : index
    %85 = vector.load %arg9[%c1_87, %c768_88] : memref<2x1280xf32, #tpu.memory_space<vmem>>, vector<1x160xf32>
    tpu.vector_store %arg9[%c1_87, %c768_88], %84 {strides = array<i32>} : memref<2x1280xf32, #tpu.memory_space<vmem>>, vector<1x160xf32>,
    %86 = vector.extract_strided_slice %67 {offsets = [9, 0], sizes = [1, 160], strides = [1, 1]} : vector<10x160xf32> to vector<1x160xf32>
    %c1_89 = arith.constant 1 : index
    %c1024_90 = arith.constant 1024 : index
    %87 = vector.load %arg9[%c1_89, %c1024_90] : memref<2x1280xf32, #tpu.memory_space<vmem>>, vector<1x160xf32>
    tpu.vector_store %arg9[%c1_89, %c1024_90], %86 {strides = array<i32>} : memref<2x1280xf32, #tpu.memory_space<vmem>>, vector<1x160xf32>,
    %c0_91 = arith.constant 0 : index
    %c0_92 = arith.constant 0 : index
    %88 = vector.load %arg9[%c0_91, %c0_92] : memref<2x1280xf32, #tpu.memory_space<vmem>>, vector<2x1280xf32>
    %89 = arith.truncf %88 : vector<2x1280xf32> to vector<2x1280xbf16>
    %c0_93 = arith.constant 0 : index
    %c0_94 = arith.constant 0 : index
    %90 = vector.load %arg3[%c0_93, %c0_94] : memref<1504x128xbf16, #tpu.memory_space<vmem>>, vector<1280x120xbf16>
    %cst_95 = arith.constant dense<0.000000e+00> : vector<2x120xf32>
    %91 = tpu.matmul %89, %90, %cst_95 {dimension_numbers = #tpu.dot_dimension_numbers<[1], [0], [0], [1], [0, 0, 1, 1], [], []>} : vector<2x1280xbf16>, vector<1280x120xbf16>, vector<2x120xf32> -> vector<2x120xf32>
    %c2_96 = arith.constant 2 : index
    %c0_97 = arith.constant 0 : index
    %92 = vector.load %arg4[%c2_96, %c0_97] : memref<8x168xf32, #tpu.memory_space<vmem>>, vector<1x120xf32>
    %93 = vector.broadcast %92 : vector<1x120xf32> to vector<2x120xf32>
    %94 = arith.addf %91, %93 : vector<2x120xf32>
    %cst_98 = arith.constant 0.000000e+00 : f32
    %95 = vector.broadcast %cst_98 : f32 to vector<2x120xf32>
    %96 = arith.maximumf %94, %95 : vector<2x120xf32>
    %97 = arith.truncf %96 : vector<2x120xf32> to vector<2x120xbf16>
    %c1280 = arith.constant 1280 : index
    %c0_99 = arith.constant 0 : index
    %98 = vector.load %arg3[%c1280, %c0_99] : memref<1504x128xbf16, #tpu.memory_space<vmem>>, vector<120x84xbf16>
    %cst_100 = arith.constant dense<0.000000e+00> : vector<2x84xf32>
    %99 = tpu.matmul %97, %98, %cst_100 {dimension_numbers = #tpu.dot_dimension_numbers<[1], [0], [0], [1], [0, 0, 1, 1], [], []>} : vector<2x120xbf16>, vector<120x84xbf16>, vector<2x84xf32> -> vector<2x84xf32>
    %c3_101 = arith.constant 3 : index
    %c0_102 = arith.constant 0 : index
    %100 = vector.load %arg4[%c3_101, %c0_102] : memref<8x168xf32, #tpu.memory_space<vmem>>, vector<1x84xf32>
    %101 = vector.broadcast %100 : vector<1x84xf32> to vector<2x84xf32>
    %102 = arith.addf %99, %101 : vector<2x84xf32>
    %cst_103 = arith.constant 0.000000e+00 : f32
    %103 = vector.broadcast %cst_103 : f32 to vector<2x84xf32>
    %104 = arith.maximumf %102, %103 : vector<2x84xf32>
    %105 = arith.truncf %104 : vector<2x84xf32> to vector<2x84xbf16>
    %c1408 = arith.constant 1408 : index
    %c0_104 = arith.constant 0 : index
    %106 = vector.load %arg3[%c1408, %c0_104] : memref<1504x128xbf16, #tpu.memory_space<vmem>>, vector<84x10xbf16>
    %cst_105 = arith.constant dense<0.000000e+00> : vector<2x10xf32>
    %107 = tpu.matmul %105, %106, %cst_105 {dimension_numbers = #tpu.dot_dimension_numbers<[1], [0], [0], [1], [0, 0, 1, 1], [], []>} : vector<2x84xbf16>, vector<84x10xbf16>, vector<2x10xf32> -> vector<2x10xf32>
    %c4_106 = arith.constant 4 : index
    %c0_107 = arith.constant 0 : index
    %108 = vector.load %arg4[%c4_106, %c0_107] : memref<8x168xf32, #tpu.memory_space<vmem>>, vector<1x10xf32>
    %109 = vector.broadcast %108 : vector<1x10xf32> to vector<2x10xf32>
    %110 = arith.addf %107, %109 : vector<2x10xf32>
    %cst_108 = arith.constant dense<0xFF800000> : vector<2xf32>
    %111 = vector.multi_reduction <maximumf>, %110, %cst_108 [1] : vector<2x10xf32> to vector<2xf32>
    %112 = vector.shape_cast %111 : vector<2xf32> to vector<2x1xf32>
    %113 = vector.broadcast %112 : vector<2x1xf32> to vector<2x10xf32>
    %114 = arith.subf %110, %113 : vector<2x10xf32>
    %115 = math.exp %114 : vector<2x10xf32>
    %cst_109 = arith.constant dense<0.000000e+00> : vector<2xf32>
    %116 = vector.multi_reduction <add>, %115, %cst_109 [1] : vector<2x10xf32> to vector<2xf32>
    %117 = vector.shape_cast %116 : vector<2xf32> to vector<2x1xf32>
    %118 = tpu.reciprocal %117 {approx = true} : vector<2x1xf32> -> vector<2x1xf32>
    %119 = vector.broadcast %118 : vector<2x1xf32> to vector<2x10xf32>
    %120 = arith.mulf %115, %119 : vector<2x10xf32>
    %c0_110 = arith.constant 0 : index
    %c0_111 = arith.constant 0 : index
    %121 = vector.load %arg6[%c0_110, %c0_111] : memref<2x10xf32, #tpu.memory_space<vmem>>, vector<2x10xf32>
    tpu.vector_store %arg6[%c0_110, %c0_111], %120 {strides = array<i32>} : memref<2x10xf32, #tpu.memory_space<vmem>>, vector<2x10xf32>,
    return
  }
  func.func @transform_0(%arg0: i32) -> (i32, i32) {
    %c0_i32 = arith.constant 0 : i32
    %c0_i32_0 = arith.constant 0 : i32
    %c0_i32_1 = arith.constant 0 : i32
    return %c0_i32, %c0_i32_0 : i32, i32
  }
  func.func @transform_1(%arg0: i32) -> (i32, i32) {
    %c0_i32 = arith.constant 0 : i32
    %c0_i32_0 = arith.constant 0 : i32
    %c0_i32_1 = arith.constant 0 : i32
    return %c0_i32, %c0_i32_0 : i32, i32
  }
  func.func @transform_2(%arg0: i32) -> (i32, i32) {
    %c0_i32 = arith.constant 0 : i32
    %c0_i32_0 = arith.constant 0 : i32
    %c0_i32_1 = arith.constant 0 : i32
    return %c0_i32, %c0_i32_0 : i32, i32
  }
  func.func @transform_3(%arg0: i32) -> (i32, i32) {
    %c0_i32 = arith.constant 0 : i32
    %c0_i32_0 = arith.constant 0 : i32
    %c0_i32_1 = arith.constant 0 : i32
    return %c0_i32, %c0_i32_0 : i32, i32
  }
  func.func @transform_4(%arg0: i32) -> (i32, i32) {
    %c0_i32 = arith.constant 0 : i32
    %c0_i32_0 = arith.constant 0 : i32
    %c0_i32_1 = arith.constant 0 : i32
    return %c0_i32, %c0_i32_0 : i32, i32
  }
  func.func @transform_5(%arg0: i32) -> (i32, i32) {
    %c0_i32 = arith.constant 0 : i32
    %c0_i32_0 = arith.constant 0 : i32
    %c0_i32_1 = arith.constant 0 : i32
    return %c0_i32, %c0_i32_0 : i32, i32
  }
}

</mosaic_0001>

<llo_original>
// kernel: forward.1
$region0: #{forward.1}
  #allocation0 [shape = 'u32[]', space=smem, size = 0x4, offset = 0x4, fixed_abs, tag = 'smem constant byte address 0x4 - core index']
  #allocation1 [shape = 'u32[144,128]{1,0:T(1,128)}', space=vmem, size = 0x12000, scoped, tag = 'internal scratch']
  #allocation2 [shape = 'f32[56,640]{1,0:T(8,128)}', space=vmem, size = 0x23000, scoped, tag = 'scratch operand']
  #allocation3 [shape = 'f32[20,1280]{1,0:T(8,128)}', space=vmem, size = 0x1e000, scoped, tag = 'scratch operand']
  #allocation4 [shape = 'f32[2,1280]{1,0:T(2,128)}', space=vmem, size = 0x2800, scoped, tag = 'scratch operand']
  %s0 = inlined_call_operand.vmem [shape: f32[64,32], index: 0, kind: input, shape index: {}]
  %s1 = inlined_call_operand.vmem [shape: bf16[1920,168], index: 1, kind: input, shape index: {}]
  %s2 = inlined_call_operand.vmem [shape: bf16[1504,128], index: 2, kind: input, shape index: {}]
  %s3 = inlined_call_operand.vmem [shape: f32[8,168], index: 3, kind: input, shape index: {}]
  %s4 = inlined_call_operand.vmem [shape: f32[48,56], index: 4, kind: input, shape index: {}]
  %s5 = inlined_call_operand.hbm [shape: f32[2,10], index: 5, kind: output, shape index: {}]
  %s6 = sld [smem:[#allocation0]]
  $region30: #{forward.1} parent=0
    _
  %s8 = ssub.s32 1, %s6
  %s9 = scalar_select 0, %s8, %s6
  $region1: #{forward.1} parent=0
    #allocation5 [shape = 'u8[1024]{0}', space=vmem, size = 0x400, scoped, tag = 'output window, operand 0, single buffered']
    #allocation6 [shape = 's32[1]{0}', space=sflag, size = 0x4, scoped, tag = 'scoped memory for forward.1']
    %10 = vsyncpa [#allocation6], 0
    // Predicated region
    $region2: #{forward.1} parent=1 // pred_check
      _
    $region3: #{forward.1} parent=1 // pred_check_branch
      %12 = sbr.rel (0) target = $region5
    $region4: #{forward.1} parent=1 // pred_region
      _
    $region5: #{forward.1} parent=1 // pred_fallthru
      _
    // Predicated region
    $region6: #{forward.1} parent=1 // pred_check
      _
    $region7: #{forward.1} parent=1 // pred_check_branch
      %14 = sbr.rel (0) target = $region9
    $region8: #{forward.1} parent=1 // pred_region
      _
    $region9: #{forward.1} parent=1 // pred_fallthru
      _
    // Predicated region
    $region10: #{forward.1} parent=1 // pred_check
      _
    $region11: #{forward.1} parent=1 // pred_check_branch
      %16 = sbr.rel (0) target = $region13
    $region12: #{forward.1} parent=1 // pred_region
      _
    $region13: #{forward.1} parent=1 // pred_fallthru
      _
    // Predicated region
    $region14: #{forward.1} parent=1 // pred_check
      _
    $region15: #{forward.1} parent=1 // pred_check_branch
      %18 = sbr.rel (0) target = $region17
    $region16: #{forward.1} parent=1 // pred_region
      _
    $region17: #{forward.1} parent=1 // pred_fallthru
      _
    // Predicated region
    $region18: #{forward.1} parent=1 // pred_check
      _
    $region19: #{forward.1} parent=1 // pred_check_branch
      %20 = sbr.rel (0) target = $region21
    $region20: #{forward.1} parent=1 // pred_region
      _
    $region21: #{forward.1} parent=1 // pred_fallthru
      _
    %22 = vst [vmem:[#allocation2] sm:$0xff] 0.0
    %23 = vst [vmem:[#allocation2 + $0x8] sm:$0xff] 0.0
    %24 = vst [vmem:[#allocation2 + $0x10] sm:$0xff] 0.0
    %25 = vst [vmem:[#allocation2 + $0x18] sm:$0xff] 0.0
    %26 = vst [vmem:[#allocation2 + $0x20] sm:$0xff] 0.0
    %27 = vst [vmem:[#allocation2 + $0x28] sm:$0xff] 0.0
    %28 = vst [vmem:[#allocation2 + $0x30] sm:$0xff] 0.0
    %29 = vst [vmem:[#allocation2 + $0x38] sm:$0xff] 0.0
    %30 = vst [vmem:[#allocation2 + $0x40] sm:$0xff] 0.0
    %31 = vst [vmem:[#allocation2 + $0x48] sm:$0xff] 0.0
    %32 = vst [vmem:[#allocation2 + $0x50] sm:$0xff] 0.0
    %33 = vst [vmem:[#allocation2 + $0x58] sm:$0xff] 0.0
    %34 = vst [vmem:[#allocation2 + $0x60] sm:$0xff] 0.0
    %35 = vst [vmem:[#allocation2 + $0x68] sm:$0xff] 0.0
    %36 = vst [vmem:[#allocation2 + $0x70] sm:$0xff] 0.0
    %37 = vst [vmem:[#allocation2 + $0x78] sm:$0xff] 0.0
    %38 = vst [vmem:[#allocation2 + $0x80] sm:$0xff] 0.0
    %39 = vst [vmem:[#allocation2 + $0x88] sm:$0xff] 0.0
    %40 = vst [vmem:[#allocation2 + $0x90] sm:$0xff] 0.0
    %41 = vst [vmem:[#allocation2 + $0x98] sm:$0xff] 0.0
    %42 = vst [vmem:[#allocation2 + $0xa0] sm:$0xff] 0.0
    %43 = vst [vmem:[#allocation2 + $0xa8] sm:$0xff] 0.0
    %44 = vst [vmem:[#allocation2 + $0xb0] sm:$0xff] 0.0
    %45 = vst [vmem:[#allocation2 + $0xb8] sm:$0xff] 0.0
    %46 = vst [vmem:[#allocation2 + $0xc0] sm:$0xff] 0.0
    %47 = vst [vmem:[#allocation2 + $0xc8] sm:$0xff] 0.0
    %48 = vst [vmem:[#allocation2 + $0xd0] sm:$0xff] 0.0
    %49 = vst [vmem:[#allocation2 + $0xd8] sm:$0xff] 0.0
    %50 = vst [vmem:[#allocation2 + $0xe0] sm:$0xff] 0.0
    %51 = vst [vmem:[#allocation2 + $0xe8] sm:$0xff] 0.0
    %52 = vst [vmem:[#allocation2 + $0xf0] sm:$0xff] 0.0
    %53 = vst [vmem:[#allocation2 + $0xf8] sm:$0xff] 0.0
    %54 = vst [vmem:[#allocation2 + $0x100] sm:$0xff] 0.0
    %55 = vst [vmem:[#allocation2 + $0x108] sm:$0xff] 0.0
    %56 = vst [vmem:[#allocation2 + $0x110] sm:$0xff] 0.0
    %57 = vst [vmem:[#allocation3] sm:$0xff] 0.0
    %58 = vst [vmem:[#allocation3 + $0x8] sm:$0xff] 0.0
    %59 = vst [vmem:[#allocation3 + $0x10] sm:$0xff] 0.0
    %60 = vst [vmem:[#allocation3 + $0x18] sm:$0xff] 0.0
    %61 = vst [vmem:[#allocation3 + $0x20] sm:$0xff] 0.0
    %62 = vst [vmem:[#allocation3 + $0x28] sm:$0xff] 0.0
    %63 = vst [vmem:[#allocation3 + $0x30] sm:$0xff] 0.0
    %64 = vst [vmem:[#allocation3 + $0x38] sm:$0xff] 0.0
    %65 = vst [vmem:[#allocation3 + $0x40] sm:$0xff] 0.0
    %66 = vst [vmem:[#allocation3 + $0x48] sm:$0xff] 0.0
    %67 = vst [vmem:[#allocation3 + $0x50] sm:$0xff] 0.0
    %68 = vst [vmem:[#allocation3 + $0x58] sm:$0xff] 0.0
    %69 = vst [vmem:[#allocation3 + $0x60] sm:$0xff] 0.0
    %70 = vst [vmem:[#allocation3 + $0x68] sm:$0xff] 0.0
    %71 = vst [vmem:[#allocation3 + $0x70] sm:$0xff] 0.0
    %72 = vst [vmem:[#allocation3 + $0x78] sm:$0xff] 0.0
    %73 = vst [vmem:[#allocation3 + $0x80] sm:$0xff] 0.0
    %74 = vst [vmem:[#allocation3 + $0x88] sm:$0xff] 0.0
    %75 = vst [vmem:[#allocation3 + $0x90] sm:$0xff] 0.0
    %76 = vst [vmem:[#allocation3 + $0x98] sm:$0xff] 0.0
    %77 = vst [vmem:[#allocation3 + $0xa0] sm:$0xf] 0.0
    %78 = vst [vmem:[#allocation3 + $0xa8] sm:$0xf] 0.0
    %79 = vst [vmem:[#allocation3 + $0xb0] sm:$0xf] 0.0
    %80 = vst [vmem:[#allocation3 + $0xb8] sm:$0xf] 0.0
    %81 = vst [vmem:[#allocation3 + $0xc0] sm:$0xf] 0.0
    %82 = vst [vmem:[#allocation3 + $0xc8] sm:$0xf] 0.0
    %83 = vst [vmem:[#allocation3 + $0xd0] sm:$0xf] 0.0
    %84 = vst [vmem:[#allocation3 + $0xd8] sm:$0xf] 0.0
    %85 = vst [vmem:[#allocation3 + $0xe0] sm:$0xf] 0.0
    %86 = vst [vmem:[#allocation3 + $0xe8] sm:$0xf] 0.0
    %87 = vst [vmem:[#allocation4] sm:$0xff] 0.0
    %88 = vst [vmem:[#allocation4 + $0x8] sm:$0xff] 0.0
    %89 = vst [vmem:[#allocation4 + $0x10] sm:$0xf] 0.0
    %v90 = vld [vmem:[%s0] sm:$0xff]
    %v91 = vld [vmem:[%s0 + $0x8] sm:$0xff]
    %v92 = vld [vmem:[%s0 + $0x10] sm:$0xff]
    %v93 = vld [vmem:[%s0 + $0x18] sm:$0xf]
    %vm94 = vcmask 261120
    %95 = vst.msk [vmem:[#allocation2] sm:$0xff] %vm94, %v90
    %96 = vst.msk [vmem:[#allocation2 + $0x28] sm:$0xff] %vm94, %v91
    %97 = vst.msk [vmem:[#allocation2 + $0x50] sm:$0xff] %vm94, %v92
    %vm98 = vcmask 257024
    %99 = vst.msk [vmem:[#allocation2 + $0x78] sm:$0xf] %vm98, %v93
    %v100 = vld [vmem:[%s0 + $0x1] sm:$0xff]
    %v101 = vld [vmem:[%s0 + $0x9] sm:$0xff]
    %v102 = vld [vmem:[%s0 + $0x11] sm:$0xff]
    %v103 = vld [vmem:[%s0 + $0x19] sm:$0xf]
    %104 = vst.msk [vmem:[#allocation2 + $0x8] sm:$0xff] %vm94, %v100
    %105 = vst.msk [vmem:[#allocation2 + $0x30] sm:$0xff] %vm94, %v101
    %106 = vst.msk [vmem:[#allocation2 + $0x58] sm:$0xff] %vm94, %v102
    %107 = vst.msk [vmem:[#allocation2 + $0x80] sm:$0xf] %vm98, %v103
    %v108 = vld [vmem:[%s0 + $0x2] sm:$0xff]
    %v109 = vld [vmem:[%s0 + $0xa] sm:$0xff]
    %v110 = vld [vmem:[%s0 + $0x12] sm:$0xff]
    %v111 = vld [vmem:[%s0 + $0x1a] sm:$0xf]
    %112 = vst.msk [vmem:[#allocation2 + $0x10] sm:$0xff] %vm94, %v108
    %113 = vst.msk [vmem:[#allocation2 + $0x38] sm:$0xff] %vm94, %v109
    %114 = vst.msk [vmem:[#allocation2 + $0x60] sm:$0xff] %vm94, %v110
    %115 = vst.msk [vmem:[#allocation2 + $0x88] sm:$0xf] %vm98, %v111
    %v116 = vld [vmem:[%s0 + $0x3] sm:$0xff]
    %v117 = vld [vmem:[%s0 + $0xb] sm:$0xff]
    %v118 = vld [vmem:[%s0 + $0x13] sm:$0xff]
    %v119 = vld [vmem:[%s0 + $0x1b] sm:$0xf]
    %120 = vst.msk [vmem:[#allocation2 + $0x18] sm:$0xff] %vm94, %v116
    %121 = vst.msk [vmem:[#allocation2 + $0x40] sm:$0xff] %vm94, %v117
    %122 = vst.msk [vmem:[#allocation2 + $0x68] sm:$0xff] %vm94, %v118
    %123 = vst.msk [vmem:[#allocation2 + $0x90] sm:$0xf] %vm98, %v119
    %v124 = vld [vmem:[%s0 + $0x4] sm:$0xff]
    %v125 = vld [vmem:[%s0 + $0xc] sm:$0xff]
    %v126 = vld [vmem:[%s0 + $0x14] sm:$0xff]
    %v127 = vld [vmem:[%s0 + $0x1c] sm:$0xf]
    %128 = vst.msk [vmem:[#allocation2 + $0x20] sm:$0xff] %vm94, %v124
    %129 = vst.msk [vmem:[#allocation2 + $0x48] sm:$0xff] %vm94, %v125
    %130 = vst.msk [vmem:[#allocation2 + $0x70] sm:$0xff] %vm94, %v126
    %131 = vst.msk [vmem:[#allocation2 + $0x98] sm:$0xf] %vm98, %v127
    %v132 = vld [vmem:[%s0 + $0x20] sm:$0xff]
    %v133 = vld [vmem:[%s0 + $0x28] sm:$0xff]
    %v134 = vld [vmem:[%s0 + $0x30] sm:$0xff]
    %v135 = vld [vmem:[%s0 + $0x38] sm:$0xf]
    %vm140 = vcmask 1043456
    %v141 = vrot.slane %v132, 4
    %v142 = vrot.slane %v133, 4
    %v143 = vsel %vm140, %v141, %v142
    %v144 = vrot.slane %v134, 4
    %v145 = vsel %vm140, %v142, %v144
    %v146 = vrot.slane %v135, 4
    %v147 = vsel %vm140, %v144, %v146
    %vm152 = vcmask 261124
    %153 = vst.msk [vmem:[#allocation2 + $0x78] sm:$0xf0] %vm152, %v141
    %154 = vst.msk [vmem:[#allocation2 + $0xa0] sm:$0xff] %vm94, %v143
    %155 = vst.msk [vmem:[#allocation2 + $0xc8] sm:$0xff] %vm94, %v145
    %156 = vst.msk [vmem:[#allocation2 + $0xf0] sm:$0xff] %vm94, %v147
    %v157 = vld [vmem:[%s0 + $0x21] sm:$0xff]
    %v158 = vld [vmem:[%s0 + $0x29] sm:$0xff]
    %v159 = vld [vmem:[%s0 + $0x31] sm:$0xff]
    %v160 = vld [vmem:[%s0 + $0x39] sm:$0xf]
    %v165 = vrot.slane %v157, 4
    %v166 = vrot.slane %v158, 4
    %v167 = vsel %vm140, %v165, %v166
    %v168 = vrot.slane %v159, 4
    %v169 = vsel %vm140, %v166, %v168
    %v170 = vrot.slane %v160, 4
    %v171 = vsel %vm140, %v168, %v170
    %176 = vst.msk [vmem:[#allocation2 + $0x80] sm:$0xf0] %vm152, %v165
    %177 = vst.msk [vmem:[#allocation2 + $0xa8] sm:$0xff] %vm94, %v167
    %178 = vst.msk [vmem:[#allocation2 + $0xd0] sm:$0xff] %vm94, %v169
    %179 = vst.msk [vmem:[#allocation2 + $0xf8] sm:$0xff] %vm94, %v171
    %v180 = vld [vmem:[%s0 + $0x22] sm:$0xff]
    %v181 = vld [vmem:[%s0 + $0x2a] sm:$0xff]
    %v182 = vld [vmem:[%s0 + $0x32] sm:$0xff]
    %v183 = vld [vmem:[%s0 + $0x3a] sm:$0xf]
    %v188 = vrot.slane %v180, 4
    %v189 = vrot.slane %v181, 4
    %v190 = vsel %vm140, %v188, %v189
    %v191 = vrot.slane %v182, 4
    %v192 = vsel %vm140, %v189, %v191
    %v193 = vrot.slane %v183, 4
    %v194 = vsel %vm140, %v191, %v193
    %199 = vst.msk [vmem:[#allocation2 + $0x88] sm:$0xf0] %vm152, %v188
    %200 = vst.msk [vmem:[#allocation2 + $0xb0] sm:$0xff] %vm94, %v190
    %201 = vst.msk [vmem:[#allocation2 + $0xd8] sm:$0xff] %vm94, %v192
    %202 = vst.msk [vmem:[#allocation2 + $0x100] sm:$0xff] %vm94, %v194
    %v203 = vld [vmem:[%s0 + $0x23] sm:$0xff]
    %v204 = vld [vmem:[%s0 + $0x2b] sm:$0xff]
    %v205 = vld [vmem:[%s0 + $0x33] sm:$0xff]
    %v206 = vld [vmem:[%s0 + $0x3b] sm:$0xf]
    %v211 = vrot.slane %v203, 4
    %v212 = vrot.slane %v204, 4
    %v213 = vsel %vm140, %v211, %v212
    %v214 = vrot.slane %v205, 4
    %v215 = vsel %vm140, %v212, %v214
    %v216 = vrot.slane %v206, 4
    %v217 = vsel %vm140, %v214, %v216
    %222 = vst.msk [vmem:[#allocation2 + $0x90] sm:$0xf0] %vm152, %v211
    %223 = vst.msk [vmem:[#allocation2 + $0xb8] sm:$0xff] %vm94, %v213
    %224 = vst.msk [vmem:[#allocation2 + $0xe0] sm:$0xff] %vm94, %v215
    %225 = vst.msk [vmem:[#allocation2 + $0x108] sm:$0xff] %vm94, %v217
    %v226 = vld [vmem:[%s0 + $0x24] sm:$0xff]
    %v227 = vld [vmem:[%s0 + $0x2c] sm:$0xff]
    %v228 = vld [vmem:[%s0 + $0x34] sm:$0xff]
    %v229 = vld [vmem:[%s0 + $0x3c] sm:$0xf]
    %v234 = vrot.slane %v226, 4
    %v235 = vrot.slane %v227, 4
    %v236 = vsel %vm140, %v234, %v235
    %v237 = vrot.slane %v228, 4
    %v238 = vsel %vm140, %v235, %v237
    %v239 = vrot.slane %v229, 4
    %v240 = vsel %vm140, %v237, %v239
    %245 = vst.msk [vmem:[#allocation2 + $0x98] sm:$0xf0] %vm152, %v234
    %246 = vst.msk [vmem:[#allocation2 + $0xc0] sm:$0xff] %vm94, %v236
    %247 = vst.msk [vmem:[#allocation2 + $0xe8] sm:$0xff] %vm94, %v238
    %248 = vst.msk [vmem:[#allocation2 + $0x110] sm:$0xff] %vm94, %v240
    %v249 = vld [vmem:[#allocation2] sm:$0xff]
    %v250 = vld [vmem:[#allocation2 + $0x8] sm:$0xff]
    %v251 = vld [vmem:[#allocation2 + $0x10] sm:$0xff]
    %v252 = vld [vmem:[#allocation2 + $0x18] sm:$0xff]
    %v253 = vld [vmem:[#allocation2 + $0x20] sm:$0xff]
    %v254 = vld [vmem:[#allocation2 + $0x28] sm:$0xff]
    %v255 = vld [vmem:[#allocation2 + $0x30] sm:$0xff]
    %v256 = vld [vmem:[#allocation2 + $0x38] sm:$0xff]
    %v257 = vld [vmem:[#allocation2 + $0x40] sm:$0xff]
    %v258 = vld [vmem:[#allocation2 + $0x48] sm:$0xff]
    %v259 = vld [vmem:[#allocation2 + $0x50] sm:$0xff]
    %v260 = vld [vmem:[#allocation2 + $0x58] sm:$0xff]
    %v261 = vld [vmem:[#allocation2 + $0x60] sm:$0xff]
    %v262 = vld [vmem:[#allocation2 + $0x68] sm:$0xff]
    %v263 = vld [vmem:[#allocation2 + $0x70] sm:$0xff]
    %v264 = vld [vmem:[#allocation2 + $0x78] sm:$0xff]
    %v265 = vld [vmem:[#allocation2 + $0x80] sm:$0xff]
    %v266 = vld [vmem:[#allocation2 + $0x88] sm:$0xff]
    %v267 = vld [vmem:[#allocation2 + $0x90] sm:$0xff]
    %v268 = vld [vmem:[#allocation2 + $0x98] sm:$0xff]
    %v269 = vld [vmem:[#allocation2 + $0xa0] sm:$0xff]
    %v270 = vld [vmem:[#allocation2 + $0xa8] sm:$0xff]
    %v271 = vld [vmem:[#allocation2 + $0xb0] sm:$0xff]
    %v272 = vld [vmem:[#allocation2 + $0xb8] sm:$0xff]
    %v273 = vld [vmem:[#allocation2 + $0xc0] sm:$0xff]
    %v274 = vld [vmem:[#allocation2 + $0xc8] sm:$0xff]
    %v275 = vld [vmem:[#allocation2 + $0xd0] sm:$0xff]
    %v276 = vld [vmem:[#allocation2 + $0xd8] sm:$0xff]
    %v277 = vld [vmem:[#allocation2 + $0xe0] sm:$0xff]
    %v278 = vld [vmem:[#allocation2 + $0xe8] sm:$0xff]
    %v279 = vld [vmem:[#allocation2 + $0xf0] sm:$0xff]
    %v280 = vld [vmem:[#allocation2 + $0xf8] sm:$0xff]
    %v281 = vld [vmem:[#allocation2 + $0x100] sm:$0xff]
    %v282 = vld [vmem:[#allocation2 + $0x108] sm:$0xff]
    %v283 = vld [vmem:[#allocation2 + $0x110] sm:$0xff]
    %v284 = vpack.c.bf16 %v254, %v249
    %v285 = vpack.c.bf16 %v255, %v250
    %v286 = vpack.c.bf16 %v256, %v251
    %v287 = vpack.c.bf16 %v257, %v252
    %v288 = vpack.c.bf16 %v258, %v253
    %v289 = vpack.c.bf16 %v264, %v259
    %v290 = vpack.c.bf16 %v265, %v260
    %v291 = vpack.c.bf16 %v266, %v261
    %v292 = vpack.c.bf16 %v267, %v262
    %v293 = vpack.c.bf16 %v268, %v263
    %v294 = vpack.c.bf16 %v274, %v269
    %v295 = vpack.c.bf16 %v275, %v270
    %v296 = vpack.c.bf16 %v276, %v271
    %v297 = vpack.c.bf16 %v277, %v272
    %v298 = vpack.c.bf16 %v278, %v273
    %v299 = vpack.c.bf16 %v279, %v279
    %v300 = vpack.c.bf16 %v280, %v280
    %v301 = vpack.c.bf16 %v281, %v281
    %v302 = vpack.c.bf16 %v282, %v282
    %v303 = vpack.c.bf16 %v283, %v283
    %v304 = vld [vmem:[%s1] sm:$0xff]
    %v305 = vld [vmem:[%s1 + $0x8] sm:$0xff]
    %v306 = vld [vmem:[%s1 + $0x10] sm:$0xff]
    %v307 = vld [vmem:[%s1 + $0x18] sm:$0xff]
    %v308 = vld [vmem:[%s1 + $0x20] sm:$0xff]
    %v309 = vld [vmem:[%s1 + $0x28] sm:$0xff]
    %v310 = vld [vmem:[%s1 + $0x30] sm:$0xff]
    %v311 = vld [vmem:[%s1 + $0x38] sm:$0xff]
    %v312 = vld [vmem:[%s1 + $0x40] sm:$0xff]
    %v313 = vld [vmem:[%s1 + $0x48] sm:$0xff]
    %v314 = vld [vmem:[%s1 + $0x50] sm:$0xff]
    %v315 = vld [vmem:[%s1 + $0x58] sm:$0xff]
    %v316 = vld [vmem:[%s1 + $0x60] sm:$0xff]
    %v317 = vld [vmem:[%s1 + $0x68] sm:$0xff]
    %v318 = vld [vmem:[%s1 + $0x70] sm:$0xff]
    %v319 = vld [vmem:[%s1 + $0x78] sm:$0xff]
    %v320 = vld [vmem:[%s1 + $0x80] sm:$0xff]
    %v321 = vld [vmem:[%s1 + $0x88] sm:$0xff]
    %v322 = vld [vmem:[%s1 + $0x90] sm:$0xff]
    %v323 = vld [vmem:[%s1 + $0x98] sm:$0xff]
    %v324 = vld [vmem:[%s1 + $0xa0] sm:$0xff]
    %v325 = vld [vmem:[%s1 + $0xa8] sm:$0xff]
    %v326 = vld [vmem:[%s1 + $0xb0] sm:$0xff]
    %v327 = vld [vmem:[%s1 + $0xb8] sm:$0xff]
    %v328 = vld [vmem:[%s1 + $0xc0] sm:$0xff]
    %v329 = vld [vmem:[%s1 + $0xc8] sm:$0xff]
    %v330 = vld [vmem:[%s1 + $0xd0] sm:$0xff]
    %v331 = vld [vmem:[%s1 + $0xd8] sm:$0xff]
    %v332 = vld [vmem:[%s1 + $0xe0] sm:$0xff]
    %v333 = vld [vmem:[%s1 + $0xe8] sm:$0xff]
    %v334 = vld [vmem:[%s1 + $0xf0] sm:$0xff]
    %v335 = vld [vmem:[%s1 + $0xf8] sm:$0xff]
    %v336 = vld [vmem:[%s1 + $0x100] sm:$0xff]
    %v337 = vld [vmem:[%s1 + $0x108] sm:$0xff]
    %v338 = vld [vmem:[%s1 + $0x110] sm:$0xff]
    %v339 = vld [vmem:[%s1 + $0x118] sm:$0xff]
    %v340 = vld [vmem:[%s1 + $0x120] sm:$0xff]
    %v341 = vld [vmem:[%s1 + $0x128] sm:$0xff]
    %v342 = vld [vmem:[%s1 + $0x130] sm:$0xff]
    %v343 = vld [vmem:[%s1 + $0x138] sm:$0xff]
    %v344 = vld [vmem:[%s1 + $0x140] sm:$0xff]
    %v345 = vld [vmem:[%s1 + $0x148] sm:$0xff]
    %v346 = vld [vmem:[%s1 + $0x150] sm:$0xff]
    %v347 = vld [vmem:[%s1 + $0x158] sm:$0xff]
    %v348 = vld [vmem:[%s1 + $0x160] sm:$0xff]
    %v349 = vld [vmem:[%s1 + $0x168] sm:$0xff]
    %v350 = vld [vmem:[%s1 + $0x170] sm:$0xff]
    %v351 = vld [vmem:[%s1 + $0x178] sm:$0xff]
    %v352 = vld [vmem:[%s1 + $0x180] sm:$0xff]
    %v353 = vld [vmem:[%s1 + $0x188] sm:$0xff]
    %v354 = vld [vmem:[%s1 + $0x190] sm:$0xff]
    %v355 = vld [vmem:[%s1 + $0x198] sm:$0xff]
    %v356 = vld [vmem:[%s1 + $0x1a0] sm:$0xff]
    %v357 = vld [vmem:[%s1 + $0x1a8] sm:$0xff]
    %v358 = vld [vmem:[%s1 + $0x1b0] sm:$0xff]
    %v359 = vld [vmem:[%s1 + $0x1b8] sm:$0xff]
    %v360 = vld [vmem:[%s1 + $0x1c0] sm:$0xff]
    %v361 = vld [vmem:[%s1 + $0x1c8] sm:$0xff]
    %v362 = vld [vmem:[%s1 + $0x1d0] sm:$0xff]
    %v363 = vld [vmem:[%s1 + $0x1d8] sm:$0xff]
    %v364 = vld [vmem:[%s1 + $0x1e0] sm:$0xff]
    %v365 = vld [vmem:[%s1 + $0x1e8] sm:$0xff]
    %v366 = vld [vmem:[%s1 + $0x1f0] sm:$0xff]
    %v367 = vld [vmem:[%s1 + $0x1f8] sm:$0xff]
    %v368 = vld [vmem:[%s1 + $0x200] sm:$0xff]
    %v369 = vld [vmem:[%s1 + $0x208] sm:$0xff]
    %v370 = vld [vmem:[%s1 + $0x210] sm:$0xff]
    %v371 = vld [vmem:[%s1 + $0x218] sm:$0xff]
    %v372 = vld [vmem:[%s1 + $0x220] sm:$0xff]
    %v373 = vld [vmem:[%s1 + $0x228] sm:$0xff]
    %v374 = vld [vmem:[%s1 + $0x230] sm:$0xff]
    %v375 = vld [vmem:[%s1 + $0x238] sm:$0xff]
    %v376 = vld [vmem:[%s1 + $0x240] sm:$0xff]
    %v377 = vld [vmem:[%s1 + $0x248] sm:$0xff]
    %v378 = vld [vmem:[%s1 + $0x250] sm:$0xff]
    %v379 = vld [vmem:[%s1 + $0x258] sm:$0xff]
    %v380 = vld [vmem:[%s1 + $0x260] sm:$0xff]
    %v381 = vld [vmem:[%s1 + $0x268] sm:$0xff]
    %v382 = vld [vmem:[%s1 + $0x270] sm:$0xff]
    %v383 = vld [vmem:[%s1 + $0x278] sm:$0xff]
    %v384 = vld [vmem:[%s3] ss:$8 sm:$0x3]
    %v386 = vlaneseq
    %v387 = vshrl.u32 %v386, 7
    %v388 = vsub.s32 0, %v387
    %v389 = vrot.slane %v384, %v388
    %v390 = vlaneseq
    %v391 = vshrl.u32 %v390, 7
    %v392 = vsub.s32 1, %v391
    %v393 = vrot.slane %v384, %v392
    %v476 = vunpack.c.l.b16 %v304
    %v477 = vunpack.c.h.b16 %v304
    %v478 = vunpack.c.l.b16 %v305
    %v479 = vunpack.c.h.b16 %v305
    %v480 = vunpack.c.l.b16 %v306
    %v481 = vunpack.c.h.b16 %v306
    %v482 = vunpack.c.l.b16 %v307
    %v483 = vunpack.c.h.b16 %v307
    %v484 = vunpack.c.l.b16 %v308
    %v485 = vunpack.c.h.b16 %v308
    %v486 = vunpack.c.l.b16 %v309
    %v487 = vunpack.c.h.b16 %v309
    %v488 = vunpack.c.l.b16 %v310
    %v489 = vunpack.c.h.b16 %v310
    %v490 = vunpack.c.l.b16 %v311
    %v491 = vunpack.c.h.b16 %v311
    %v492 = vunpack.c.l.b16 %v312
    %v493 = vunpack.c.h.b16 %v312
    %v494 = vunpack.c.l.b16 %v313
    %v495 = vunpack.c.h.b16 %v313
    %v496 = vunpack.c.l.b16 %v314
    %v497 = vunpack.c.h.b16 %v314
    %v498 = vunpack.c.l.b16 %v315
    %v499 = vunpack.c.h.b16 %v315
    %v500 = vunpack.c.l.b16 %v316
    %v501 = vunpack.c.h.b16 %v316
    %v502 = vunpack.c.l.b16 %v317
    %v503 = vunpack.c.h.b16 %v317
    %v504 = vunpack.c.l.b16 %v318
    %v505 = vunpack.c.h.b16 %v318
    %v506 = vunpack.c.l.b16 %v319
    %v507 = vunpack.c.h.b16 %v319
    %v508 = vunpack.c.l.b16 %v320
    %v509 = vunpack.c.h.b16 %v320
    %v510 = vunpack.c.l.b16 %v321
    %v511 = vunpack.c.h.b16 %v321
    %v512 = vunpack.c.l.b16 %v322
    %v513 = vunpack.c.h.b16 %v322
    %v514 = vunpack.c.l.b16 %v323
    %v515 = vunpack.c.h.b16 %v323
    %v516 = vunpack.c.l.b16 %v324
    %v517 = vunpack.c.h.b16 %v324
    %v518 = vunpack.c.l.b16 %v325
    %v519 = vunpack.c.h.b16 %v325
    %v520 = vunpack.c.l.b16 %v326
    %v521 = vunpack.c.h.b16 %v326
    %v522 = vunpack.c.l.b16 %v327
    %v523 = vunpack.c.h.b16 %v327
    %v524 = vunpack.c.l.b16 %v328
    %v525 = vunpack.c.h.b16 %v328
    %v526 = vunpack.c.l.b16 %v329
    %v527 = vunpack.c.h.b16 %v329
    %v528 = vunpack.c.l.b16 %v330
    %v529 = vunpack.c.h.b16 %v330
    %v530 = vunpack.c.l.b16 %v331
    %v531 = vunpack.c.h.b16 %v331
    %v532 = vunpack.c.l.b16 %v332
    %v533 = vunpack.c.h.b16 %v332
    %v534 = vunpack.c.l.b16 %v333
    %v535 = vunpack.c.h.b16 %v333
    %v536 = vunpack.c.l.b16 %v334
    %v537 = vunpack.c.h.b16 %v334
    %v538 = vunpack.c.l.b16 %v335
    %v539 = vunpack.c.h.b16 %v335
    %v540 = vunpack.c.l.b16 %v336
    %v541 = vunpack.c.h.b16 %v336
    %v542 = vunpack.c.l.b16 %v337
    %v543 = vunpack.c.h.b16 %v337
    %v544 = vunpack.c.l.b16 %v338
    %v545 = vunpack.c.h.b16 %v338
    %v546 = vunpack.c.l.b16 %v339
    %v547 = vunpack.c.h.b16 %v339
    %v548 = vunpack.c.l.b16 %v340
    %v549 = vunpack.c.h.b16 %v340
    %v550 = vunpack.c.l.b16 %v341
    %v551 = vunpack.c.h.b16 %v341
    %v552 = vunpack.c.l.b16 %v342
    %v553 = vunpack.c.h.b16 %v342
    %v554 = vunpack.c.l.b16 %v343
    %v555 = vunpack.c.h.b16 %v343
    %v556 = vunpack.c.l.b16 %v344
    %v557 = vunpack.c.h.b16 %v344
    %v558 = vunpack.c.l.b16 %v345
    %v559 = vunpack.c.h.b16 %v345
    %v560 = vunpack.c.l.b16 %v346
    %v561 = vunpack.c.h.b16 %v346
    %v562 = vunpack.c.l.b16 %v347
    %v563 = vunpack.c.h.b16 %v347
    %v564 = vunpack.c.l.b16 %v348
    %v565 = vunpack.c.h.b16 %v348
    %v566 = vunpack.c.l.b16 %v349
    %v567 = vunpack.c.h.b16 %v349
    %v568 = vunpack.c.l.b16 %v350
    %v569 = vunpack.c.h.b16 %v350
    %v570 = vunpack.c.l.b16 %v351
    %v571 = vunpack.c.h.b16 %v351
    %v572 = vunpack.c.l.b16 %v352
    %v573 = vunpack.c.h.b16 %v352
    %v574 = vunpack.c.l.b16 %v353
    %v575 = vunpack.c.h.b16 %v353
    %v576 = vunpack.c.l.b16 %v354
    %v577 = vunpack.c.h.b16 %v354
    %v578 = vunpack.c.l.b16 %v355
    %v579 = vunpack.c.h.b16 %v355
    %v580 = vunpack.c.l.b16 %v356
    %v581 = vunpack.c.h.b16 %v356
    %v582 = vunpack.c.l.b16 %v357
    %v583 = vunpack.c.h.b16 %v357
    %v584 = vunpack.c.l.b16 %v358
    %v585 = vunpack.c.h.b16 %v358
    %v586 = vunpack.c.l.b16 %v359
    %v587 = vunpack.c.h.b16 %v359
    %v588 = vunpack.c.l.b16 %v360
    %v589 = vunpack.c.h.b16 %v360
    %v590 = vunpack.c.l.b16 %v361
    %v591 = vunpack.c.h.b16 %v361
    %v592 = vunpack.c.l.b16 %v362
    %v593 = vunpack.c.h.b16 %v362
    %v594 = vunpack.c.l.b16 %v363
    %v595 = vunpack.c.h.b16 %v363
    %v596 = vunpack.c.l.b16 %v364
    %v597 = vunpack.c.h.b16 %v364
    %v598 = vunpack.c.l.b16 %v365
    %v599 = vunpack.c.h.b16 %v365
    %v600 = vunpack.c.l.b16 %v366
    %v601 = vunpack.c.h.b16 %v366
    %v602 = vunpack.c.l.b16 %v367
    %v603 = vunpack.c.h.b16 %v367
    %v604 = vunpack.c.l.b16 %v368
    %v605 = vunpack.c.h.b16 %v368
    %v606 = vunpack.c.l.b16 %v369
    %v607 = vunpack.c.h.b16 %v369
    %v608 = vunpack.c.l.b16 %v370
    %v609 = vunpack.c.h.b16 %v370
    %v610 = vunpack.c.l.b16 %v371
    %v611 = vunpack.c.h.b16 %v371
    %v612 = vunpack.c.l.b16 %v372
    %v613 = vunpack.c.h.b16 %v372
    %v614 = vunpack.c.l.b16 %v373
    %v615 = vunpack.c.h.b16 %v373
    %v616 = vunpack.c.l.b16 %v374
    %v617 = vunpack.c.h.b16 %v374
    %v618 = vunpack.c.l.b16 %v375
    %v619 = vunpack.c.h.b16 %v375
    %v620 = vunpack.c.l.b16 %v376
    %v621 = vunpack.c.h.b16 %v376
    %v622 = vunpack.c.l.b16 %v377
    %v623 = vunpack.c.h.b16 %v377
    %v624 = vunpack.c.l.b16 %v378
    %v625 = vunpack.c.h.b16 %v378
    %v626 = vunpack.c.l.b16 %v379
    %v627 = vunpack.c.h.b16 %v379
    %v628 = vunpack.c.l.b16 %v380
    %v629 = vunpack.c.h.b16 %v380
    %v630 = vunpack.c.l.b16 %v381
    %v631 = vunpack.c.h.b16 %v381
    %v632 = vunpack.c.l.b16 %v382
    %v633 = vunpack.c.h.b16 %v382
    %v634 = vunpack.c.l.b16 %v383
    %v635 = vunpack.c.h.b16 %v383
    %v636 = vpack.c.b16 %v478, %v476
    %v637 = vpack.c.b16 %v479, %v477
    %v638 = vpack.c.b16 %v482, %v480
    %v639 = vpack.c.b16 %v483, %v481
    %v640 = vpack.c.b16 %v486, %v484
    %v641 = vpack.c.b16 %v487, %v485
    %v642 = vpack.c.b16 %v490, %v488
    %v643 = vpack.c.b16 %v491, %v489
    %v644 = vpack.c.b16 %v494, %v492
    %v645 = vpack.c.b16 %v495, %v493
    %v646 = vpack.c.b16 %v498, %v496
    %v647 = vpack.c.b16 %v499, %v497
    %v648 = vpack.c.b16 %v502, %v500
    %v649 = vpack.c.b16 %v503, %v501
    %v650 = vpack.c.b16 %v506, %v504
    %v651 = vpack.c.b16 %v507, %v505
    %v652 = vpack.c.b16 %v510, %v508
    %v653 = vpack.c.b16 %v511, %v509
    %v654 = vpack.c.b16 %v514, %v512
    %v655 = vpack.c.b16 %v515, %v513
    %v656 = vpack.c.b16 %v518, %v516
    %v657 = vpack.c.b16 %v519, %v517
    %v658 = vpack.c.b16 %v522, %v520
    %v659 = vpack.c.b16 %v523, %v521
    %v660 = vpack.c.b16 %v526, %v524
    %v661 = vpack.c.b16 %v527, %v525
    %v662 = vpack.c.b16 %v530, %v528
    %v663 = vpack.c.b16 %v531, %v529
    %v664 = vpack.c.b16 %v534, %v532
    %v665 = vpack.c.b16 %v535, %v533
    %v666 = vpack.c.b16 %v538, %v536
    %v667 = vpack.c.b16 %v539, %v537
    %v668 = vpack.c.b16 %v542, %v540
    %v669 = vpack.c.b16 %v543, %v541
    %v670 = vpack.c.b16 %v546, %v544
    %v671 = vpack.c.b16 %v547, %v545
    %v672 = vpack.c.b16 %v550, %v548
    %v673 = vpack.c.b16 %v551, %v549
    %v674 = vpack.c.b16 %v554, %v552
    %v675 = vpack.c.b16 %v555, %v553
    %v676 = vpack.c.b16 %v558, %v556
    %v677 = vpack.c.b16 %v559, %v557
    %v678 = vpack.c.b16 %v562, %v560
    %v679 = vpack.c.b16 %v563, %v561
    %v680 = vpack.c.b16 %v566, %v564
    %v681 = vpack.c.b16 %v567, %v565
    %v682 = vpack.c.b16 %v570, %v568
    %v683 = vpack.c.b16 %v571, %v569
    %v684 = vpack.c.b16 %v574, %v572
    %v685 = vpack.c.b16 %v575, %v573
    %v686 = vpack.c.b16 %v578, %v576
    %v687 = vpack.c.b16 %v579, %v577
    %v688 = vpack.c.b16 %v582, %v580
    %v689 = vpack.c.b16 %v583, %v581
    %v690 = vpack.c.b16 %v586, %v584
    %v691 = vpack.c.b16 %v587, %v585
    %v692 = vpack.c.b16 %v590, %v588
    %v693 = vpack.c.b16 %v591, %v589
    %v694 = vpack.c.b16 %v594, %v592
    %v695 = vpack.c.b16 %v595, %v593
    %v696 = vpack.c.b16 %v598, %v596
    %v697 = vpack.c.b16 %v599, %v597
    %v698 = vpack.c.b16 %v602, %v600
    %v699 = vpack.c.b16 %v603, %v601
    %v700 = vpack.c.b16 %v606, %v604
    %v701 = vpack.c.b16 %v607, %v605
    %v702 = vpack.c.b16 %v610, %v608
    %v703 = vpack.c.b16 %v611, %v609
    %v704 = vpack.c.b16 %v614, %v612
    %v705 = vpack.c.b16 %v615, %v613
    %v706 = vpack.c.b16 %v618, %v616
    %v707 = vpack.c.b16 %v619, %v617
    %v708 = vpack.c.b16 %v622, %v620
    %v709 = vpack.c.b16 %v623, %v621
    %v710 = vpack.c.b16 %v626, %v624
    %v711 = vpack.c.b16 %v627, %v625
    %v712 = vpack.c.b16 %v630, %v628
    %v713 = vpack.c.b16 %v631, %v629
    %v714 = vpack.c.b16 %v634, %v632
    %v715 = vpack.c.b16 %v635, %v633
    %796 = vmatprep.subr.bf16.mxu0 %v637
    %797 = vmatpush1.bf16.msra.mxu0 %v636
    %798 = vmatprep.subr.bf16.mxu0 %v639
    %799 = vmatpush1.bf16.msra.mxu0 %v638
    %800 = vmatprep.subr.bf16.mxu0 %v641
    %801 = vmatpush1.bf16.msra.mxu0 %v640
    %802 = vmatprep.subr.bf16.mxu0 %v643
    %803 = vmatpush1.bf16.msra.mxu0 %v642
    %804 = vmatprep.subr.bf16.mxu0 %v645
    %805 = vmatpush1.bf16.msra.mxu0 %v644
    %806 = vmatprep.subr.bf16.mxu0 %v647
    %807 = vmatpush1.bf16.msra.mxu0 %v646
    %808 = vmatprep.subr.bf16.mxu0 %v649
    %809 = vmatpush1.bf16.msra.mxu0 %v648
    %810 = vmatprep.subr.bf16.mxu0 %v651
    %811 = vmatpush1.bf16.msra.mxu0 %v650
    %812 = vmatprep.subr.bf16.mxu0 %v653
    %813 = vmatpush1.bf16.msra.mxu0 %v652
    %814 = vmatprep.subr.bf16.mxu0 %v655
    %815 = vmatpush1.bf16.msra.mxu0 %v654
    %816 = vmatprep.subr.bf16.mxu0 %v657
    %817 = vmatpush1.bf16.msra.mxu0 %v656
    %818 = vmatprep.subr.bf16.mxu0 %v659
    %819 = vmatpush1.bf16.msra.mxu0 %v658
    %820 = vmatprep.subr.bf16.mxu0 %v661
    %821 = vmatpush1.bf16.msra.mxu0 %v660
    %822 = vmatprep.subr.bf16.mxu0 %v663
    %823 = vmatpush1.bf16.msra.mxu0 %v662
    %824 = vmatprep.subr.bf16.mxu0 %v665
    %825 = vmatpush1.bf16.msra.mxu0 %v664
    %826 = vmatprep.subr.bf16.mxu0 %v667
    %827 = vmatpush1.bf16.msra.mxu0 %v666
    %828 = vmatprep.mubr.bf16.mxu0 %v285
    %829 = vmatmul.mubr.bf16.gmra.mrb[0].mxu0 %v284
    %v830 = vpop.f32.mrb[0].mxu0
    %v831 = vadd.f32 %v389, %v830
    %v832 = vpop.f32.mrb[0].mxu0
    %v833 = vadd.f32 %v393, %v832
    %v834 = vpop.f32.mrb[0].mxu0
    %v835 = vadd.f32 %v389, %v834
    %v836 = vpop.f32.mrb[0].mxu0
    %v837 = vadd.f32 %v393, %v836
    %838 = vmatprep.mubr.bf16.mxu0 %v290
    %839 = vmatmul.mubr.bf16.gmra.mrb[0].mxu0 %v289
    %v840 = vpop.f32.mrb[0].mxu0
    %v841 = vadd.f32 %v389, %v840
    %v842 = vpop.f32.mrb[0].mxu0
    %v843 = vadd.f32 %v393, %v842
    %v844 = vpop.f32.mrb[0].mxu0
    %v845 = vadd.f32 %v389, %v844
    %v846 = vpop.f32.mrb[0].mxu0
    %v847 = vadd.f32 %v393, %v846
    %848 = vmatprep.mubr.bf16.mxu0 %v295
    %849 = vmatmul.mubr.bf16.gmra.mrb[0].mxu0 %v294
    %v850 = vpop.f32.mrb[0].mxu0
    %v851 = vadd.f32 %v389, %v850
    %v852 = vpop.f32.mrb[0].mxu0
    %v853 = vadd.f32 %v393, %v852
    %v854 = vpop.f32.mrb[0].mxu0
    %v855 = vadd.f32 %v389, %v854
    %v856 = vpop.f32.mrb[0].mxu0
    %v857 = vadd.f32 %v393, %v856
    %858 = vmatprep.mubr.bf16.mxu0 %v300
    %859 = vmatmul.mubr.bf16.gmra.mrb[0].mxu0 %v299
    %v860 = vpop.f32.mrb[0].mxu0
    %v861 = vadd.f32 %v389, %v860
    %v862 = vpop.f32.mrb[0].mxu0
    %v863 = vadd.f32 %v393, %v862
    %v864 = vpop.f32.mrb[0].mxu0
    %v865 = vpop.f32.mrb[0].mxu0
    %866 = vdwg.mxu0
    %867 = vmatprep.subr.bf16.mxu0 %v669
    %868 = vmatpush1.bf16.msra.mxu0 %v668
    %869 = vmatprep.subr.bf16.mxu0 %v671
    %870 = vmatpush1.bf16.msra.mxu0 %v670
    %871 = vmatprep.subr.bf16.mxu0 %v673
    %872 = vmatpush1.bf16.msra.mxu0 %v672
    %873 = vmatprep.subr.bf16.mxu0 %v675
    %874 = vmatpush1.bf16.msra.mxu0 %v674
    %875 = vmatprep.subr.bf16.mxu0 %v677
    %876 = vmatpush1.bf16.msra.mxu0 %v676
    %877 = vmatprep.subr.bf16.mxu0 %v679
    %878 = vmatpush1.bf16.msra.mxu0 %v678
    %879 = vmatprep.subr.bf16.mxu0 %v681
    %880 = vmatpush1.bf16.msra.mxu0 %v680
    %881 = vmatprep.subr.bf16.mxu0 %v683
    %882 = vmatpush1.bf16.msra.mxu0 %v682
    %883 = vmatprep.subr.bf16.mxu0 %v685
    %884 = vmatpush1.bf16.msra.mxu0 %v684
    %885 = vmatprep.subr.bf16.mxu0 %v687
    %886 = vmatpush1.bf16.msra.mxu0 %v686
    %887 = vmatprep.subr.bf16.mxu0 %v689
    %888 = vmatpush1.bf16.msra.mxu0 %v688
    %889 = vmatprep.subr.bf16.mxu0 %v691
    %890 = vmatpush1.bf16.msra.mxu0 %v690
    %891 = vmatprep.subr.bf16.mxu0 %v693
    %892 = vmatpush1.bf16.msra.mxu0 %v692
    %893 = vmatprep.subr.bf16.mxu0 %v695
    %894 = vmatpush1.bf16.msra.mxu0 %v694
    %895 = vmatprep.subr.bf16.mxu0 %v697
    %896 = vmatpush1.bf16.msra.mxu0 %v696
    %897 = vmatprep.subr.bf16.mxu0 %v699
    %898 = vmatpush1.bf16.msra.mxu0 %v698
    %899 = vmatprep.mubr.bf16.mxu0 %v287
    %900 = vmatmul.mubr.bf16.gmra.mrb[0].mxu0 %v286
    %v901 = vpop.f32.mrb[0].mxu0
    %v902 = vadd.f32 %v831, %v901
    %v903 = vpop.f32.mrb[0].mxu0
    %v904 = vadd.f32 %v833, %v903
    %v905 = vpop.f32.mrb[0].mxu0
    %v906 = vadd.f32 %v835, %v905
    %v907 = vpop.f32.mrb[0].mxu0
    %v908 = vadd.f32 %v837, %v907
    %909 = vmatprep.mubr.bf16.mxu0 %v292
    %910 = vmatmul.mubr.bf16.gmra.mrb[0].mxu0 %v291
    %v911 = vpop.f32.mrb[0].mxu0
    %v912 = vadd.f32 %v841, %v911
    %v913 = vpop.f32.mrb[0].mxu0
    %v914 = vadd.f32 %v843, %v913
    %v915 = vpop.f32.mrb[0].mxu0
    %v916 = vadd.f32 %v845, %v915
    %v917 = vpop.f32.mrb[0].mxu0
    %v918 = vadd.f32 %v847, %v917
    %919 = vmatprep.mubr.bf16.mxu0 %v297
    %920 = vmatmul.mubr.bf16.gmra.mrb[0].mxu0 %v296
    %v921 = vpop.f32.mrb[0].mxu0
    %v922 = vadd.f32 %v851, %v921
    %v923 = vpop.f32.mrb[0].mxu0
    %v924 = vadd.f32 %v853, %v923
    %v925 = vpop.f32.mrb[0].mxu0
    %v926 = vadd.f32 %v855, %v925
    %v927 = vpop.f32.mrb[0].mxu0
    %v928 = vadd.f32 %v857, %v927
    %929 = vmatprep.mubr.bf16.mxu0 %v302
    %930 = vmatmul.mubr.bf16.gmra.mrb[0].mxu0 %v301
    %v931 = vpop.f32.mrb[0].mxu0
    %v932 = vadd.f32 %v861, %v931
    %v933 = vpop.f32.mrb[0].mxu0
    %v934 = vadd.f32 %v863, %v933
    %v935 = vpop.f32.mrb[0].mxu0
    %v936 = vpop.f32.mrb[0].mxu0
    %937 = vdwg.mxu0
    %938 = vmatprep.subr.bf16.mxu0 %v701
    %939 = vmatpush1.bf16.msra.mxu0 %v700
    %940 = vmatprep.subr.bf16.mxu0 %v703
    %941 = vmatpush1.bf16.msra.mxu0 %v702
    %942 = vmatprep.subr.bf16.mxu0 %v705
    %943 = vmatpush1.bf16.msra.mxu0 %v704
    %944 = vmatprep.subr.bf16.mxu0 %v707
    %945 = vmatpush1.bf16.msra.mxu0 %v706
    %946 = vmatprep.subr.bf16.mxu0 %v709
    %947 = vmatpush1.bf16.msra.mxu0 %v708
    %948 = vmatprep.subr.bf16.mxu0 %v711
    %949 = vmatpush1.bf16.msra.mxu0 %v710
    %950 = vmatprep.subr.bf16.mxu0 %v713
    %951 = vmatpush1.bf16.msra.mxu0 %v712
    %952 = vmatprep.subr.bf16.mxu0 %v715
    %953 = vmatpush1.bf16.msra.mxu0 %v714
    %954 = vmatprep.subr.bf16.mxu0 0
    %955 = vmatpush1.bf16.msra.mxu0 0
    %956 = vmatprep.subr.bf16.mxu0 0
    %957 = vmatpush1.bf16.msra.mxu0 0
    %958 = vmatprep.subr.bf16.mxu0 0
    %959 = vmatpush1.bf16.msra.mxu0 0
    %960 = vmatprep.subr.bf16.mxu0 0
    %961 = vmatpush1.bf16.msra.mxu0 0
    %962 = vmatprep.subr.bf16.mxu0 0
    %963 = vmatpush1.bf16.msra.mxu0 0
    %964 = vmatprep.subr.bf16.mxu0 0
    %965 = vmatpush1.bf16.msra.mxu0 0
    %966 = vmatprep.subr.bf16.mxu0 0
    %967 = vmatpush1.bf16.msra.mxu0 0
    %968 = vmatprep.subr.bf16.mxu0 0
    %969 = vmatpush1.bf16.msra.mxu0 0
    %970 = vmatprep.mubr.bf16.mxu0 0
    %971 = vmatmul.mubr.bf16.gmra.mrb[0].mxu0 %v288
    %v972 = vpop.f32.mrb[0].mxu0
    %v973 = vadd.f32 %v902, %v972
    %v974 = vpop.f32.mrb[0].mxu0
    %v975 = vadd.f32 %v904, %v974
    %v976 = vpop.f32.mrb[0].mxu0
    %v977 = vadd.f32 %v906, %v976
    %v978 = vpop.f32.mrb[0].mxu0
    %v979 = vadd.f32 %v908, %v978
    %980 = vmatprep.mubr.bf16.mxu0 0
    %981 = vmatmul.mubr.bf16.gmra.mrb[0].mxu0 %v293
    %v982 = vpop.f32.mrb[0].mxu0
    %v983 = vadd.f32 %v912, %v982
    %v984 = vpop.f32.mrb[0].mxu0
    %v985 = vadd.f32 %v914, %v984
    %v986 = vpop.f32.mrb[0].mxu0
    %v987 = vadd.f32 %v916, %v986
    %v988 = vpop.f32.mrb[0].mxu0
    %v989 = vadd.f32 %v918, %v988
    %990 = vmatprep.mubr.bf16.mxu0 0
    %991 = vmatmul.mubr.bf16.gmra.mrb[0].mxu0 %v298
    %v992 = vpop.f32.mrb[0].mxu0
    %v993 = vadd.f32 %v922, %v992
    %v994 = vpop.f32.mrb[0].mxu0
    %v995 = vadd.f32 %v924, %v994
    %v996 = vpop.f32.mrb[0].mxu0
    %v997 = vadd.f32 %v926, %v996
    %v998 = vpop.f32.mrb[0].mxu0
    %v999 = vadd.f32 %v928, %v998
    %1000 = vmatprep.mubr.bf16.mxu0 0
    %1001 = vmatmul.mubr.bf16.gmra.mrb[0].mxu0 %v303
    %v1002 = vpop.f32.mrb[0].mxu0
    %v1003 = vadd.f32 %v932, %v1002
    %v1004 = vpop.f32.mrb[0].mxu0
    %v1005 = vadd.f32 %v934, %v1004
    %v1006 = vpop.f32.mrb[0].mxu0
    %v1007 = vpop.f32.mrb[0].mxu0
    %1008 = vdwg.mxu0
    %v1009 = vmax.f32 %v973, 0.0
    %v1010 = vmax.f32 %v975, 0.0
    %v1011 = vmax.f32 %v977, 0.0
    %v1012 = vmax.f32 %v979, 0.0
    %v1013 = vmax.f32 %v983, 0.0
    %v1014 = vmax.f32 %v985, 0.0
    %v1015 = vmax.f32 %v987, 0.0
    %v1016 = vmax.f32 %v989, 0.0
    %v1017 = vmax.f32 %v993, 0.0
    %v1018 = vmax.f32 %v995, 0.0
    %v1019 = vmax.f32 %v997, 0.0
    %v1020 = vmax.f32 %v999, 0.0
    %v1021 = vmax.f32 %v1003, 0.0
    %v1022 = vmax.f32 %v1005, 0.0
    %v1023 = vld [vmem:[%s4] sm:$0xff]
    %v1024 = vld [vmem:[%s4 + $0x8] sm:$0xff]
    %v1025 = vld [vmem:[%s4 + $0x10] sm:$0xff]
    %v1026 = vld [vmem:[%s4 + $0x18] sm:$0xf]
    %vm1027 = vcmask 457728
    %v1029 = vsel %vm1027, %v1023, 0
    %v1032 = vsel %vm1027, %v1024, 0
    %v1035 = vsel %vm1027, %v1025, 0
    %v1038 = vsel %vm1027, %v1026, 0
    %1040 = vmatprep.subr.mxu0 %v1010
    %1041 = vmatpush1.msra.mxu0 %v1009
    %1042 = vmatprep.subr.mxu0 %v1012
    %1043 = vmatpush1.msra.mxu0 %v1011
    %1044 = vmatprep.subr.mxu0 %v1014
    %1045 = vmatpush1.msra.mxu0 %v1013
    %1046 = vmatprep.subr.mxu0 %v1016
    %1047 = vmatpush1.msra.mxu0 %v1015
    %1048 = vmatprep.subr.mxu0 %v1018
    %1049 = vmatpush1.msra.mxu0 %v1017
    %1050 = vmatprep.subr.mxu0 %v1020
    %1051 = vmatpush1.msra.mxu0 %v1019
    %1052 = vmatprep.subr.mxu0 %v1022
    %1053 = vmatpush1.msra.mxu0 %v1021
    %1054 = vmatprep.subr.mxu0 0.0
    %1055 = vmatpush1.msra.mxu0 0.0
    %1056 = vmatprep.subr.mxu0 0.0
    %1057 = vmatpush1.msra.mxu0 0.0
    %1058 = vmatprep.subr.mxu0 0.0
    %1059 = vmatpush1.msra.mxu0 0.0
    %1060 = vmatprep.subr.mxu0 0.0
    %1061 = vmatpush1.msra.mxu0 0.0
    %1062 = vmatprep.subr.mxu0 0.0
    %1063 = vmatpush1.msra.mxu0 0.0
    %1064 = vmatprep.subr.mxu0 0.0
    %1065 = vmatpush1.msra.mxu0 0.0
    %1066 = vmatprep.subr.mxu0 0.0
    %1067 = vmatpush1.msra.mxu0 0.0
    %1068 = vmatprep.subr.mxu0 0.0
    %1069 = vmatpush1.msra.mxu0 0.0
    %1070 = vmatprep.subr.mxu0 0.0
    %1071 = vmatpush1.msra.mxu0 0.0
    %1072 = vmatprep.subr.mxu0 0.0
    %1073 = vmatpush1.msra.mxu0 0.0
    %1074 = vmatprep.subr.mxu0 0.0
    %1075 = vmatpush1.msra.mxu0 0.0
    %1076 = vmatprep.subr.mxu0 0.0
    %1077 = vmatpush1.msra.mxu0 0.0
    %1078 = vmatprep.subr.mxu0 0.0
    %1079 = vmatpush1.msra.mxu0 0.0
    %1080 = vmatprep.subr.mxu0 0.0
    %1081 = vmatpush1.msra.mxu0 0.0
    %1082 = vmatprep.subr.mxu0 0.0
    %1083 = vmatpush1.msra.mxu0 0.0
    %1084 = vmatprep.subr.mxu0 0.0
    %1085 = vmatpush1.msra.mxu0 0.0
    %1086 = vmatprep.subr.mxu0 0.0
    %1087 = vmatpush1.msra.mxu0 0.0
    %1088 = vmatprep.subr.mxu0 0.0
    %1089 = vmatpush1.msra.mxu0 0.0
    %1090 = vmatprep.subr.mxu0 0.0
    %1091 = vmatpush1.msra.mxu0 0.0
    %1092 = vmatprep.subr.mxu0 0.0
    %1093 = vmatpush1.msra.mxu0 0.0
    %1094 = vmatprep.subr.mxu0 0.0
    %1095 = vmatpush1.msra.mxu0 0.0
    %1096 = vmatprep.subr.mxu0 0.0
    %1097 = vmatpush1.msra.mxu0 0.0
    %1098 = vmatprep.subr.mxu0 0.0
    %1099 = vmatpush1.msra.mxu0 0.0
    %1100 = vmatprep.subr.mxu0 0.0
    %1101 = vmatpush1.msra.mxu0 0.0
    %1102 = vmatprep.subr.mxu0 0.0
    %1103 = vmatpush1.msra.mxu0 0.0
    %1104 = vmatprep.mubr.f32.mxu0 0.0
    %1105 = vmatmul.mubr.f32.gmra.mrb[0].mxu0 %v1029
    %v1106 = vpop.f32.mrb[0].mxu0
    %v1107 = vadd.f32 0.0, %v1106
    %v1108 = vpop.f32.mrb[0].mxu0
    %v1109 = vadd.f32 0.0, %v1108
    %1110 = vmatprep.mubr.f32.mxu0 0.0
    %1111 = vmatmul.mubr.f32.gmra.mrb[0].mxu0 %v1032
    %v1112 = vpop.f32.mrb[0].mxu0
    %v1113 = vadd.f32 0.0, %v1112
    %v1114 = vpop.f32.mrb[0].mxu0
    %v1115 = vadd.f32 0.0, %v1114
    %1116 = vmatprep.mubr.f32.mxu0 0.0
    %1117 = vmatmul.mubr.f32.gmra.mrb[0].mxu0 %v1035
    %v1118 = vpop.f32.mrb[0].mxu0
    %v1119 = vadd.f32 0.0, %v1118
    %v1120 = vpop.f32.mrb[0].mxu0
    %v1121 = vadd.f32 0.0, %v1120
    %1122 = vmatprep.mubr.f32.mxu0 0.0
    %1123 = vmatmul.mubr.f32.gmra.mrb[0].mxu0 %v1038
    %v1124 = vpop.f32.mrb[0].mxu0
    %v1125 = vadd.f32 0.0, %v1124
    %v1126 = vpop.f32.mrb[0].mxu0
    %v1127 = vadd.f32 0.0, %v1126
    %1128 = vdwg.mxu0
    %1129 = vst [vmem:[#allocation3] sm:$0xff] %v1107
    %vm1130 = vcmask 326656
    %1131 = vst.msk [vmem:[#allocation3 + $0x8] sm:$0xff] %vm1130, %v1109
    %1132 = vst [vmem:[#allocation3 + $0x50] sm:$0x3] %v1113
    %vm1133 = vcmask 320512
    %1134 = vst.msk [vmem:[#allocation3 + $0x58] sm:$0x3] %vm1133, %v1115
    %vm1139 = vcmask 1046528
    %v1140 = vrot.slane %v1107, 1
    %v1141 = vrot.slane %v1113, 1
    %v1142 = vsel %vm1139, %v1140, %v1141
    %v1143 = vrot.slane %v1109, 1
    %v1144 = vrot.slane %v1115, 1
    %v1145 = vsel %vm1139, %v1143, %v1144
    %1150 = vst [vmem:[#allocation3 + $0x10] sm:$0xff] %v1142
    %1151 = vst.msk [vmem:[#allocation3 + $0x18] sm:$0xff] %vm1130, %v1145
    %1152 = vst [vmem:[#allocation3 + $0x60] sm:$0x3] %v1141
    %1153 = vst.msk [vmem:[#allocation3 + $0x68] sm:$0x3] %vm1133, %v1144
    %vm1154 = vcmask 1045504
    %v1155 = vrot.slane %v1107, 2
    %v1156 = vrot.slane %v1113, 2
    %v1157 = vsel %vm1154, %v1155, %v1156
    %v1158 = vrot.slane %v1109, 2
    %v1159 = vrot.slane %v1115, 2
    %v1160 = vsel %vm1154, %v1158, %v1159
    %1165 = vst [vmem:[#allocation3 + $0x20] sm:$0xff] %v1157
    %1166 = vst.msk [vmem:[#allocation3 + $0x28] sm:$0xff] %vm1130, %v1160
    %1167 = vst [vmem:[#allocation3 + $0x70] sm:$0x3] %v1156
    %1168 = vst.msk [vmem:[#allocation3 + $0x78] sm:$0x3] %vm1133, %v1159
    %vm1169 = vcmask 1044480
    %v1170 = vrot.slane %v1107, 3
    %v1171 = vrot.slane %v1113, 3
    %v1172 = vsel %vm1169, %v1170, %v1171
    %v1173 = vrot.slane %v1109, 3
    %v1174 = vrot.slane %v1115, 3
    %v1175 = vsel %vm1169, %v1173, %v1174
    %1180 = vst [vmem:[#allocation3 + $0x30] sm:$0xff] %v1172
    %1181 = vst.msk [vmem:[#allocation3 + $0x38] sm:$0xff] %vm1130, %v1175
    %1182 = vst [vmem:[#allocation3 + $0x80] sm:$0x3] %v1171
    %1183 = vst.msk [vmem:[#allocation3 + $0x88] sm:$0x3] %vm1133, %v1174
    %v1184 = vrot.slane %v1107, 4
    %v1185 = vrot.slane %v1113, 4
    %v1186 = vsel %vm140, %v1184, %v1185
    %v1187 = vrot.slane %v1109, 4
    %v1188 = vrot.slane %v1115, 4
    %v1189 = vsel %vm140, %v1187, %v1188
    %1194 = vst [vmem:[#allocation3 + $0x40] sm:$0xff] %v1186
    %1195 = vst.msk [vmem:[#allocation3 + $0x48] sm:$0xff] %vm1130, %v1189
    %1196 = vst [vmem:[#allocation3 + $0x90] sm:$0x3] %v1185
    %1197 = vst.msk [vmem:[#allocation3 + $0x98] sm:$0x3] %vm1133, %v1188
    %v1200 = vrot.slane %v1119, 4
    %v1201 = vsel %vm140, %v1185, %v1200
    %v1202 = vrot.slane %v1121, 4
    %v1203 = vsel %vm140, %v1188, %v1202
    %1208 = vst [vmem:[#allocation3 + $0x50] sm:$0xfc] %v1201
    %vm1209 = vcmask 326658
    %1210 = vst.msk [vmem:[#allocation3 + $0x58] sm:$0xfc] %vm1209, %v1203
    %1211 = vst [vmem:[#allocation3 + $0xa0] sm:$0xf] %v1200
    %vm1212 = vcmask 322560
    %1213 = vst.msk [vmem:[#allocation3 + $0xa8] sm:$0xf] %vm1212, %v1202
    %vm1216 = vcmask 1042432
    %v1217 = vrot.slane %v1113, 5
    %v1218 = vrot.slane %v1119, 5
    %v1219 = vsel %vm1216, %v1217, %v1218
    %v1220 = vrot.slane %v1115, 5
    %v1221 = vrot.slane %v1121, 5
    %v1222 = vsel %vm1216, %v1220, %v1221
    %v1223 = vrot.slane %v1125, 5
    %v1224 = vsel %vm1216, %v1218, %v1223
    %v1225 = vrot.slane %v1127, 5
    %v1226 = vsel %vm1216, %v1221, %v1225
    %1231 = vst [vmem:[#allocation3 + $0x60] sm:$0xfc] %v1219
    %1232 = vst.msk [vmem:[#allocation3 + $0x68] sm:$0xfc] %vm1209, %v1222
    %1233 = vst [vmem:[#allocation3 + $0xb0] sm:$0xf] %v1224
    %1234 = vst.msk [vmem:[#allocation3 + $0xb8] sm:$0xf] %vm1212, %v1226
    %vm1235 = vcmask 1041408
    %v1236 = vrot.slane %v1119, 6
    %v1237 = vrot.slane %v1121, 6
    %v1238 = vrot.slane %v1125, 6
    %v1239 = vsel %vm1235, %v1236, %v1238
    %v1240 = vrot.slane %v1127, 6
    %v1241 = vsel %vm1235, %v1237, %v1240
    %1246 = vst [vmem:[#allocation3 + $0x70] sm:$0xfc] %v1236
    %1247 = vst.msk [vmem:[#allocation3 + $0x78] sm:$0xfc] %vm1209, %v1237
    %1248 = vst [vmem:[#allocation3 + $0xc0] sm:$0xf] %v1239
    %1249 = vst.msk [vmem:[#allocation3 + $0xc8] sm:$0xf] %vm1212, %v1241
    %vm1250 = vcmask 1040384
    %v1251 = vrot.slane %v1119, 7
    %v1252 = vrot.slane %v1121, 7
    %v1253 = vrot.slane %v1125, 7
    %v1254 = vsel %vm1250, %v1251, %v1253
    %v1255 = vrot.slane %v1127, 7
    %v1256 = vsel %vm1250, %v1252, %v1255
    %1261 = vst [vmem:[#allocation3 + $0x80] sm:$0xfc] %v1251
    %1262 = vst.msk [vmem:[#allocation3 + $0x88] sm:$0xfc] %vm1209, %v1252
    %1263 = vst [vmem:[#allocation3 + $0xd0] sm:$0xf] %v1254
    %1264 = vst.msk [vmem:[#allocation3 + $0xd8] sm:$0xf] %vm1212, %v1256
    %1265 = vst [vmem:[#allocation3 + $0x90] sm:$0xfc] %v1119
    %1266 = vst.msk [vmem:[#allocation3 + $0x98] sm:$0xfc] %vm1209, %v1121
    %1267 = vst [vmem:[#allocation3 + $0xe0] sm:$0xf] %v1125
    %1268 = vst.msk [vmem:[#allocation3 + $0xe8] sm:$0xf] %vm1212, %v1127
    %v1269 = vld [vmem:[#allocation3] sm:$0xff]
    %v1270 = vld [vmem:[#allocation3 + $0x8] sm:$0xff]
    %v1271 = vld [vmem:[#allocation3 + $0x10] sm:$0xff]
    %v1272 = vld [vmem:[#allocation3 + $0x18] sm:$0xff]
    %v1273 = vld [vmem:[#allocation3 + $0x20] sm:$0xff]
    %v1274 = vld [vmem:[#allocation3 + $0x28] sm:$0xff]
    %v1275 = vld [vmem:[#allocation3 + $0x30] sm:$0xff]
    %v1276 = vld [vmem:[#allocation3 + $0x38] sm:$0xff]
    %v1277 = vld [vmem:[#allocation3 + $0x40] sm:$0xff]
    %v1278 = vld [vmem:[#allocation3 + $0x48] sm:$0xff]
    %v1279 = vld [vmem:[#allocation3 + $0x50] sm:$0xff]
    %v1280 = vld [vmem:[#allocation3 + $0x58] sm:$0xff]
    %v1281 = vld [vmem:[#allocation3 + $0x60] sm:$0xff]
    %v1282 = vld [vmem:[#allocation3 + $0x68] sm:$0xff]
    %v1283 = vld [vmem:[#allocation3 + $0x70] sm:$0xff]
    %v1284 = vld [vmem:[#allocation3 + $0x78] sm:$0xff]
    %v1285 = vld [vmem:[#allocation3 + $0x80] sm:$0xff]
    %v1286 = vld [vmem:[#allocation3 + $0x88] sm:$0xff]
    %v1287 = vld [vmem:[#allocation3 + $0x90] sm:$0xff]
    %v1288 = vld [vmem:[#allocation3 + $0x98] sm:$0xff]
    %v1289 = vld [vmem:[#allocation3 + $0xa0] sm:$0xf]
    %v1290 = vld [vmem:[#allocation3 + $0xa8] sm:$0xf]
    %v1291 = vld [vmem:[#allocation3 + $0xb0] sm:$0xf]
    %v1292 = vld [vmem:[#allocation3 + $0xb8] sm:$0xf]
    %v1293 = vld [vmem:[#allocation3 + $0xc0] sm:$0xf]
    %v1294 = vld [vmem:[#allocation3 + $0xc8] sm:$0xf]
    %v1295 = vld [vmem:[#allocation3 + $0xd0] sm:$0xf]
    %v1296 = vld [vmem:[#allocation3 + $0xd8] sm:$0xf]
    %v1297 = vld [vmem:[#allocation3 + $0xe0] sm:$0xf]
    %v1298 = vld [vmem:[#allocation3 + $0xe8] sm:$0xf]
    %v1299 = vpack.c.bf16 %v1279, %v1269
    %v1300 = vpack.c.bf16 %v1280, %v1270
    %v1301 = vpack.c.bf16 %v1281, %v1271
    %v1302 = vpack.c.bf16 %v1282, %v1272
    %v1303 = vpack.c.bf16 %v1283, %v1273
    %v1304 = vpack.c.bf16 %v1284, %v1274
    %v1305 = vpack.c.bf16 %v1285, %v1275
    %v1306 = vpack.c.bf16 %v1286, %v1276
    %v1307 = vpack.c.bf16 %v1287, %v1277
    %v1308 = vpack.c.bf16 %v1288, %v1278
    %v1309 = vpack.c.bf16 %v1289, %v1289
    %v1310 = vpack.c.bf16 %v1290, %v1290
    %v1311 = vpack.c.bf16 %v1291, %v1291
    %v1312 = vpack.c.bf16 %v1292, %v1292
    %v1313 = vpack.c.bf16 %v1293, %v1293
    %v1314 = vpack.c.bf16 %v1294, %v1294
    %v1315 = vpack.c.bf16 %v1295, %v1295
    %v1316 = vpack.c.bf16 %v1296, %v1296
    %v1317 = vpack.c.bf16 %v1297, %v1297
    %v1318 = vpack.c.bf16 %v1298, %v1298
    %v1319 = vld [vmem:[%s1 + $0x280] sm:$0xff]
    %v1320 = vld [vmem:[%s1 + $0x288] sm:$0xff]
    %v1321 = vld [vmem:[%s1 + $0x290] sm:$0xff]
    %v1322 = vld [vmem:[%s1 + $0x298] sm:$0xff]
    %v1323 = vld [vmem:[%s1 + $0x2a0] sm:$0xff]
    %v1324 = vld [vmem:[%s1 + $0x2a8] sm:$0xff]
    %v1325 = vld [vmem:[%s1 + $0x2b0] sm:$0xff]
    %v1326 = vld [vmem:[%s1 + $0x2b8] sm:$0xff]
    %v1327 = vld [vmem:[%s1 + $0x2c0] sm:$0xff]
    %v1328 = vld [vmem:[%s1 + $0x2c8] sm:$0xff]
    %v1329 = vld [vmem:[%s1 + $0x2d0] sm:$0xff]
    %v1330 = vld [vmem:[%s1 + $0x2d8] sm:$0xff]
    %v1331 = vld [vmem:[%s1 + $0x2e0] sm:$0xff]
    %v1332 = vld [vmem:[%s1 + $0x2e8] sm:$0xff]
    %v1333 = vld [vmem:[%s1 + $0x2f0] sm:$0xff]
    %v1334 = vld [vmem:[%s1 + $0x2f8] sm:$0xff]
    %v1335 = vld [vmem:[%s1 + $0x300] sm:$0xff]
    %v1336 = vld [vmem:[%s1 + $0x308] sm:$0xff]
    %v1337 = vld [vmem:[%s1 + $0x310] sm:$0xff]
    %v1338 = vld [vmem:[%s1 + $0x318] sm:$0xff]
    %v1339 = vld [vmem:[%s1 + $0x320] sm:$0xff]
    %v1340 = vld [vmem:[%s1 + $0x328] sm:$0xff]
    %v1341 = vld [vmem:[%s1 + $0x330] sm:$0xff]
    %v1342 = vld [vmem:[%s1 + $0x338] sm:$0xff]
    %v1343 = vld [vmem:[%s1 + $0x340] sm:$0xff]
    %v1344 = vld [vmem:[%s1 + $0x348] sm:$0xff]
    %v1345 = vld [vmem:[%s1 + $0x350] sm:$0xff]
    %v1346 = vld [vmem:[%s1 + $0x358] sm:$0xff]
    %v1347 = vld [vmem:[%s1 + $0x360] sm:$0xff]
    %v1348 = vld [vmem:[%s1 + $0x368] sm:$0xff]
    %v1349 = vld [vmem:[%s1 + $0x370] sm:$0xff]
    %v1350 = vld [vmem:[%s1 + $0x378] sm:$0xff]
    %v1351 = vld [vmem:[%s1 + $0x380] sm:$0xff]
    %v1352 = vld [vmem:[%s1 + $0x388] sm:$0xff]
    %v1353 = vld [vmem:[%s1 + $0x390] sm:$0xff]
    %v1354 = vld [vmem:[%s1 + $0x398] sm:$0xff]
    %v1355 = vld [vmem:[%s1 + $0x3a0] sm:$0xff]
    %v1356 = vld [vmem:[%s1 + $0x3a8] sm:$0xff]
    %v1357 = vld [vmem:[%s1 + $0x3b0] sm:$0xff]
    %v1358 = vld [vmem:[%s1 + $0x3b8] sm:$0xff]
    %v1359 = vld [vmem:[%s1 + $0x3c0] sm:$0xff]
    %v1360 = vld [vmem:[%s1 + $0x3c8] sm:$0xff]
    %v1361 = vld [vmem:[%s1 + $0x3d0] sm:$0xff]
    %v1362 = vld [vmem:[%s1 + $0x3d8] sm:$0xff]
    %v1363 = vld [vmem:[%s1 + $0x3e0] sm:$0xff]
    %v1364 = vld [vmem:[%s1 + $0x3e8] sm:$0xff]
    %v1365 = vld [vmem:[%s1 + $0x3f0] sm:$0xff]
    %v1366 = vld [vmem:[%s1 + $0x3f8] sm:$0xff]
    %v1367 = vld [vmem:[%s1 + $0x400] sm:$0xff]
    %v1368 = vld [vmem:[%s1 + $0x408] sm:$0xff]
    %v1369 = vld [vmem:[%s1 + $0x410] sm:$0xff]
    %v1370 = vld [vmem:[%s1 + $0x418] sm:$0xff]
    %v1371 = vld [vmem:[%s1 + $0x420] sm:$0xff]
    %v1372 = vld [vmem:[%s1 + $0x428] sm:$0xff]
    %v1373 = vld [vmem:[%s1 + $0x430] sm:$0xff]
    %v1374 = vld [vmem:[%s1 + $0x438] sm:$0xff]
    %v1375 = vld [vmem:[%s1 + $0x440] sm:$0xff]
    %v1376 = vld [vmem:[%s1 + $0x448] sm:$0xff]
    %v1377 = vld [vmem:[%s1 + $0x450] sm:$0xff]
    %v1378 = vld [vmem:[%s1 + $0x458] sm:$0xff]
    %v1379 = vld [vmem:[%s1 + $0x460] sm:$0xff]
    %v1380 = vld [vmem:[%s1 + $0x468] sm:$0xff]
    %v1381 = vld [vmem:[%s1 + $0x470] sm:$0xff]
    %v1382 = vld [vmem:[%s1 + $0x478] sm:$0xff]
    %v1383 = vld [vmem:[%s1 + $0x480] sm:$0xff]
    %v1384 = vld [vmem:[%s1 + $0x488] sm:$0xff]
    %v1385 = vld [vmem:[%s1 + $0x490] sm:$0xff]
    %v1386 = vld [vmem:[%s1 + $0x498] sm:$0xff]
    %v1387 = vld [vmem:[%s1 + $0x4a0] sm:$0xff]
    %v1388 = vld [vmem:[%s1 + $0x4a8] sm:$0xff]
    %v1389 = vld [vmem:[%s1 + $0x4b0] sm:$0xff]
    %v1390 = vld [vmem:[%s1 + $0x4b8] sm:$0xff]
    %v1391 = vld [vmem:[%s1 + $0x4c0] sm:$0xff]
    %v1392 = vld [vmem:[%s1 + $0x4c8] sm:$0xff]
    %v1393 = vld [vmem:[%s1 + $0x4d0] sm:$0xff]
    %v1394 = vld [vmem:[%s1 + $0x4d8] sm:$0xff]
    %v1395 = vld [vmem:[%s1 + $0x4e0] sm:$0xff]
    %v1396 = vld [vmem:[%s1 + $0x4e8] sm:$0xff]
    %v1397 = vld [vmem:[%s1 + $0x4f0] sm:$0xff]
    %v1398 = vld [vmem:[%s1 + $0x4f8] sm:$0xff]
    %v1399 = vld [vmem:[%s1 + $0x500] sm:$0xff]
    %v1400 = vld [vmem:[%s1 + $0x508] sm:$0xff]
    %v1401 = vld [vmem:[%s1 + $0x510] sm:$0xff]
    %v1402 = vld [vmem:[%s1 + $0x518] sm:$0xff]
    %v1403 = vld [vmem:[%s1 + $0x520] sm:$0xff]
    %v1404 = vld [vmem:[%s1 + $0x528] sm:$0xff]
    %v1405 = vld [vmem:[%s1 + $0x530] sm:$0xff]
    %v1406 = vld [vmem:[%s1 + $0x538] sm:$0xff]
    %v1407 = vld [vmem:[%s1 + $0x540] sm:$0xff]
    %v1408 = vld [vmem:[%s1 + $0x548] sm:$0xff]
    %v1409 = vld [vmem:[%s1 + $0x550] sm:$0xff]
    %v1410 = vld [vmem:[%s1 + $0x558] sm:$0xff]
    %v1411 = vld [vmem:[%s1 + $0x560] sm:$0xff]
    %v1412 = vld [vmem:[%s1 + $0x568] sm:$0xff]
    %v1413 = vld [vmem:[%s1 + $0x570] sm:$0xff]
    %v1414 = vld [vmem:[%s1 + $0x578] sm:$0xff]
    %v1415 = vld [vmem:[%s1 + $0x580] sm:$0xff]
    %v1416 = vld [vmem:[%s1 + $0x588] sm:$0xff]
    %v1417 = vld [vmem:[%s1 + $0x590] sm:$0xff]
    %v1418 = vld [vmem:[%s1 + $0x598] sm:$0xff]
    %v1419 = vld [vmem:[%s1 + $0x5a0] sm:$0xff]
    %v1420 = vld [vmem:[%s1 + $0x5a8] sm:$0xff]
    %v1421 = vld [vmem:[%s1 + $0x5b0] sm:$0xff]
    %v1422 = vld [vmem:[%s1 + $0x5b8] sm:$0xff]
    %v1423 = vld [vmem:[%s1 + $0x5c0] sm:$0xff]
    %v1424 = vld [vmem:[%s1 + $0x5c8] sm:$0xff]
    %v1425 = vld [vmem:[%s1 + $0x5d0] sm:$0xff]
    %v1426 = vld [vmem:[%s1 + $0x5d8] sm:$0xff]
    %v1427 = vld [vmem:[%s1 + $0x5e0] sm:$0xff]
    %v1428 = vld [vmem:[%s1 + $0x5e8] sm:$0xff]
    %v1429 = vld [vmem:[%s1 + $0x5f0] sm:$0xff]
    %v1430 = vld [vmem:[%s1 + $0x5f8] sm:$0xff]
    %v1431 = vld [vmem:[%s1 + $0x600] sm:$0xff]
    %v1432 = vld [vmem:[%s1 + $0x608] sm:$0xff]
    %v1433 = vld [vmem:[%s1 + $0x610] sm:$0xff]
    %v1434 = vld [vmem:[%s1 + $0x618] sm:$0xff]
    %v1435 = vld [vmem:[%s1 + $0x620] sm:$0xff]
    %v1436 = vld [vmem:[%s1 + $0x628] sm:$0xff]
    %v1437 = vld [vmem:[%s1 + $0x630] sm:$0xff]
    %v1438 = vld [vmem:[%s1 + $0x638] sm:$0xff]
    %v1439 = vld [vmem:[%s1 + $0x640] sm:$0xff]
    %v1440 = vld [vmem:[%s1 + $0x648] sm:$0xff]
    %v1441 = vld [vmem:[%s1 + $0x650] sm:$0xff]
    %v1442 = vld [vmem:[%s1 + $0x658] sm:$0xff]
    %v1443 = vld [vmem:[%s1 + $0x660] sm:$0xff]
    %v1444 = vld [vmem:[%s1 + $0x668] sm:$0xff]
    %v1445 = vld [vmem:[%s1 + $0x670] sm:$0xff]
    %v1446 = vld [vmem:[%s1 + $0x678] sm:$0xff]
    %v1447 = vld [vmem:[%s1 + $0x680] sm:$0xff]
    %v1448 = vld [vmem:[%s1 + $0x688] sm:$0xff]
    %v1449 = vld [vmem:[%s1 + $0x690] sm:$0xff]
    %v1450 = vld [vmem:[%s1 + $0x698] sm:$0xff]
    %v1451 = vld [vmem:[%s1 + $0x6a0] sm:$0xff]
    %v1452 = vld [vmem:[%s1 + $0x6a8] sm:$0xff]
    %v1453 = vld [vmem:[%s1 + $0x6b0] sm:$0xff]
    %v1454 = vld [vmem:[%s1 + $0x6b8] sm:$0xff]
    %v1455 = vld [vmem:[%s1 + $0x6c0] sm:$0xff]
    %v1456 = vld [vmem:[%s1 + $0x6c8] sm:$0xff]
    %v1457 = vld [vmem:[%s1 + $0x6d0] sm:$0xff]
    %v1458 = vld [vmem:[%s1 + $0x6d8] sm:$0xff]
    %v1459 = vld [vmem:[%s1 + $0x6e0] sm:$0xff]
    %v1460 = vld [vmem:[%s1 + $0x6e8] sm:$0xff]
    %v1461 = vld [vmem:[%s1 + $0x6f0] sm:$0xff]
    %v1462 = vld [vmem:[%s1 + $0x6f8] sm:$0xff]
    %v1463 = vld [vmem:[%s1 + $0x700] sm:$0xff]
    %v1464 = vld [vmem:[%s1 + $0x708] sm:$0xff]
    %v1465 = vld [vmem:[%s1 + $0x710] sm:$0xff]
    %v1466 = vld [vmem:[%s1 + $0x718] sm:$0xff]
    %v1467 = vld [vmem:[%s1 + $0x720] sm:$0xff]
    %v1468 = vld [vmem:[%s1 + $0x728] sm:$0xff]
    %v1469 = vld [vmem:[%s1 + $0x730] sm:$0xff]
    %v1470 = vld [vmem:[%s1 + $0x738] sm:$0xff]
    %v1471 = vld [vmem:[%s1 + $0x740] sm:$0xff]
    %v1472 = vld [vmem:[%s1 + $0x748] sm:$0xff]
    %v1473 = vld [vmem:[%s1 + $0x750] sm:$0xff]
    %v1474 = vld [vmem:[%s1 + $0x758] sm:$0xff]
    %v1475 = vld [vmem:[%s1 + $0x760] sm:$0xff]
    %v1476 = vld [vmem:[%s1 + $0x768] sm:$0xff]
    %v1477 = vld [vmem:[%s1 + $0x770] sm:$0xff]
    %v1478 = vld [vmem:[%s1 + $0x778] sm:$0xff]
    %s1479 = scalar_lea.vmem %s3, 1
    %v1480 = vld [vmem:[%s1479] ss:$8 sm:$0x3]
    %v1482 = vlaneseq
    %v1483 = vshrl.u32 %v1482, 7
    %v1484 = vsub.s32 0, %v1483
    %v1485 = vrot.slane %v1480, %v1484
    %v1486 = vlaneseq
    %v1487 = vshrl.u32 %v1486, 7
    %v1488 = vsub.s32 1, %v1487
    %v1489 = vrot.slane %v1480, %v1488
    %v1652 = vunpack.c.l.b16 %v1319
    %v1653 = vunpack.c.h.b16 %v1319
    %v1654 = vunpack.c.l.b16 %v1320
    %v1655 = vunpack.c.h.b16 %v1320
    %v1656 = vunpack.c.l.b16 %v1321
    %v1657 = vunpack.c.h.b16 %v1321
    %v1658 = vunpack.c.l.b16 %v1322
    %v1659 = vunpack.c.h.b16 %v1322
    %v1660 = vunpack.c.l.b16 %v1323
    %v1661 = vunpack.c.h.b16 %v1323
    %v1662 = vunpack.c.l.b16 %v1324
    %v1663 = vunpack.c.h.b16 %v1324
    %v1664 = vunpack.c.l.b16 %v1325
    %v1665 = vunpack.c.h.b16 %v1325
    %v1666 = vunpack.c.l.b16 %v1326
    %v1667 = vunpack.c.h.b16 %v1326
    %v1668 = vunpack.c.l.b16 %v1327
    %v1669 = vunpack.c.h.b16 %v1327
    %v1670 = vunpack.c.l.b16 %v1328
    %v1671 = vunpack.c.h.b16 %v1328
    %v1672 = vunpack.c.l.b16 %v1329
    %v1673 = vunpack.c.h.b16 %v1329
    %v1674 = vunpack.c.l.b16 %v1330
    %v1675 = vunpack.c.h.b16 %v1330
    %v1676 = vunpack.c.l.b16 %v1331
    %v1677 = vunpack.c.h.b16 %v1331
    %v1678 = vunpack.c.l.b16 %v1332
    %v1679 = vunpack.c.h.b16 %v1332
    %v1680 = vunpack.c.l.b16 %v1333
    %v1681 = vunpack.c.h.b16 %v1333
    %v1682 = vunpack.c.l.b16 %v1334
    %v1683 = vunpack.c.h.b16 %v1334
    %v1684 = vunpack.c.l.b16 %v1335
    %v1685 = vunpack.c.h.b16 %v1335
    %v1686 = vunpack.c.l.b16 %v1336
    %v1687 = vunpack.c.h.b16 %v1336
    %v1688 = vunpack.c.l.b16 %v1337
    %v1689 = vunpack.c.h.b16 %v1337
    %v1690 = vunpack.c.l.b16 %v1338
    %v1691 = vunpack.c.h.b16 %v1338
    %v1692 = vunpack.c.l.b16 %v1339
    %v1693 = vunpack.c.h.b16 %v1339
    %v1694 = vunpack.c.l.b16 %v1340
    %v1695 = vunpack.c.h.b16 %v1340
    %v1696 = vunpack.c.l.b16 %v1341
    %v1697 = vunpack.c.h.b16 %v1341
    %v1698 = vunpack.c.l.b16 %v1342
    %v1699 = vunpack.c.h.b16 %v1342
    %v1700 = vunpack.c.l.b16 %v1343
    %v1701 = vunpack.c.h.b16 %v1343
    %v1702 = vunpack.c.l.b16 %v1344
    %v1703 = vunpack.c.h.b16 %v1344
    %v1704 = vunpack.c.l.b16 %v1345
    %v1705 = vunpack.c.h.b16 %v1345
    %v1706 = vunpack.c.l.b16 %v1346
    %v1707 = vunpack.c.h.b16 %v1346
    %v1708 = vunpack.c.l.b16 %v1347
    %v1709 = vunpack.c.h.b16 %v1347
    %v1710 = vunpack.c.l.b16 %v1348
    %v1711 = vunpack.c.h.b16 %v1348
    %v1712 = vunpack.c.l.b16 %v1349
    %v1713 = vunpack.c.h.b16 %v1349
    %v1714 = vunpack.c.l.b16 %v1350
    %v1715 = vunpack.c.h.b16 %v1350
    %v1716 = vunpack.c.l.b16 %v1351
    %v1717 = vunpack.c.h.b16 %v1351
    %v1718 = vunpack.c.l.b16 %v1352
    %v1719 = vunpack.c.h.b16 %v1352
    %v1720 = vunpack.c.l.b16 %v1353
    %v1721 = vunpack.c.h.b16 %v1353
    %v1722 = vunpack.c.l.b16 %v1354
    %v1723 = vunpack.c.h.b16 %v1354
    %v1724 = vunpack.c.l.b16 %v1355
    %v1725 = vunpack.c.h.b16 %v1355
    %v1726 = vunpack.c.l.b16 %v1356
    %v1727 = vunpack.c.h.b16 %v1356
    %v1728 = vunpack.c.l.b16 %v1357
    %v1729 = vunpack.c.h.b16 %v1357
    %v1730 = vunpack.c.l.b16 %v1358
    %v1731 = vunpack.c.h.b16 %v1358
    %v1732 = vunpack.c.l.b16 %v1359
    %v1733 = vunpack.c.h.b16 %v1359
    %v1734 = vunpack.c.l.b16 %v1360
    %v1735 = vunpack.c.h.b16 %v1360
    %v1736 = vunpack.c.l.b16 %v1361
    %v1737 = vunpack.c.h.b16 %v1361
    %v1738 = vunpack.c.l.b16 %v1362
    %v1739 = vunpack.c.h.b16 %v1362
    %v1740 = vunpack.c.l.b16 %v1363
    %v1741 = vunpack.c.h.b16 %v1363
    %v1742 = vunpack.c.l.b16 %v1364
    %v1743 = vunpack.c.h.b16 %v1364
    %v1744 = vunpack.c.l.b16 %v1365
    %v1745 = vunpack.c.h.b16 %v1365
    %v1746 = vunpack.c.l.b16 %v1366
    %v1747 = vunpack.c.h.b16 %v1366
    %v1748 = vunpack.c.l.b16 %v1367
    %v1749 = vunpack.c.h.b16 %v1367
    %v1750 = vunpack.c.l.b16 %v1368
    %v1751 = vunpack.c.h.b16 %v1368
    %v1752 = vunpack.c.l.b16 %v1369
    %v1753 = vunpack.c.h.b16 %v1369
    %v1754 = vunpack.c.l.b16 %v1370
    %v1755 = vunpack.c.h.b16 %v1370
    %v1756 = vunpack.c.l.b16 %v1371
    %v1757 = vunpack.c.h.b16 %v1371
    %v1758 = vunpack.c.l.b16 %v1372
    %v1759 = vunpack.c.h.b16 %v1372
    %v1760 = vunpack.c.l.b16 %v1373
    %v1761 = vunpack.c.h.b16 %v1373
    %v1762 = vunpack.c.l.b16 %v1374
    %v1763 = vunpack.c.h.b16 %v1374
    %v1764 = vunpack.c.l.b16 %v1375
    %v1765 = vunpack.c.h.b16 %v1375
    %v1766 = vunpack.c.l.b16 %v1376
    %v1767 = vunpack.c.h.b16 %v1376
    %v1768 = vunpack.c.l.b16 %v1377
    %v1769 = vunpack.c.h.b16 %v1377
    %v1770 = vunpack.c.l.b16 %v1378
    %v1771 = vunpack.c.h.b16 %v1378
    %v1772 = vunpack.c.l.b16 %v1379
    %v1773 = vunpack.c.h.b16 %v1379
    %v1774 = vunpack.c.l.b16 %v1380
    %v1775 = vunpack.c.h.b16 %v1380
    %v1776 = vunpack.c.l.b16 %v1381
    %v1777 = vunpack.c.h.b16 %v1381
    %v1778 = vunpack.c.l.b16 %v1382
    %v1779 = vunpack.c.h.b16 %v1382
    %v1780 = vunpack.c.l.b16 %v1383
    %v1781 = vunpack.c.h.b16 %v1383
    %v1782 = vunpack.c.l.b16 %v1384
    %v1783 = vunpack.c.h.b16 %v1384
    %v1784 = vunpack.c.l.b16 %v1385
    %v1785 = vunpack.c.h.b16 %v1385
    %v1786 = vunpack.c.l.b16 %v1386
    %v1787 = vunpack.c.h.b16 %v1386
    %v1788 = vunpack.c.l.b16 %v1387
    %v1789 = vunpack.c.h.b16 %v1387
    %v1790 = vunpack.c.l.b16 %v1388
    %v1791 = vunpack.c.h.b16 %v1388
    %v1792 = vunpack.c.l.b16 %v1389
    %v1793 = vunpack.c.h.b16 %v1389
    %v1794 = vunpack.c.l.b16 %v1390
    %v1795 = vunpack.c.h.b16 %v1390
    %v1796 = vunpack.c.l.b16 %v1391
    %v1797 = vunpack.c.h.b16 %v1391
    %v1798 = vunpack.c.l.b16 %v1392
    %v1799 = vunpack.c.h.b16 %v1392
    %v1800 = vunpack.c.l.b16 %v1393
    %v1801 = vunpack.c.h.b16 %v1393
    %v1802 = vunpack.c.l.b16 %v1394
    %v1803 = vunpack.c.h.b16 %v1394
    %v1804 = vunpack.c.l.b16 %v1395
    %v1805 = vunpack.c.h.b16 %v1395
    %v1806 = vunpack.c.l.b16 %v1396
    %v1807 = vunpack.c.h.b16 %v1396
    %v1808 = vunpack.c.l.b16 %v1397
    %v1809 = vunpack.c.h.b16 %v1397
    %v1810 = vunpack.c.l.b16 %v1398
    %v1811 = vunpack.c.h.b16 %v1398
    %v1812 = vunpack.c.l.b16 %v1399
    %v1813 = vunpack.c.h.b16 %v1399
    %v1814 = vunpack.c.l.b16 %v1400
    %v1815 = vunpack.c.h.b16 %v1400
    %v1816 = vunpack.c.l.b16 %v1401
    %v1817 = vunpack.c.h.b16 %v1401
    %v1818 = vunpack.c.l.b16 %v1402
    %v1819 = vunpack.c.h.b16 %v1402
    %v1820 = vunpack.c.l.b16 %v1403
    %v1821 = vunpack.c.h.b16 %v1403
    %v1822 = vunpack.c.l.b16 %v1404
    %v1823 = vunpack.c.h.b16 %v1404
    %v1824 = vunpack.c.l.b16 %v1405
    %v1825 = vunpack.c.h.b16 %v1405
    %v1826 = vunpack.c.l.b16 %v1406
    %v1827 = vunpack.c.h.b16 %v1406
    %v1828 = vunpack.c.l.b16 %v1407
    %v1829 = vunpack.c.h.b16 %v1407
    %v1830 = vunpack.c.l.b16 %v1408
    %v1831 = vunpack.c.h.b16 %v1408
    %v1832 = vunpack.c.l.b16 %v1409
    %v1833 = vunpack.c.h.b16 %v1409
    %v1834 = vunpack.c.l.b16 %v1410
    %v1835 = vunpack.c.h.b16 %v1410
    %v1836 = vunpack.c.l.b16 %v1411
    %v1837 = vunpack.c.h.b16 %v1411
    %v1838 = vunpack.c.l.b16 %v1412
    %v1839 = vunpack.c.h.b16 %v1412
    %v1840 = vunpack.c.l.b16 %v1413
    %v1841 = vunpack.c.h.b16 %v1413
    %v1842 = vunpack.c.l.b16 %v1414
    %v1843 = vunpack.c.h.b16 %v1414
    %v1844 = vunpack.c.l.b16 %v1415
    %v1845 = vunpack.c.h.b16 %v1415
    %v1846 = vunpack.c.l.b16 %v1416
    %v1847 = vunpack.c.h.b16 %v1416
    %v1848 = vunpack.c.l.b16 %v1417
    %v1849 = vunpack.c.h.b16 %v1417
    %v1850 = vunpack.c.l.b16 %v1418
    %v1851 = vunpack.c.h.b16 %v1418
    %v1852 = vunpack.c.l.b16 %v1419
    %v1853 = vunpack.c.h.b16 %v1419
    %v1854 = vunpack.c.l.b16 %v1420
    %v1855 = vunpack.c.h.b16 %v1420
    %v1856 = vunpack.c.l.b16 %v1421
    %v1857 = vunpack.c.h.b16 %v1421
    %v1858 = vunpack.c.l.b16 %v1422
    %v1859 = vunpack.c.h.b16 %v1422
    %v1860 = vunpack.c.l.b16 %v1423
    %v1861 = vunpack.c.h.b16 %v1423
    %v1862 = vunpack.c.l.b16 %v1424
    %v1863 = vunpack.c.h.b16 %v1424
    %v1864 = vunpack.c.l.b16 %v1425
    %v1865 = vunpack.c.h.b16 %v1425
    %v1866 = vunpack.c.l.b16 %v1426
    %v1867 = vunpack.c.h.b16 %v1426
    %v1868 = vunpack.c.l.b16 %v1427
    %v1869 = vunpack.c.h.b16 %v1427
    %v1870 = vunpack.c.l.b16 %v1428
    %v1871 = vunpack.c.h.b16 %v1428
    %v1872 = vunpack.c.l.b16 %v1429
    %v1873 = vunpack.c.h.b16 %v1429
    %v1874 = vunpack.c.l.b16 %v1430
    %v1875 = vunpack.c.h.b16 %v1430
    %v1876 = vunpack.c.l.b16 %v1431
    %v1877 = vunpack.c.h.b16 %v1431
    %v1878 = vunpack.c.l.b16 %v1432
    %v1879 = vunpack.c.h.b16 %v1432
    %v1880 = vunpack.c.l.b16 %v1433
    %v1881 = vunpack.c.h.b16 %v1433
    %v1882 = vunpack.c.l.b16 %v1434
    %v1883 = vunpack.c.h.b16 %v1434
    %v1884 = vunpack.c.l.b16 %v1435
    %v1885 = vunpack.c.h.b16 %v1435
    %v1886 = vunpack.c.l.b16 %v1436
    %v1887 = vunpack.c.h.b16 %v1436
    %v1888 = vunpack.c.l.b16 %v1437
    %v1889 = vunpack.c.h.b16 %v1437
    %v1890 = vunpack.c.l.b16 %v1438
    %v1891 = vunpack.c.h.b16 %v1438
    %v1892 = vunpack.c.l.b16 %v1439
    %v1893 = vunpack.c.h.b16 %v1439
    %v1894 = vunpack.c.l.b16 %v1440
    %v1895 = vunpack.c.h.b16 %v1440
    %v1896 = vunpack.c.l.b16 %v1441
    %v1897 = vunpack.c.h.b16 %v1441
    %v1898 = vunpack.c.l.b16 %v1442
    %v1899 = vunpack.c.h.b16 %v1442
    %v1900 = vunpack.c.l.b16 %v1443
    %v1901 = vunpack.c.h.b16 %v1443
    %v1902 = vunpack.c.l.b16 %v1444
    %v1903 = vunpack.c.h.b16 %v1444
    %v1904 = vunpack.c.l.b16 %v1445
    %v1905 = vunpack.c.h.b16 %v1445
    %v1906 = vunpack.c.l.b16 %v1446
    %v1907 = vunpack.c.h.b16 %v1446
    %v1908 = vunpack.c.l.b16 %v1447
    %v1909 = vunpack.c.h.b16 %v1447
    %v1910 = vunpack.c.l.b16 %v1448
    %v1911 = vunpack.c.h.b16 %v1448
    %v1912 = vunpack.c.l.b16 %v1449
    %v1913 = vunpack.c.h.b16 %v1449
    %v1914 = vunpack.c.l.b16 %v1450
    %v1915 = vunpack.c.h.b16 %v1450
    %v1916 = vunpack.c.l.b16 %v1451
    %v1917 = vunpack.c.h.b16 %v1451
    %v1918 = vunpack.c.l.b16 %v1452
    %v1919 = vunpack.c.h.b16 %v1452
    %v1920 = vunpack.c.l.b16 %v1453
    %v1921 = vunpack.c.h.b16 %v1453
    %v1922 = vunpack.c.l.b16 %v1454
    %v1923 = vunpack.c.h.b16 %v1454
    %v1924 = vunpack.c.l.b16 %v1455
    %v1925 = vunpack.c.h.b16 %v1455
    %v1926 = vunpack.c.l.b16 %v1456
    %v1927 = vunpack.c.h.b16 %v1456
    %v1928 = vunpack.c.l.b16 %v1457
    %v1929 = vunpack.c.h.b16 %v1457
    %v1930 = vunpack.c.l.b16 %v1458
    %v1931 = vunpack.c.h.b16 %v1458
    %v1932 = vunpack.c.l.b16 %v1459
    %v1933 = vunpack.c.h.b16 %v1459
    %v1934 = vunpack.c.l.b16 %v1460
    %v1935 = vunpack.c.h.b16 %v1460
    %v1936 = vunpack.c.l.b16 %v1461
    %v1937 = vunpack.c.h.b16 %v1461
    %v1938 = vunpack.c.l.b16 %v1462
    %v1939 = vunpack.c.h.b16 %v1462
    %v1940 = vunpack.c.l.b16 %v1463
    %v1941 = vunpack.c.h.b16 %v1463
    %v1942 = vunpack.c.l.b16 %v1464
    %v1943 = vunpack.c.h.b16 %v1464
    %v1944 = vunpack.c.l.b16 %v1465
    %v1945 = vunpack.c.h.b16 %v1465
    %v1946 = vunpack.c.l.b16 %v1466
    %v1947 = vunpack.c.h.b16 %v1466
    %v1948 = vunpack.c.l.b16 %v1467
    %v1949 = vunpack.c.h.b16 %v1467
    %v1950 = vunpack.c.l.b16 %v1468
    %v1951 = vunpack.c.h.b16 %v1468
    %v1952 = vunpack.c.l.b16 %v1469
    %v1953 = vunpack.c.h.b16 %v1469
    %v1954 = vunpack.c.l.b16 %v1470
    %v1955 = vunpack.c.h.b16 %v1470
    %v1956 = vunpack.c.l.b16 %v1471
    %v1957 = vunpack.c.h.b16 %v1471
    %v1958 = vunpack.c.l.b16 %v1472
    %v1959 = vunpack.c.h.b16 %v1472
    %v1960 = vunpack.c.l.b16 %v1473
    %v1961 = vunpack.c.h.b16 %v1473
    %v1962 = vunpack.c.l.b16 %v1474
    %v1963 = vunpack.c.h.b16 %v1474
    %v1964 = vunpack.c.l.b16 %v1475
    %v1965 = vunpack.c.h.b16 %v1475
    %v1966 = vunpack.c.l.b16 %v1476
    %v1967 = vunpack.c.h.b16 %v1476
    %v1968 = vunpack.c.l.b16 %v1477
    %v1969 = vunpack.c.h.b16 %v1477
    %v1970 = vunpack.c.l.b16 %v1478
    %v1971 = vunpack.c.h.b16 %v1478
    %v1972 = vpack.c.b16 %v1654, %v1652
    %v1973 = vpack.c.b16 %v1655, %v1653
    %v1974 = vpack.c.b16 %v1658, %v1656
    %v1975 = vpack.c.b16 %v1659, %v1657
    %v1976 = vpack.c.b16 %v1662, %v1660
    %v1977 = vpack.c.b16 %v1663, %v1661
    %v1978 = vpack.c.b16 %v1666, %v1664
    %v1979 = vpack.c.b16 %v1667, %v1665
    %v1980 = vpack.c.b16 %v1670, %v1668
    %v1981 = vpack.c.b16 %v1671, %v1669
    %v1982 = vpack.c.b16 %v1674, %v1672
    %v1983 = vpack.c.b16 %v1675, %v1673
    %v1984 = vpack.c.b16 %v1678, %v1676
    %v1985 = vpack.c.b16 %v1679, %v1677
    %v1986 = vpack.c.b16 %v1682, %v1680
    %v1987 = vpack.c.b16 %v1683, %v1681
    %v1988 = vpack.c.b16 %v1686, %v1684
    %v1989 = vpack.c.b16 %v1687, %v1685
    %v1990 = vpack.c.b16 %v1690, %v1688
    %v1991 = vpack.c.b16 %v1691, %v1689
    %v1992 = vpack.c.b16 %v1694, %v1692
    %v1993 = vpack.c.b16 %v1695, %v1693
    %v1994 = vpack.c.b16 %v1698, %v1696
    %v1995 = vpack.c.b16 %v1699, %v1697
    %v1996 = vpack.c.b16 %v1702, %v1700
    %v1997 = vpack.c.b16 %v1703, %v1701
    %v1998 = vpack.c.b16 %v1706, %v1704
    %v1999 = vpack.c.b16 %v1707, %v1705
    %v2000 = vpack.c.b16 %v1710, %v1708
    %v2001 = vpack.c.b16 %v1711, %v1709
    %v2002 = vpack.c.b16 %v1714, %v1712
    %v2003 = vpack.c.b16 %v1715, %v1713
    %v2004 = vpack.c.b16 %v1718, %v1716
    %v2005 = vpack.c.b16 %v1719, %v1717
    %v2006 = vpack.c.b16 %v1722, %v1720
    %v2007 = vpack.c.b16 %v1723, %v1721
    %v2008 = vpack.c.b16 %v1726, %v1724
    %v2009 = vpack.c.b16 %v1727, %v1725
    %v2010 = vpack.c.b16 %v1730, %v1728
    %v2011 = vpack.c.b16 %v1731, %v1729
    %v2012 = vpack.c.b16 %v1734, %v1732
    %v2013 = vpack.c.b16 %v1735, %v1733
    %v2014 = vpack.c.b16 %v1738, %v1736
    %v2015 = vpack.c.b16 %v1739, %v1737
    %v2016 = vpack.c.b16 %v1742, %v1740
    %v2017 = vpack.c.b16 %v1743, %v1741
    %v2018 = vpack.c.b16 %v1746, %v1744
    %v2019 = vpack.c.b16 %v1747, %v1745
    %v2020 = vpack.c.b16 %v1750, %v1748
    %v2021 = vpack.c.b16 %v1751, %v1749
    %v2022 = vpack.c.b16 %v1754, %v1752
    %v2023 = vpack.c.b16 %v1755, %v1753
    %v2024 = vpack.c.b16 %v1758, %v1756
    %v2025 = vpack.c.b16 %v1759, %v1757
    %v2026 = vpack.c.b16 %v1762, %v1760
    %v2027 = vpack.c.b16 %v1763, %v1761
    %v2028 = vpack.c.b16 %v1766, %v1764
    %v2029 = vpack.c.b16 %v1767, %v1765
    %v2030 = vpack.c.b16 %v1770, %v1768
    %v2031 = vpack.c.b16 %v1771, %v1769
    %v2032 = vpack.c.b16 %v1774, %v1772
    %v2033 = vpack.c.b16 %v1775, %v1773
    %v2034 = vpack.c.b16 %v1778, %v1776
    %v2035 = vpack.c.b16 %v1779, %v1777
    %v2036 = vpack.c.b16 %v1782, %v1780
    %v2037 = vpack.c.b16 %v1783, %v1781
    %v2038 = vpack.c.b16 %v1786, %v1784
    %v2039 = vpack.c.b16 %v1787, %v1785
    %v2040 = vpack.c.b16 %v1790, %v1788
    %v2041 = vpack.c.b16 %v1791, %v1789
    %v2042 = vpack.c.b16 %v1794, %v1792
    %v2043 = vpack.c.b16 %v1795, %v1793
    %v2044 = vpack.c.b16 %v1798, %v1796
    %v2045 = vpack.c.b16 %v1799, %v1797
    %v2046 = vpack.c.b16 %v1802, %v1800
    %v2047 = vpack.c.b16 %v1803, %v1801
    %v2048 = vpack.c.b16 %v1806, %v1804
    %v2049 = vpack.c.b16 %v1807, %v1805
    %v2050 = vpack.c.b16 %v1810, %v1808
    %v2051 = vpack.c.b16 %v1811, %v1809
    %v2052 = vpack.c.b16 %v1814, %v1812
    %v2053 = vpack.c.b16 %v1815, %v1813
    %v2054 = vpack.c.b16 %v1818, %v1816
    %v2055 = vpack.c.b16 %v1819, %v1817
    %v2056 = vpack.c.b16 %v1822, %v1820
    %v2057 = vpack.c.b16 %v1823, %v1821
    %v2058 = vpack.c.b16 %v1826, %v1824
    %v2059 = vpack.c.b16 %v1827, %v1825
    %v2060 = vpack.c.b16 %v1830, %v1828
    %v2061 = vpack.c.b16 %v1831, %v1829
    %v2062 = vpack.c.b16 %v1834, %v1832
    %v2063 = vpack.c.b16 %v1835, %v1833
    %v2064 = vpack.c.b16 %v1838, %v1836
    %v2065 = vpack.c.b16 %v1839, %v1837
    %v2066 = vpack.c.b16 %v1842, %v1840
    %v2067 = vpack.c.b16 %v1843, %v1841
    %v2068 = vpack.c.b16 %v1846, %v1844
    %v2069 = vpack.c.b16 %v1847, %v1845
    %v2070 = vpack.c.b16 %v1850, %v1848
    %v2071 = vpack.c.b16 %v1851, %v1849
    %v2072 = vpack.c.b16 %v1854, %v1852
    %v2073 = vpack.c.b16 %v1855, %v1853
    %v2074 = vpack.c.b16 %v1858, %v1856
    %v2075 = vpack.c.b16 %v1859, %v1857
    %v2076 = vpack.c.b16 %v1862, %v1860
    %v2077 = vpack.c.b16 %v1863, %v1861
    %v2078 = vpack.c.b16 %v1866, %v1864
    %v2079 = vpack.c.b16 %v1867, %v1865
    %v2080 = vpack.c.b16 %v1870, %v1868
    %v2081 = vpack.c.b16 %v1871, %v1869
    %v2082 = vpack.c.b16 %v1874, %v1872
    %v2083 = vpack.c.b16 %v1875, %v1873
    %v2084 = vpack.c.b16 %v1878, %v1876
    %v2085 = vpack.c.b16 %v1879, %v1877
    %v2086 = vpack.c.b16 %v1882, %v1880
    %v2087 = vpack.c.b16 %v1883, %v1881
    %v2088 = vpack.c.b16 %v1886, %v1884
    %v2089 = vpack.c.b16 %v1887, %v1885
    %v2090 = vpack.c.b16 %v1890, %v1888
    %v2091 = vpack.c.b16 %v1891, %v1889
    %v2092 = vpack.c.b16 %v1894, %v1892
    %v2093 = vpack.c.b16 %v1895, %v1893
    %v2094 = vpack.c.b16 %v1898, %v1896
    %v2095 = vpack.c.b16 %v1899, %v1897
    %v2096 = vpack.c.b16 %v1902, %v1900
    %v2097 = vpack.c.b16 %v1903, %v1901
    %v2098 = vpack.c.b16 %v1906, %v1904
    %v2099 = vpack.c.b16 %v1907, %v1905
    %v2100 = vpack.c.b16 %v1910, %v1908
    %v2101 = vpack.c.b16 %v1911, %v1909
    %v2102 = vpack.c.b16 %v1914, %v1912
    %v2103 = vpack.c.b16 %v1915, %v1913
    %v2104 = vpack.c.b16 %v1918, %v1916
    %v2105 = vpack.c.b16 %v1919, %v1917
    %v2106 = vpack.c.b16 %v1922, %v1920
    %v2107 = vpack.c.b16 %v1923, %v1921
    %v2108 = vpack.c.b16 %v1926, %v1924
    %v2109 = vpack.c.b16 %v1927, %v1925
    %v2110 = vpack.c.b16 %v1930, %v1928
    %v2111 = vpack.c.b16 %v1931, %v1929
    %v2112 = vpack.c.b16 %v1934, %v1932
    %v2113 = vpack.c.b16 %v1935, %v1933
    %v2114 = vpack.c.b16 %v1938, %v1936
    %v2115 = vpack.c.b16 %v1939, %v1937
    %v2116 = vpack.c.b16 %v1942, %v1940
    %v2117 = vpack.c.b16 %v1943, %v1941
    %v2118 = vpack.c.b16 %v1946, %v1944
    %v2119 = vpack.c.b16 %v1947, %v1945
    %v2120 = vpack.c.b16 %v1950, %v1948
    %v2121 = vpack.c.b16 %v1951, %v1949
    %v2122 = vpack.c.b16 %v1954, %v1952
    %v2123 = vpack.c.b16 %v1955, %v1953
    %v2124 = vpack.c.b16 %v1958, %v1956
    %v2125 = vpack.c.b16 %v1959, %v1957
    %v2126 = vpack.c.b16 %v1962, %v1960
    %v2127 = vpack.c.b16 %v1963, %v1961
    %v2128 = vpack.c.b16 %v1966, %v1964
    %v2129 = vpack.c.b16 %v1967, %v1965
    %v2130 = vpack.c.b16 %v1970, %v1968
    %v2131 = vpack.c.b16 %v1971, %v1969
    %2292 = vmatprep.subr.bf16.mxu0 %v1973
    %2293 = vmatpush1.bf16.msra.mxu0 %v1972
    %2294 = vmatprep.subr.bf16.mxu0 %v1975
    %2295 = vmatpush1.bf16.msra.mxu0 %v1974
    %2296 = vmatprep.subr.bf16.mxu0 %v1977
    %2297 = vmatpush1.bf16.msra.mxu0 %v1976
    %2298 = vmatprep.subr.bf16.mxu0 %v1979
    %2299 = vmatpush1.bf16.msra.mxu0 %v1978
    %2300 = vmatprep.subr.bf16.mxu0 %v1981
    %2301 = vmatpush1.bf16.msra.mxu0 %v1980
    %2302 = vmatprep.subr.bf16.mxu0 %v1983
    %2303 = vmatpush1.bf16.msra.mxu0 %v1982
    %2304 = vmatprep.subr.bf16.mxu0 %v1985
    %2305 = vmatpush1.bf16.msra.mxu0 %v1984
    %2306 = vmatprep.subr.bf16.mxu0 %v1987
    %2307 = vmatpush1.bf16.msra.mxu0 %v1986
    %2308 = vmatprep.subr.bf16.mxu0 %v1989
    %2309 = vmatpush1.bf16.msra.mxu0 %v1988
    %2310 = vmatprep.subr.bf16.mxu0 %v1991
    %2311 = vmatpush1.bf16.msra.mxu0 %v1990
    %2312 = vmatprep.subr.bf16.mxu0 %v1993
    %2313 = vmatpush1.bf16.msra.mxu0 %v1992
    %2314 = vmatprep.subr.bf16.mxu0 %v1995
    %2315 = vmatpush1.bf16.msra.mxu0 %v1994
    %2316 = vmatprep.subr.bf16.mxu0 %v1997
    %2317 = vmatpush1.bf16.msra.mxu0 %v1996
    %2318 = vmatprep.subr.bf16.mxu0 %v1999
    %2319 = vmatpush1.bf16.msra.mxu0 %v1998
    %2320 = vmatprep.subr.bf16.mxu0 %v2001
    %2321 = vmatpush1.bf16.msra.mxu0 %v2000
    %2322 = vmatprep.subr.bf16.mxu0 %v2003
    %2323 = vmatpush1.bf16.msra.mxu0 %v2002
    %2324 = vmatprep.mubr.bf16.mxu0 %v1300
    %2325 = vmatmul.mubr.bf16.gmra.mrb[0].mxu0 %v1299
    %v2326 = vpop.f32.mrb[0].mxu0
    %v2327 = vadd.f32 %v1485, %v2326
    %v2328 = vpop.f32.mrb[0].mxu0
    %v2329 = vadd.f32 %v1489, %v2328
    %v2330 = vpop.f32.mrb[0].mxu0
    %v2331 = vadd.f32 %v1485, %v2330
    %v2332 = vpop.f32.mrb[0].mxu0
    %v2333 = vadd.f32 %v1489, %v2332
    %2334 = vmatprep.mubr.bf16.mxu0 %v1310
    %2335 = vmatmul.mubr.bf16.gmra.mrb[0].mxu0 %v1309
    %v2336 = vpop.f32.mrb[0].mxu0
    %v2337 = vadd.f32 %v1485, %v2336
    %v2338 = vpop.f32.mrb[0].mxu0
    %v2339 = vadd.f32 %v1489, %v2338
    %v2340 = vpop.f32.mrb[0].mxu0
    %v2341 = vpop.f32.mrb[0].mxu0
    %2342 = vdwg.mxu0
    %2343 = vmatprep.subr.bf16.mxu0 %v2005
    %2344 = vmatpush1.bf16.msra.mxu0 %v2004
    %2345 = vmatprep.subr.bf16.mxu0 %v2007
    %2346 = vmatpush1.bf16.msra.mxu0 %v2006
    %2347 = vmatprep.subr.bf16.mxu0 %v2009
    %2348 = vmatpush1.bf16.msra.mxu0 %v2008
    %2349 = vmatprep.subr.bf16.mxu0 %v2011
    %2350 = vmatpush1.bf16.msra.mxu0 %v2010
    %2351 = vmatprep.subr.bf16.mxu0 %v2013
    %2352 = vmatpush1.bf16.msra.mxu0 %v2012
    %2353 = vmatprep.subr.bf16.mxu0 %v2015
    %2354 = vmatpush1.bf16.msra.mxu0 %v2014
    %2355 = vmatprep.subr.bf16.mxu0 %v2017
    %2356 = vmatpush1.bf16.msra.mxu0 %v2016
    %2357 = vmatprep.subr.bf16.mxu0 %v2019
    %2358 = vmatpush1.bf16.msra.mxu0 %v2018
    %2359 = vmatprep.subr.bf16.mxu0 %v2021
    %2360 = vmatpush1.bf16.msra.mxu0 %v2020
    %2361 = vmatprep.subr.bf16.mxu0 %v2023
    %2362 = vmatpush1.bf16.msra.mxu0 %v2022
    %2363 = vmatprep.subr.bf16.mxu0 %v2025
    %2364 = vmatpush1.bf16.msra.mxu0 %v2024
    %2365 = vmatprep.subr.bf16.mxu0 %v2027
    %2366 = vmatpush1.bf16.msra.mxu0 %v2026
    %2367 = vmatprep.subr.bf16.mxu0 %v2029
    %2368 = vmatpush1.bf16.msra.mxu0 %v2028
    %2369 = vmatprep.subr.bf16.mxu0 %v2031
    %2370 = vmatpush1.bf16.msra.mxu0 %v2030
    %2371 = vmatprep.subr.bf16.mxu0 %v2033
    %2372 = vmatpush1.bf16.msra.mxu0 %v2032
    %2373 = vmatprep.subr.bf16.mxu0 %v2035
    %2374 = vmatpush1.bf16.msra.mxu0 %v2034
    %2375 = vmatprep.mubr.bf16.mxu0 %v1302
    %2376 = vmatmul.mubr.bf16.gmra.mrb[0].mxu0 %v1301
    %v2377 = vpop.f32.mrb[0].mxu0
    %v2378 = vadd.f32 %v2327, %v2377
    %v2379 = vpop.f32.mrb[0].mxu0
    %v2380 = vadd.f32 %v2329, %v2379
    %v2381 = vpop.f32.mrb[0].mxu0
    %v2382 = vadd.f32 %v2331, %v2381
    %v2383 = vpop.f32.mrb[0].mxu0
    %v2384 = vadd.f32 %v2333, %v2383
    %2385 = vmatprep.mubr.bf16.mxu0 %v1312
    %2386 = vmatmul.mubr.bf16.gmra.mrb[0].mxu0 %v1311
    %v2387 = vpop.f32.mrb[0].mxu0
    %v2388 = vadd.f32 %v2337, %v2387
    %v2389 = vpop.f32.mrb[0].mxu0
    %v2390 = vadd.f32 %v2339, %v2389
    %v2391 = vpop.f32.mrb[0].mxu0
    %v2392 = vpop.f32.mrb[0].mxu0
    %2393 = vdwg.mxu0
    %2394 = vmatprep.subr.bf16.mxu0 %v2037
    %2395 = vmatpush1.bf16.msra.mxu0 %v2036
    %2396 = vmatprep.subr.bf16.mxu0 %v2039
    %2397 = vmatpush1.bf16.msra.mxu0 %v2038
    %2398 = vmatprep.subr.bf16.mxu0 %v2041
    %2399 = vmatpush1.bf16.msra.mxu0 %v2040
    %2400 = vmatprep.subr.bf16.mxu0 %v2043
    %2401 = vmatpush1.bf16.msra.mxu0 %v2042
    %2402 = vmatprep.subr.bf16.mxu0 %v2045
    %2403 = vmatpush1.bf16.msra.mxu0 %v2044
    %2404 = vmatprep.subr.bf16.mxu0 %v2047
    %2405 = vmatpush1.bf16.msra.mxu0 %v2046
    %2406 = vmatprep.subr.bf16.mxu0 %v2049
    %2407 = vmatpush1.bf16.msra.mxu0 %v2048
    %2408 = vmatprep.subr.bf16.mxu0 %v2051
    %2409 = vmatpush1.bf16.msra.mxu0 %v2050
    %2410 = vmatprep.subr.bf16.mxu0 %v2053
    %2411 = vmatpush1.bf16.msra.mxu0 %v2052
    %2412 = vmatprep.subr.bf16.mxu0 %v2055
    %2413 = vmatpush1.bf16.msra.mxu0 %v2054
    %2414 = vmatprep.subr.bf16.mxu0 %v2057
    %2415 = vmatpush1.bf16.msra.mxu0 %v2056
    %2416 = vmatprep.subr.bf16.mxu0 %v2059
    %2417 = vmatpush1.bf16.msra.mxu0 %v2058
    %2418 = vmatprep.subr.bf16.mxu0 %v2061
    %2419 = vmatpush1.bf16.msra.mxu0 %v2060
    %2420 = vmatprep.subr.bf16.mxu0 %v2063
    %2421 = vmatpush1.bf16.msra.mxu0 %v2062
    %2422 = vmatprep.subr.bf16.mxu0 %v2065
    %2423 = vmatpush1.bf16.msra.mxu0 %v2064
    %2424 = vmatprep.subr.bf16.mxu0 %v2067
    %2425 = vmatpush1.bf16.msra.mxu0 %v2066
    %2426 = vmatprep.mubr.bf16.mxu0 %v1304
    %2427 = vmatmul.mubr.bf16.gmra.mrb[0].mxu0 %v1303
    %v2428 = vpop.f32.mrb[0].mxu0
    %v2429 = vadd.f32 %v2378, %v2428
    %v2430 = vpop.f32.mrb[0].mxu0
    %v2431 = vadd.f32 %v2380, %v2430
    %v2432 = vpop.f32.mrb[0].mxu0
    %v2433 = vadd.f32 %v2382, %v2432
    %v2434 = vpop.f32.mrb[0].mxu0
    %v2435 = vadd.f32 %v2384, %v2434
    %2436 = vmatprep.mubr.bf16.mxu0 %v1314
    %2437 = vmatmul.mubr.bf16.gmra.mrb[0].mxu0 %v1313
    %v2438 = vpop.f32.mrb[0].mxu0
    %v2439 = vadd.f32 %v2388, %v2438
    %v2440 = vpop.f32.mrb[0].mxu0
    %v2441 = vadd.f32 %v2390, %v2440
    %v2442 = vpop.f32.mrb[0].mxu0
    %v2443 = vpop.f32.mrb[0].mxu0
    %2444 = vdwg.mxu0
    %2445 = vmatprep.subr.bf16.mxu0 %v2069
    %2446 = vmatpush1.bf16.msra.mxu0 %v2068
    %2447 = vmatprep.subr.bf16.mxu0 %v2071
    %2448 = vmatpush1.bf16.msra.mxu0 %v2070
    %2449 = vmatprep.subr.bf16.mxu0 %v2073
    %2450 = vmatpush1.bf16.msra.mxu0 %v2072
    %2451 = vmatprep.subr.bf16.mxu0 %v2075
    %2452 = vmatpush1.bf16.msra.mxu0 %v2074
    %2453 = vmatprep.subr.bf16.mxu0 %v2077
    %2454 = vmatpush1.bf16.msra.mxu0 %v2076
    %2455 = vmatprep.subr.bf16.mxu0 %v2079
    %2456 = vmatpush1.bf16.msra.mxu0 %v2078
    %2457 = vmatprep.subr.bf16.mxu0 %v2081
    %2458 = vmatpush1.bf16.msra.mxu0 %v2080
    %2459 = vmatprep.subr.bf16.mxu0 %v2083
    %2460 = vmatpush1.bf16.msra.mxu0 %v2082
    %2461 = vmatprep.subr.bf16.mxu0 %v2085
    %2462 = vmatpush1.bf16.msra.mxu0 %v2084
    %2463 = vmatprep.subr.bf16.mxu0 %v2087
    %2464 = vmatpush1.bf16.msra.mxu0 %v2086
    %2465 = vmatprep.subr.bf16.mxu0 %v2089
    %2466 = vmatpush1.bf16.msra.mxu0 %v2088
    %2467 = vmatprep.subr.bf16.mxu0 %v2091
    %2468 = vmatpush1.bf16.msra.mxu0 %v2090
    %2469 = vmatprep.subr.bf16.mxu0 %v2093
    %2470 = vmatpush1.bf16.msra.mxu0 %v2092
    %2471 = vmatprep.subr.bf16.mxu0 %v2095
    %2472 = vmatpush1.bf16.msra.mxu0 %v2094
    %2473 = vmatprep.subr.bf16.mxu0 %v2097
    %2474 = vmatpush1.bf16.msra.mxu0 %v2096
    %2475 = vmatprep.subr.bf16.mxu0 %v2099
    %2476 = vmatpush1.bf16.msra.mxu0 %v2098
    %2477 = vmatprep.mubr.bf16.mxu0 %v1306
    %2478 = vmatmul.mubr.bf16.gmra.mrb[0].mxu0 %v1305
    %v2479 = vpop.f32.mrb[0].mxu0
    %v2480 = vadd.f32 %v2429, %v2479
    %v2481 = vpop.f32.mrb[0].mxu0
    %v2482 = vadd.f32 %v2431, %v2481
    %v2483 = vpop.f32.mrb[0].mxu0
    %v2484 = vadd.f32 %v2433, %v2483
    %v2485 = vpop.f32.mrb[0].mxu0
    %v2486 = vadd.f32 %v2435, %v2485
    %2487 = vmatprep.mubr.bf16.mxu0 %v1316
    %2488 = vmatmul.mubr.bf16.gmra.mrb[0].mxu0 %v1315
    %v2489 = vpop.f32.mrb[0].mxu0
    %v2490 = vadd.f32 %v2439, %v2489
    %v2491 = vpop.f32.mrb[0].mxu0
    %v2492 = vadd.f32 %v2441, %v2491
    %v2493 = vpop.f32.mrb[0].mxu0
    %v2494 = vpop.f32.mrb[0].mxu0
    %2495 = vdwg.mxu0
    %2496 = vmatprep.subr.bf16.mxu0 %v2101
    %2497 = vmatpush1.bf16.msra.mxu0 %v2100
    %2498 = vmatprep.subr.bf16.mxu0 %v2103
    %2499 = vmatpush1.bf16.msra.mxu0 %v2102
    %2500 = vmatprep.subr.bf16.mxu0 %v2105
    %2501 = vmatpush1.bf16.msra.mxu0 %v2104
    %2502 = vmatprep.subr.bf16.mxu0 %v2107
    %2503 = vmatpush1.bf16.msra.mxu0 %v2106
    %2504 = vmatprep.subr.bf16.mxu0 %v2109
    %2505 = vmatpush1.bf16.msra.mxu0 %v2108
    %2506 = vmatprep.subr.bf16.mxu0 %v2111
    %2507 = vmatpush1.bf16.msra.mxu0 %v2110
    %2508 = vmatprep.subr.bf16.mxu0 %v2113
    %2509 = vmatpush1.bf16.msra.mxu0 %v2112
    %2510 = vmatprep.subr.bf16.mxu0 %v2115
    %2511 = vmatpush1.bf16.msra.mxu0 %v2114
    %2512 = vmatprep.subr.bf16.mxu0 %v2117
    %2513 = vmatpush1.bf16.msra.mxu0 %v2116
    %2514 = vmatprep.subr.bf16.mxu0 %v2119
    %2515 = vmatpush1.bf16.msra.mxu0 %v2118
    %2516 = vmatprep.subr.bf16.mxu0 %v2121
    %2517 = vmatpush1.bf16.msra.mxu0 %v2120
    %2518 = vmatprep.subr.bf16.mxu0 %v2123
    %2519 = vmatpush1.bf16.msra.mxu0 %v2122
    %2520 = vmatprep.subr.bf16.mxu0 %v2125
    %2521 = vmatpush1.bf16.msra.mxu0 %v2124
    %2522 = vmatprep.subr.bf16.mxu0 %v2127
    %2523 = vmatpush1.bf16.msra.mxu0 %v2126
    %2524 = vmatprep.subr.bf16.mxu0 %v2129
    %2525 = vmatpush1.bf16.msra.mxu0 %v2128
    %2526 = vmatprep.subr.bf16.mxu0 %v2131
    %2527 = vmatpush1.bf16.msra.mxu0 %v2130
    %2528 = vmatprep.mubr.bf16.mxu0 %v1308
    %2529 = vmatmul.mubr.bf16.gmra.mrb[0].mxu0 %v1307
    %v2530 = vpop.f32.mrb[0].mxu0
    %v2531 = vadd.f32 %v2480, %v2530
    %v2532 = vpop.f32.mrb[0].mxu0
    %v2533 = vadd.f32 %v2482, %v2532
    %v2534 = vpop.f32.mrb[0].mxu0
    %v2535 = vadd.f32 %v2484, %v2534
    %v2536 = vpop.f32.mrb[0].mxu0
    %v2537 = vadd.f32 %v2486, %v2536
    %2538 = vmatprep.mubr.bf16.mxu0 %v1318
    %2539 = vmatmul.mubr.bf16.gmra.mrb[0].mxu0 %v1317
    %v2540 = vpop.f32.mrb[0].mxu0
    %v2541 = vadd.f32 %v2490, %v2540
    %v2542 = vpop.f32.mrb[0].mxu0
    %v2543 = vadd.f32 %v2492, %v2542
    %v2544 = vpop.f32.mrb[0].mxu0
    %v2545 = vpop.f32.mrb[0].mxu0
    %2546 = vdwg.mxu0
    %v2547 = vmax.f32 %v2531, 0.0
    %v2548 = vmax.f32 %v2533, 0.0
    %v2549 = vmax.f32 %v2535, 0.0
    %v2550 = vmax.f32 %v2537, 0.0
    %v2551 = vmax.f32 %v2541, 0.0
    %v2552 = vmax.f32 %v2543, 0.0
    %v2553 = vld [vmem:[%s4 + $0x20] sm:$0xff]
    %v2554 = vld [vmem:[%s4 + $0x28] sm:$0x3]
    %vm2555 = vcmask 162816
    %v2557 = vsel %vm2555, %v2553, 0
    %v2560 = vsel %vm2555, %v2554, 0
    %v2563 = vsel %vm140, %v2551, 0
    %v2566 = vsel %vm140, %v2552, 0
    %2568 = vmatprep.subr.mxu0 %v2548
    %2569 = vmatpush1.msra.mxu0 %v2547
    %2570 = vmatprep.subr.mxu0 %v2550
    %2571 = vmatpush1.msra.mxu0 %v2549
    %2572 = vmatprep.subr.mxu0 %v2566
    %2573 = vmatpush1.msra.mxu0 %v2563
    %2574 = vmatprep.subr.mxu0 0.0
    %2575 = vmatpush1.msra.mxu0 0.0
    %2576 = vmatprep.subr.mxu0 0.0
    %2577 = vmatpush1.msra.mxu0 0.0
    %2578 = vmatprep.subr.mxu0 0.0
    %2579 = vmatpush1.msra.mxu0 0.0
    %2580 = vmatprep.subr.mxu0 0.0
    %2581 = vmatpush1.msra.mxu0 0.0
    %2582 = vmatprep.subr.mxu0 0.0
    %2583 = vmatpush1.msra.mxu0 0.0
    %2584 = vmatprep.subr.mxu0 0.0
    %2585 = vmatpush1.msra.mxu0 0.0
    %2586 = vmatprep.subr.mxu0 0.0
    %2587 = vmatpush1.msra.mxu0 0.0
    %2588 = vmatprep.subr.mxu0 0.0
    %2589 = vmatpush1.msra.mxu0 0.0
    %2590 = vmatprep.subr.mxu0 0.0
    %2591 = vmatpush1.msra.mxu0 0.0
    %2592 = vmatprep.subr.mxu0 0.0
    %2593 = vmatpush1.msra.mxu0 0.0
    %2594 = vmatprep.subr.mxu0 0.0
    %2595 = vmatpush1.msra.mxu0 0.0
    %2596 = vmatprep.subr.mxu0 0.0
    %2597 = vmatpush1.msra.mxu0 0.0
    %2598 = vmatprep.subr.mxu0 0.0
    %2599 = vmatpush1.msra.mxu0 0.0
    %2600 = vmatprep.subr.mxu0 0.0
    %2601 = vmatpush1.msra.mxu0 0.0
    %2602 = vmatprep.subr.mxu0 0.0
    %2603 = vmatpush1.msra.mxu0 0.0
    %2604 = vmatprep.subr.mxu0 0.0
    %2605 = vmatpush1.msra.mxu0 0.0
    %2606 = vmatprep.subr.mxu0 0.0
    %2607 = vmatpush1.msra.mxu0 0.0
    %2608 = vmatprep.subr.mxu0 0.0
    %2609 = vmatpush1.msra.mxu0 0.0
    %2610 = vmatprep.subr.mxu0 0.0
    %2611 = vmatpush1.msra.mxu0 0.0
    %2612 = vmatprep.subr.mxu0 0.0
    %2613 = vmatpush1.msra.mxu0 0.0
    %2614 = vmatprep.subr.mxu0 0.0
    %2615 = vmatpush1.msra.mxu0 0.0
    %2616 = vmatprep.subr.mxu0 0.0
    %2617 = vmatpush1.msra.mxu0 0.0
    %2618 = vmatprep.subr.mxu0 0.0
    %2619 = vmatpush1.msra.mxu0 0.0
    %2620 = vmatprep.subr.mxu0 0.0
    %2621 = vmatpush1.msra.mxu0 0.0
    %2622 = vmatprep.subr.mxu0 0.0
    %2623 = vmatpush1.msra.mxu0 0.0
    %2624 = vmatprep.subr.mxu0 0.0
    %2625 = vmatpush1.msra.mxu0 0.0
    %2626 = vmatprep.subr.mxu0 0.0
    %2627 = vmatpush1.msra.mxu0 0.0
    %2628 = vmatprep.subr.mxu0 0.0
    %2629 = vmatpush1.msra.mxu0 0.0
    %2630 = vmatprep.subr.mxu0 0.0
    %2631 = vmatpush1.msra.mxu0 0.0
    %2632 = vmatprep.mubr.f32.mxu0 0.0
    %2633 = vmatmul.mubr.f32.gmra.mrb[0].mxu0 %v2557
    %v2634 = vpop.f32.mrb[0].mxu0
    %v2635 = vadd.f32 0.0, %v2634
    %v2636 = vpop.f32.mrb[0].mxu0
    %v2637 = vadd.f32 0.0, %v2636
    %2638 = vmatprep.mubr.f32.mxu0 0.0
    %2639 = vmatmul.mubr.f32.gmra.mrb[0].mxu0 %v2560
    %v2640 = vpop.f32.mrb[0].mxu0
    %v2641 = vadd.f32 0.0, %v2640
    %v2642 = vpop.f32.mrb[0].mxu0
    %v2643 = vadd.f32 0.0, %v2642
    %2644 = vdwg.mxu0
    %v2647 = vcombine.low %v2635, %v2637
    %v2649 = vunpack.c.l.s4 1966171168
    %v2650 = vunpack.c.0.s8 %v2649
    %v2651 = vlaneseq
    %v2652 = vshrl.u32 %v2651, 7
    %v2653 = vsub.s32 %v2650, %v2652
    %v2654 = vrot.slane %v2647, %v2653
    %v2656 = vunpack.c.l.s4 1966171168
    %v2657 = vunpack.c.0.s8 %v2656
    %v2658 = vlaneseq
    %v2659 = vshrl.u32 %v2658, 7
    %v2660 = vsub.s32 %v2657, %v2659
    %v2661 = vrot.slane %v2654, %v2660
    %v2663 = vlaneseq
    %vm2664 = vcmp.ge.s32.totalorder %v2663, 0
    %vm2665 = vcmp.lt.s32.totalorder %v2663, 160
    %vm2666 = vmand %vm2664, %vm2665
    %2667 = vst.msk [vmem:[#allocation4] ss:$2 sm:$0x3] %vm2666, %v2661
    %v2668 = vcombine.high %v2654, %v2654
    %v2670 = vunpack.c.l.s4 1966171168
    %v2671 = vunpack.c.0.s8 %v2670
    %v2672 = vlaneseq
    %v2673 = vshrl.u32 %v2672, 7
    %v2674 = vsub.s32 %v2671, %v2673
    %v2675 = vrot.slane %v2668, %v2674
    %s2677 = scalar_lea.vmem [#allocation4], 4
    %2678 = vst.msk [vmem:[%s2677] ss:$2 sm:$0x3] %vm2666, %v2675
    %v2679 = vcombine.high %v2661, %v2661
    %s2681 = scalar_lea.vmem [#allocation4], 8
    %2682 = vst.msk [vmem:[%s2681] ss:$2 sm:$0x3] %vm2666, %v2679
    %v2683 = vcombine.high %v2675, %v2675
    %s2685 = scalar_lea.vmem [#allocation4], 12
    %2686 = vst.msk [vmem:[%s2685] ss:$2 sm:$0x3] %vm2666, %v2683
    %v2687 = vcombine.high %v2635, %v2637
    %v2689 = vunpack.c.l.s4 1966171168
    %v2690 = vunpack.c.0.s8 %v2689
    %v2691 = vlaneseq
    %v2692 = vshrl.u32 %v2691, 7
    %v2693 = vsub.s32 %v2690, %v2692
    %v2694 = vrot.slane %v2687, %v2693
    %v2696 = vunpack.c.l.s4 1966171168
    %v2697 = vunpack.c.0.s8 %v2696
    %v2698 = vlaneseq
    %v2699 = vshrl.u32 %v2698, 7
    %v2700 = vsub.s32 %v2697, %v2699
    %v2701 = vrot.slane %v2694, %v2700
    %s2703 = scalar_lea.vmem [#allocation4], 16
    %2704 = vst.msk [vmem:[%s2703] ss:$2 sm:$0x3] %vm2666, %v2701
    %v2705 = vcombine.high %v2694, %v2694
    %v2707 = vunpack.c.l.s4 1966171168
    %v2708 = vunpack.c.0.s8 %v2707
    %v2709 = vlaneseq
    %v2710 = vshrl.u32 %v2709, 7
    %v2711 = vsub.s32 %v2708, %v2710
    %v2712 = vrot.slane %v2705, %v2711
    %s2714 = scalar_lea.vmem [#allocation4], 1
    %2715 = vst.msk [vmem:[%s2714] ss:$2 sm:$0x3] %vm2666, %v2712
    %v2716 = vcombine.high %v2701, %v2701
    %s2718 = scalar_lea.vmem [#allocation4], 5
    %2719 = vst.msk [vmem:[%s2718] ss:$2 sm:$0x3] %vm2666, %v2716
    %v2720 = vcombine.high %v2712, %v2712
    %s2722 = scalar_lea.vmem [#allocation4], 9
    %2723 = vst.msk [vmem:[%s2722] ss:$2 sm:$0x3] %vm2666, %v2720
    %v2726 = vcombine.low %v2641, %v2643
    %v2728 = vunpack.c.l.s4 1966171168
    %v2729 = vunpack.c.0.s8 %v2728
    %v2730 = vlaneseq
    %v2731 = vshrl.u32 %v2730, 7
    %v2732 = vsub.s32 %v2729, %v2731
    %v2733 = vrot.slane %v2726, %v2732
    %v2735 = vunpack.c.l.s4 1966171168
    %v2736 = vunpack.c.0.s8 %v2735
    %v2737 = vlaneseq
    %v2738 = vshrl.u32 %v2737, 7
    %v2739 = vsub.s32 %v2736, %v2738
    %v2740 = vrot.slane %v2733, %v2739
    %s2742 = scalar_lea.vmem [#allocation4], 13
    %2743 = vst.msk [vmem:[%s2742] ss:$2 sm:$0x3] %vm2666, %v2740
    %v2744 = vcombine.high %v2733, %v2733
    %v2746 = vunpack.c.l.s4 1966171168
    %v2747 = vunpack.c.0.s8 %v2746
    %v2748 = vlaneseq
    %v2749 = vshrl.u32 %v2748, 7
    %v2750 = vsub.s32 %v2747, %v2749
    %v2751 = vrot.slane %v2744, %v2750
    %s2753 = scalar_lea.vmem [#allocation4], 17
    %2754 = vst.msk [vmem:[%s2753] ss:$2 sm:$0x3] %vm2666, %v2751
    %v2755 = vld [vmem:[#allocation4] sm:$0xff]
    %v2756 = vld [vmem:[#allocation4 + $0x8] sm:$0xff]
    %v2757 = vld [vmem:[#allocation4 + $0x10] sm:$0xf]
    %v2761 = vcombine.high %v2755, %v2755
    %v2763 = vunpack.c.l.s4 1983009808
    %v2764 = vunpack.c.0.s8 %v2763
    %v2765 = vlaneseq
    %v2766 = vshrl.u32 %v2765, 7
    %v2767 = vsub.s32 %v2764, %v2766
    %v2768 = vrot.slane %v2755, %v2767
    %v2770 = vunpack.c.l.s4 1983009808
    %v2771 = vunpack.c.0.s8 %v2770
    %v2772 = vlaneseq
    %v2773 = vshrl.u32 %v2772, 7
    %v2774 = vsub.s32 %v2771, %v2773
    %v2775 = vrot.slane %v2761, %v2774
    %v2776 = vcombine.high %v2768, %v2768
    %v2777 = vcombine.high %v2775, %v2775
    %v2778 = vcombine.high %v2756, %v2756
    %v2780 = vunpack.c.l.s4 1983009808
    %v2781 = vunpack.c.0.s8 %v2780
    %v2782 = vlaneseq
    %v2783 = vshrl.u32 %v2782, 7
    %v2784 = vsub.s32 %v2781, %v2783
    %v2785 = vrot.slane %v2756, %v2784
    %v2787 = vunpack.c.l.s4 1983009808
    %v2788 = vunpack.c.0.s8 %v2787
    %v2789 = vlaneseq
    %v2790 = vshrl.u32 %v2789, 7
    %v2791 = vsub.s32 %v2788, %v2790
    %v2792 = vrot.slane %v2778, %v2791
    %v2793 = vcombine.high %v2785, %v2785
    %v2794 = vcombine.high %v2792, %v2792
    %v2796 = vunpack.c.l.s4 1983009808
    %v2797 = vunpack.c.0.s8 %v2796
    %v2798 = vlaneseq
    %v2799 = vshrl.u32 %v2798, 7
    %v2800 = vsub.s32 %v2797, %v2799
    %v2801 = vrot.slane %v2757, %v2800
    %v2802 = vcombine.high %v2801, %v2801
    %v2813 = vpack.c.bf16 %v2768, %v2768
    %v2814 = vpack.c.bf16 %v2776, %v2776
    %v2815 = vpack.c.bf16 %v2775, %v2775
    %v2816 = vpack.c.bf16 %v2777, %v2777
    %v2817 = vpack.c.bf16 %v2785, %v2785
    %v2818 = vpack.c.bf16 %v2793, %v2793
    %v2819 = vpack.c.bf16 %v2792, %v2792
    %v2820 = vpack.c.bf16 %v2794, %v2794
    %v2821 = vpack.c.bf16 %v2801, %v2801
    %v2822 = vpack.c.bf16 %v2802, %v2802
    %v2823 = vld [vmem:[%s2] sm:$0xf]
    %v2824 = vld [vmem:[%s2 + $0x4] sm:$0xf]
    %v2825 = vld [vmem:[%s2 + $0x8] sm:$0xf]
    %v2826 = vld [vmem:[%s2 + $0xc] sm:$0xf]
    %v2827 = vld [vmem:[%s2 + $0x10] sm:$0xf]
    %v2828 = vld [vmem:[%s2 + $0x14] sm:$0xf]
    %v2829 = vld [vmem:[%s2 + $0x18] sm:$0xf]
    %v2830 = vld [vmem:[%s2 + $0x1c] sm:$0xf]
    %v2831 = vld [vmem:[%s2 + $0x20] sm:$0xf]
    %v2832 = vld [vmem:[%s2 + $0x24] sm:$0xf]
    %v2833 = vld [vmem:[%s2 + $0x28] sm:$0xf]
    %v2834 = vld [vmem:[%s2 + $0x2c] sm:$0xf]
    %v2835 = vld [vmem:[%s2 + $0x30] sm:$0xf]
    %v2836 = vld [vmem:[%s2 + $0x34] sm:$0xf]
    %v2837 = vld [vmem:[%s2 + $0x38] sm:$0xf]
    %v2838 = vld [vmem:[%s2 + $0x3c] sm:$0xf]
    %v2839 = vld [vmem:[%s2 + $0x40] sm:$0xf]
    %v2840 = vld [vmem:[%s2 + $0x44] sm:$0xf]
    %v2841 = vld [vmem:[%s2 + $0x48] sm:$0xf]
    %v2842 = vld [vmem:[%s2 + $0x4c] sm:$0xf]
    %v2843 = vld [vmem:[%s2 + $0x50] sm:$0xf]
    %v2844 = vld [vmem:[%s2 + $0x54] sm:$0xf]
    %v2845 = vld [vmem:[%s2 + $0x58] sm:$0xf]
    %v2846 = vld [vmem:[%s2 + $0x5c] sm:$0xf]
    %v2847 = vld [vmem:[%s2 + $0x60] sm:$0xf]
    %v2848 = vld [vmem:[%s2 + $0x64] sm:$0xf]
    %v2849 = vld [vmem:[%s2 + $0x68] sm:$0xf]
    %v2850 = vld [vmem:[%s2 + $0x6c] sm:$0xf]
    %v2851 = vld [vmem:[%s2 + $0x70] sm:$0xf]
    %v2852 = vld [vmem:[%s2 + $0x74] sm:$0xf]
    %v2853 = vld [vmem:[%s2 + $0x78] sm:$0xf]
    %v2854 = vld [vmem:[%s2 + $0x7c] sm:$0xf]
    %v2855 = vld [vmem:[%s2 + $0x80] sm:$0xf]
    %v2856 = vld [vmem:[%s2 + $0x84] sm:$0xf]
    %v2857 = vld [vmem:[%s2 + $0x88] sm:$0xf]
    %v2858 = vld [vmem:[%s2 + $0x8c] sm:$0xf]
    %v2859 = vld [vmem:[%s2 + $0x90] sm:$0xf]
    %v2860 = vld [vmem:[%s2 + $0x94] sm:$0xf]
    %v2861 = vld [vmem:[%s2 + $0x98] sm:$0xf]
    %v2862 = vld [vmem:[%s2 + $0x9c] sm:$0xf]
    %v2863 = vld [vmem:[%s2 + $0xa0] sm:$0xf]
    %v2864 = vld [vmem:[%s2 + $0xa4] sm:$0xf]
    %v2865 = vld [vmem:[%s2 + $0xa8] sm:$0xf]
    %v2866 = vld [vmem:[%s2 + $0xac] sm:$0xf]
    %v2867 = vld [vmem:[%s2 + $0xb0] sm:$0xf]
    %v2868 = vld [vmem:[%s2 + $0xb4] sm:$0xf]
    %v2869 = vld [vmem:[%s2 + $0xb8] sm:$0xf]
    %v2870 = vld [vmem:[%s2 + $0xbc] sm:$0xf]
    %v2871 = vld [vmem:[%s2 + $0xc0] sm:$0xf]
    %v2872 = vld [vmem:[%s2 + $0xc4] sm:$0xf]
    %v2873 = vld [vmem:[%s2 + $0xc8] sm:$0xf]
    %v2874 = vld [vmem:[%s2 + $0xcc] sm:$0xf]
    %v2875 = vld [vmem:[%s2 + $0xd0] sm:$0xf]
    %v2876 = vld [vmem:[%s2 + $0xd4] sm:$0xf]
    %v2877 = vld [vmem:[%s2 + $0xd8] sm:$0xf]
    %v2878 = vld [vmem:[%s2 + $0xdc] sm:$0xf]
    %v2879 = vld [vmem:[%s2 + $0xe0] sm:$0xf]
    %v2880 = vld [vmem:[%s2 + $0xe4] sm:$0xf]
    %v2881 = vld [vmem:[%s2 + $0xe8] sm:$0xf]
    %v2882 = vld [vmem:[%s2 + $0xec] sm:$0xf]
    %v2883 = vld [vmem:[%s2 + $0xf0] sm:$0xf]
    %v2884 = vld [vmem:[%s2 + $0xf4] sm:$0xf]
    %v2885 = vld [vmem:[%s2 + $0xf8] sm:$0xf]
    %v2886 = vld [vmem:[%s2 + $0xfc] sm:$0xf]
    %v2887 = vld [vmem:[%s2 + $0x100] sm:$0xf]
    %v2888 = vld [vmem:[%s2 + $0x104] sm:$0xf]
    %v2889 = vld [vmem:[%s2 + $0x108] sm:$0xf]
    %v2890 = vld [vmem:[%s2 + $0x10c] sm:$0xf]
    %v2891 = vld [vmem:[%s2 + $0x110] sm:$0xf]
    %v2892 = vld [vmem:[%s2 + $0x114] sm:$0xf]
    %v2893 = vld [vmem:[%s2 + $0x118] sm:$0xf]
    %v2894 = vld [vmem:[%s2 + $0x11c] sm:$0xf]
    %v2895 = vld [vmem:[%s2 + $0x120] sm:$0xf]
    %v2896 = vld [vmem:[%s2 + $0x124] sm:$0xf]
    %v2897 = vld [vmem:[%s2 + $0x128] sm:$0xf]
    %v2898 = vld [vmem:[%s2 + $0x12c] sm:$0xf]
    %v2899 = vld [vmem:[%s2 + $0x130] sm:$0xf]
    %v2900 = vld [vmem:[%s2 + $0x134] sm:$0xf]
    %v2901 = vld [vmem:[%s2 + $0x138] sm:$0xf]
    %v2902 = vld [vmem:[%s2 + $0x13c] sm:$0xf]
    %v2903 = vld [vmem:[%s2 + $0x140] sm:$0xf]
    %v2904 = vld [vmem:[%s2 + $0x144] sm:$0xf]
    %v2905 = vld [vmem:[%s2 + $0x148] sm:$0xf]
    %v2906 = vld [vmem:[%s2 + $0x14c] sm:$0xf]
    %v2907 = vld [vmem:[%s2 + $0x150] sm:$0xf]
    %v2908 = vld [vmem:[%s2 + $0x154] sm:$0xf]
    %v2909 = vld [vmem:[%s2 + $0x158] sm:$0xf]
    %v2910 = vld [vmem:[%s2 + $0x15c] sm:$0xf]
    %v2911 = vld [vmem:[%s2 + $0x160] sm:$0xf]
    %v2912 = vld [vmem:[%s2 + $0x164] sm:$0xf]
    %v2913 = vld [vmem:[%s2 + $0x168] sm:$0xf]
    %v2914 = vld [vmem:[%s2 + $0x16c] sm:$0xf]
    %v2915 = vld [vmem:[%s2 + $0x170] sm:$0xf]
    %v2916 = vld [vmem:[%s2 + $0x174] sm:$0xf]
    %v2917 = vld [vmem:[%s2 + $0x178] sm:$0xf]
    %v2918 = vld [vmem:[%s2 + $0x17c] sm:$0xf]
    %v2919 = vld [vmem:[%s2 + $0x180] sm:$0xf]
    %v2920 = vld [vmem:[%s2 + $0x184] sm:$0xf]
    %v2921 = vld [vmem:[%s2 + $0x188] sm:$0xf]
    %v2922 = vld [vmem:[%s2 + $0x18c] sm:$0xf]
    %v2923 = vld [vmem:[%s2 + $0x190] sm:$0xf]
    %v2924 = vld [vmem:[%s2 + $0x194] sm:$0xf]
    %v2925 = vld [vmem:[%s2 + $0x198] sm:$0xf]
    %v2926 = vld [vmem:[%s2 + $0x19c] sm:$0xf]
    %v2927 = vld [vmem:[%s2 + $0x1a0] sm:$0xf]
    %v2928 = vld [vmem:[%s2 + $0x1a4] sm:$0xf]
    %v2929 = vld [vmem:[%s2 + $0x1a8] sm:$0xf]
    %v2930 = vld [vmem:[%s2 + $0x1ac] sm:$0xf]
    %v2931 = vld [vmem:[%s2 + $0x1b0] sm:$0xf]
    %v2932 = vld [vmem:[%s2 + $0x1b4] sm:$0xf]
    %v2933 = vld [vmem:[%s2 + $0x1b8] sm:$0xf]
    %v2934 = vld [vmem:[%s2 + $0x1bc] sm:$0xf]
    %v2935 = vld [vmem:[%s2 + $0x1c0] sm:$0xf]
    %v2936 = vld [vmem:[%s2 + $0x1c4] sm:$0xf]
    %v2937 = vld [vmem:[%s2 + $0x1c8] sm:$0xf]
    %v2938 = vld [vmem:[%s2 + $0x1cc] sm:$0xf]
    %v2939 = vld [vmem:[%s2 + $0x1d0] sm:$0xf]
    %v2940 = vld [vmem:[%s2 + $0x1d4] sm:$0xf]
    %v2941 = vld [vmem:[%s2 + $0x1d8] sm:$0xf]
    %v2942 = vld [vmem:[%s2 + $0x1dc] sm:$0xf]
    %v2943 = vld [vmem:[%s2 + $0x1e0] sm:$0xf]
    %v2944 = vld [vmem:[%s2 + $0x1e4] sm:$0xf]
    %v2945 = vld [vmem:[%s2 + $0x1e8] sm:$0xf]
    %v2946 = vld [vmem:[%s2 + $0x1ec] sm:$0xf]
    %v2947 = vld [vmem:[%s2 + $0x1f0] sm:$0xf]
    %v2948 = vld [vmem:[%s2 + $0x1f4] sm:$0xf]
    %v2949 = vld [vmem:[%s2 + $0x1f8] sm:$0xf]
    %v2950 = vld [vmem:[%s2 + $0x1fc] sm:$0xf]
    %v2951 = vld [vmem:[%s2 + $0x200] sm:$0xf]
    %v2952 = vld [vmem:[%s2 + $0x204] sm:$0xf]
    %v2953 = vld [vmem:[%s2 + $0x208] sm:$0xf]
    %v2954 = vld [vmem:[%s2 + $0x20c] sm:$0xf]
    %v2955 = vld [vmem:[%s2 + $0x210] sm:$0xf]
    %v2956 = vld [vmem:[%s2 + $0x214] sm:$0xf]
    %v2957 = vld [vmem:[%s2 + $0x218] sm:$0xf]
    %v2958 = vld [vmem:[%s2 + $0x21c] sm:$0xf]
    %v2959 = vld [vmem:[%s2 + $0x220] sm:$0xf]
    %v2960 = vld [vmem:[%s2 + $0x224] sm:$0xf]
    %v2961 = vld [vmem:[%s2 + $0x228] sm:$0xf]
    %v2962 = vld [vmem:[%s2 + $0x22c] sm:$0xf]
    %v2963 = vld [vmem:[%s2 + $0x230] sm:$0xf]
    %v2964 = vld [vmem:[%s2 + $0x234] sm:$0xf]
    %v2965 = vld [vmem:[%s2 + $0x238] sm:$0xf]
    %v2966 = vld [vmem:[%s2 + $0x23c] sm:$0xf]
    %v2967 = vld [vmem:[%s2 + $0x240] sm:$0xf]
    %v2968 = vld [vmem:[%s2 + $0x244] sm:$0xf]
    %v2969 = vld [vmem:[%s2 + $0x248] sm:$0xf]
    %v2970 = vld [vmem:[%s2 + $0x24c] sm:$0xf]
    %v2971 = vld [vmem:[%s2 + $0x250] sm:$0xf]
    %v2972 = vld [vmem:[%s2 + $0x254] sm:$0xf]
    %v2973 = vld [vmem:[%s2 + $0x258] sm:$0xf]
    %v2974 = vld [vmem:[%s2 + $0x25c] sm:$0xf]
    %v2975 = vld [vmem:[%s2 + $0x260] sm:$0xf]
    %v2976 = vld [vmem:[%s2 + $0x264] sm:$0xf]
    %v2977 = vld [vmem:[%s2 + $0x268] sm:$0xf]
    %v2978 = vld [vmem:[%s2 + $0x26c] sm:$0xf]
    %v2979 = vld [vmem:[%s2 + $0x270] sm:$0xf]
    %v2980 = vld [vmem:[%s2 + $0x274] sm:$0xf]
    %v2981 = vld [vmem:[%s2 + $0x278] sm:$0xf]
    %v2982 = vld [vmem:[%s2 + $0x27c] sm:$0xf]
    %v2983 = vld [vmem:[%s3 + $0x2] ss:$0 sm:$0xff]
    %v3144 = vunpack.c.l.b16 %v2823
    %v3145 = vunpack.c.l.b16 %v2824
    %v3146 = vunpack.c.l.b16 %v2825
    %v3147 = vunpack.c.l.b16 %v2826
    %v3148 = vunpack.c.l.b16 %v2827
    %v3149 = vunpack.c.l.b16 %v2828
    %v3150 = vunpack.c.l.b16 %v2829
    %v3151 = vunpack.c.l.b16 %v2830
    %v3152 = vunpack.c.l.b16 %v2831
    %v3153 = vunpack.c.l.b16 %v2832
    %v3154 = vunpack.c.l.b16 %v2833
    %v3155 = vunpack.c.l.b16 %v2834
    %v3156 = vunpack.c.l.b16 %v2835
    %v3157 = vunpack.c.l.b16 %v2836
    %v3158 = vunpack.c.l.b16 %v2837
    %v3159 = vunpack.c.l.b16 %v2838
    %v3160 = vunpack.c.l.b16 %v2839
    %v3161 = vunpack.c.l.b16 %v2840
    %v3162 = vunpack.c.l.b16 %v2841
    %v3163 = vunpack.c.l.b16 %v2842
    %v3164 = vunpack.c.l.b16 %v2843
    %v3165 = vunpack.c.l.b16 %v2844
    %v3166 = vunpack.c.l.b16 %v2845
    %v3167 = vunpack.c.l.b16 %v2846
    %v3168 = vunpack.c.l.b16 %v2847
    %v3169 = vunpack.c.l.b16 %v2848
    %v3170 = vunpack.c.l.b16 %v2849
    %v3171 = vunpack.c.l.b16 %v2850
    %v3172 = vunpack.c.l.b16 %v2851
    %v3173 = vunpack.c.l.b16 %v2852
    %v3174 = vunpack.c.l.b16 %v2853
    %v3175 = vunpack.c.l.b16 %v2854
    %v3176 = vunpack.c.l.b16 %v2855
    %v3177 = vunpack.c.l.b16 %v2856
    %v3178 = vunpack.c.l.b16 %v2857
    %v3179 = vunpack.c.l.b16 %v2858
    %v3180 = vunpack.c.l.b16 %v2859
    %v3181 = vunpack.c.l.b16 %v2860
    %v3182 = vunpack.c.l.b16 %v2861
    %v3183 = vunpack.c.l.b16 %v2862
    %v3184 = vunpack.c.l.b16 %v2863
    %v3185 = vunpack.c.l.b16 %v2864
    %v3186 = vunpack.c.l.b16 %v2865
    %v3187 = vunpack.c.l.b16 %v2866
    %v3188 = vunpack.c.l.b16 %v2867
    %v3189 = vunpack.c.l.b16 %v2868
    %v3190 = vunpack.c.l.b16 %v2869
    %v3191 = vunpack.c.l.b16 %v2870
    %v3192 = vunpack.c.l.b16 %v2871
    %v3193 = vunpack.c.l.b16 %v2872
    %v3194 = vunpack.c.l.b16 %v2873
    %v3195 = vunpack.c.l.b16 %v2874
    %v3196 = vunpack.c.l.b16 %v2875
    %v3197 = vunpack.c.l.b16 %v2876
    %v3198 = vunpack.c.l.b16 %v2877
    %v3199 = vunpack.c.l.b16 %v2878
    %v3200 = vunpack.c.l.b16 %v2879
    %v3201 = vunpack.c.l.b16 %v2880
    %v3202 = vunpack.c.l.b16 %v2881
    %v3203 = vunpack.c.l.b16 %v2882
    %v3204 = vunpack.c.l.b16 %v2883
    %v3205 = vunpack.c.l.b16 %v2884
    %v3206 = vunpack.c.l.b16 %v2885
    %v3207 = vunpack.c.l.b16 %v2886
    %v3208 = vunpack.c.l.b16 %v2887
    %v3209 = vunpack.c.l.b16 %v2888
    %v3210 = vunpack.c.l.b16 %v2889
    %v3211 = vunpack.c.l.b16 %v2890
    %v3212 = vunpack.c.l.b16 %v2891
    %v3213 = vunpack.c.l.b16 %v2892
    %v3214 = vunpack.c.l.b16 %v2893
    %v3215 = vunpack.c.l.b16 %v2894
    %v3216 = vunpack.c.l.b16 %v2895
    %v3217 = vunpack.c.l.b16 %v2896
    %v3218 = vunpack.c.l.b16 %v2897
    %v3219 = vunpack.c.l.b16 %v2898
    %v3220 = vunpack.c.l.b16 %v2899
    %v3221 = vunpack.c.l.b16 %v2900
    %v3222 = vunpack.c.l.b16 %v2901
    %v3223 = vunpack.c.l.b16 %v2902
    %v3224 = vunpack.c.l.b16 %v2903
    %v3225 = vunpack.c.l.b16 %v2904
    %v3226 = vunpack.c.l.b16 %v2905
    %v3227 = vunpack.c.l.b16 %v2906
    %v3228 = vunpack.c.l.b16 %v2907
    %v3229 = vunpack.c.l.b16 %v2908
    %v3230 = vunpack.c.l.b16 %v2909
    %v3231 = vunpack.c.l.b16 %v2910
    %v3232 = vunpack.c.l.b16 %v2911
    %v3233 = vunpack.c.l.b16 %v2912
    %v3234 = vunpack.c.l.b16 %v2913
    %v3235 = vunpack.c.l.b16 %v2914
    %v3236 = vunpack.c.l.b16 %v2915
    %v3237 = vunpack.c.l.b16 %v2916
    %v3238 = vunpack.c.l.b16 %v2917
    %v3239 = vunpack.c.l.b16 %v2918
    %v3240 = vunpack.c.l.b16 %v2919
    %v3241 = vunpack.c.l.b16 %v2920
    %v3242 = vunpack.c.l.b16 %v2921
    %v3243 = vunpack.c.l.b16 %v2922
    %v3244 = vunpack.c.l.b16 %v2923
    %v3245 = vunpack.c.l.b16 %v2924
    %v3246 = vunpack.c.l.b16 %v2925
    %v3247 = vunpack.c.l.b16 %v2926
    %v3248 = vunpack.c.l.b16 %v2927
    %v3249 = vunpack.c.l.b16 %v2928
    %v3250 = vunpack.c.l.b16 %v2929
    %v3251 = vunpack.c.l.b16 %v2930
    %v3252 = vunpack.c.l.b16 %v2931
    %v3253 = vunpack.c.l.b16 %v2932
    %v3254 = vunpack.c.l.b16 %v2933
    %v3255 = vunpack.c.l.b16 %v2934
    %v3256 = vunpack.c.l.b16 %v2935
    %v3257 = vunpack.c.l.b16 %v2936
    %v3258 = vunpack.c.l.b16 %v2937
    %v3259 = vunpack.c.l.b16 %v2938
    %v3260 = vunpack.c.l.b16 %v2939
    %v3261 = vunpack.c.l.b16 %v2940
    %v3262 = vunpack.c.l.b16 %v2941
    %v3263 = vunpack.c.l.b16 %v2942
    %v3264 = vunpack.c.l.b16 %v2943
    %v3265 = vunpack.c.l.b16 %v2944
    %v3266 = vunpack.c.l.b16 %v2945
    %v3267 = vunpack.c.l.b16 %v2946
    %v3268 = vunpack.c.l.b16 %v2947
    %v3269 = vunpack.c.l.b16 %v2948
    %v3270 = vunpack.c.l.b16 %v2949
    %v3271 = vunpack.c.l.b16 %v2950
    %v3272 = vunpack.c.l.b16 %v2951
    %v3273 = vunpack.c.l.b16 %v2952
    %v3274 = vunpack.c.l.b16 %v2953
    %v3275 = vunpack.c.l.b16 %v2954
    %v3276 = vunpack.c.l.b16 %v2955
    %v3277 = vunpack.c.l.b16 %v2956
    %v3278 = vunpack.c.l.b16 %v2957
    %v3279 = vunpack.c.l.b16 %v2958
    %v3280 = vunpack.c.l.b16 %v2959
    %v3281 = vunpack.c.l.b16 %v2960
    %v3282 = vunpack.c.l.b16 %v2961
    %v3283 = vunpack.c.l.b16 %v2962
    %v3284 = vunpack.c.l.b16 %v2963
    %v3285 = vunpack.c.l.b16 %v2964
    %v3286 = vunpack.c.l.b16 %v2965
    %v3287 = vunpack.c.l.b16 %v2966
    %v3288 = vunpack.c.l.b16 %v2967
    %v3289 = vunpack.c.l.b16 %v2968
    %v3290 = vunpack.c.l.b16 %v2969
    %v3291 = vunpack.c.l.b16 %v2970
    %v3292 = vunpack.c.l.b16 %v2971
    %v3293 = vunpack.c.l.b16 %v2972
    %v3294 = vunpack.c.l.b16 %v2973
    %v3295 = vunpack.c.l.b16 %v2974
    %v3296 = vunpack.c.l.b16 %v2975
    %v3297 = vunpack.c.l.b16 %v2976
    %v3298 = vunpack.c.l.b16 %v2977
    %v3299 = vunpack.c.l.b16 %v2978
    %v3300 = vunpack.c.l.b16 %v2979
    %v3301 = vunpack.c.l.b16 %v2980
    %v3302 = vunpack.c.l.b16 %v2981
    %v3303 = vunpack.c.l.b16 %v2982
    %v3304 = vpack.c.b16 %v3145, %v3144
    %v3305 = vpack.c.b16 %v3147, %v3146
    %v3306 = vpack.c.b16 %v3149, %v3148
    %v3307 = vpack.c.b16 %v3151, %v3150
    %v3308 = vpack.c.b16 %v3153, %v3152
    %v3309 = vpack.c.b16 %v3155, %v3154
    %v3310 = vpack.c.b16 %v3157, %v3156
    %v3311 = vpack.c.b16 %v3159, %v3158
    %v3312 = vpack.c.b16 %v3161, %v3160
    %v3313 = vpack.c.b16 %v3163, %v3162
    %v3314 = vpack.c.b16 %v3165, %v3164
    %v3315 = vpack.c.b16 %v3167, %v3166
    %v3316 = vpack.c.b16 %v3169, %v3168
    %v3317 = vpack.c.b16 %v3171, %v3170
    %v3318 = vpack.c.b16 %v3173, %v3172
    %v3319 = vpack.c.b16 %v3175, %v3174
    %v3320 = vpack.c.b16 %v3177, %v3176
    %v3321 = vpack.c.b16 %v3179, %v3178
    %v3322 = vpack.c.b16 %v3181, %v3180
    %v3323 = vpack.c.b16 %v3183, %v3182
    %v3324 = vpack.c.b16 %v3185, %v3184
    %v3325 = vpack.c.b16 %v3187, %v3186
    %v3326 = vpack.c.b16 %v3189, %v3188
    %v3327 = vpack.c.b16 %v3191, %v3190
    %v3328 = vpack.c.b16 %v3193, %v3192
    %v3329 = vpack.c.b16 %v3195, %v3194
    %v3330 = vpack.c.b16 %v3197, %v3196
    %v3331 = vpack.c.b16 %v3199, %v3198
    %v3332 = vpack.c.b16 %v3201, %v3200
    %v3333 = vpack.c.b16 %v3203, %v3202
    %v3334 = vpack.c.b16 %v3205, %v3204
    %v3335 = vpack.c.b16 %v3207, %v3206
    %v3336 = vpack.c.b16 %v3209, %v3208
    %v3337 = vpack.c.b16 %v3211, %v3210
    %v3338 = vpack.c.b16 %v3213, %v3212
    %v3339 = vpack.c.b16 %v3215, %v3214
    %v3340 = vpack.c.b16 %v3217, %v3216
    %v3341 = vpack.c.b16 %v3219, %v3218
    %v3342 = vpack.c.b16 %v3221, %v3220
    %v3343 = vpack.c.b16 %v3223, %v3222
    %v3344 = vpack.c.b16 %v3225, %v3224
    %v3345 = vpack.c.b16 %v3227, %v3226
    %v3346 = vpack.c.b16 %v3229, %v3228
    %v3347 = vpack.c.b16 %v3231, %v3230
    %v3348 = vpack.c.b16 %v3233, %v3232
    %v3349 = vpack.c.b16 %v3235, %v3234
    %v3350 = vpack.c.b16 %v3237, %v3236
    %v3351 = vpack.c.b16 %v3239, %v3238
    %v3352 = vpack.c.b16 %v3241, %v3240
    %v3353 = vpack.c.b16 %v3243, %v3242
    %v3354 = vpack.c.b16 %v3245, %v3244
    %v3355 = vpack.c.b16 %v3247, %v3246
    %v3356 = vpack.c.b16 %v3249, %v3248
    %v3357 = vpack.c.b16 %v3251, %v3250
    %v3358 = vpack.c.b16 %v3253, %v3252
    %v3359 = vpack.c.b16 %v3255, %v3254
    %v3360 = vpack.c.b16 %v3257, %v3256
    %v3361 = vpack.c.b16 %v3259, %v3258
    %v3362 = vpack.c.b16 %v3261, %v3260
    %v3363 = vpack.c.b16 %v3263, %v3262
    %v3364 = vpack.c.b16 %v3265, %v3264
    %v3365 = vpack.c.b16 %v3267, %v3266
    %v3366 = vpack.c.b16 %v3269, %v3268
    %v3367 = vpack.c.b16 %v3271, %v3270
    %v3368 = vpack.c.b16 %v3273, %v3272
    %v3369 = vpack.c.b16 %v3275, %v3274
    %v3370 = vpack.c.b16 %v3277, %v3276
    %v3371 = vpack.c.b16 %v3279, %v3278
    %v3372 = vpack.c.b16 %v3281, %v3280
    %v3373 = vpack.c.b16 %v3283, %v3282
    %v3374 = vpack.c.b16 %v3285, %v3284
    %v3375 = vpack.c.b16 %v3287, %v3286
    %v3376 = vpack.c.b16 %v3289, %v3288
    %v3377 = vpack.c.b16 %v3291, %v3290
    %v3378 = vpack.c.b16 %v3293, %v3292
    %v3379 = vpack.c.b16 %v3295, %v3294
    %v3380 = vpack.c.b16 %v3297, %v3296
    %v3381 = vpack.c.b16 %v3299, %v3298
    %v3382 = vpack.c.b16 %v3301, %v3300
    %v3383 = vpack.c.b16 %v3303, %v3302
    %3464 = vmatprep.subr.bf16.mxu0 0
    %3465 = vmatpush1.bf16.msra.mxu0 %v3304
    %3466 = vmatprep.subr.bf16.mxu0 0
    %3467 = vmatpush1.bf16.msra.mxu0 %v3305
    %3468 = vmatprep.subr.bf16.mxu0 0
    %3469 = vmatpush1.bf16.msra.mxu0 %v3306
    %3470 = vmatprep.subr.bf16.mxu0 0
    %3471 = vmatpush1.bf16.msra.mxu0 %v3307
    %3472 = vmatprep.subr.bf16.mxu0 0
    %3473 = vmatpush1.bf16.msra.mxu0 %v3308
    %3474 = vmatprep.subr.bf16.mxu0 0
    %3475 = vmatpush1.bf16.msra.mxu0 %v3309
    %3476 = vmatprep.subr.bf16.mxu0 0
    %3477 = vmatpush1.bf16.msra.mxu0 %v3310
    %3478 = vmatprep.subr.bf16.mxu0 0
    %3479 = vmatpush1.bf16.msra.mxu0 %v3311
    %3480 = vmatprep.subr.bf16.mxu0 0
    %3481 = vmatpush1.bf16.msra.mxu0 %v3312
    %3482 = vmatprep.subr.bf16.mxu0 0
    %3483 = vmatpush1.bf16.msra.mxu0 %v3313
    %3484 = vmatprep.subr.bf16.mxu0 0
    %3485 = vmatpush1.bf16.msra.mxu0 %v3314
    %3486 = vmatprep.subr.bf16.mxu0 0
    %3487 = vmatpush1.bf16.msra.mxu0 %v3315
    %3488 = vmatprep.subr.bf16.mxu0 0
    %3489 = vmatpush1.bf16.msra.mxu0 %v3316
    %3490 = vmatprep.subr.bf16.mxu0 0
    %3491 = vmatpush1.bf16.msra.mxu0 %v3317
    %3492 = vmatprep.subr.bf16.mxu0 0
    %3493 = vmatpush1.bf16.msra.mxu0 %v3318
    %3494 = vmatprep.subr.bf16.mxu0 0
    %3495 = vmatpush1.bf16.msra.mxu0 %v3319
    %3496 = vmatprep.mubr.bf16.mxu0 %v2814
    %3497 = vmatmul.mubr.bf16.gmra.mrb[0].mxu0 %v2813
    %v3498 = vpop.f32.mrb[0].mxu0
    %v3499 = vadd.f32 %v2983, %v3498
    %v3500 = vpop.f32.mrb[0].mxu0
    %v3501 = vpop.f32.mrb[0].mxu0
    %v3502 = vpop.f32.mrb[0].mxu0
    %3503 = vdwg.mxu0
    %3504 = vmatprep.subr.bf16.mxu0 0
    %3505 = vmatpush1.bf16.msra.mxu0 %v3320
    %3506 = vmatprep.subr.bf16.mxu0 0
    %3507 = vmatpush1.bf16.msra.mxu0 %v3321
    %3508 = vmatprep.subr.bf16.mxu0 0
    %3509 = vmatpush1.bf16.msra.mxu0 %v3322
    %3510 = vmatprep.subr.bf16.mxu0 0
    %3511 = vmatpush1.bf16.msra.mxu0 %v3323
    %3512 = vmatprep.subr.bf16.mxu0 0
    %3513 = vmatpush1.bf16.msra.mxu0 %v3324
    %3514 = vmatprep.subr.bf16.mxu0 0
    %3515 = vmatpush1.bf16.msra.mxu0 %v3325
    %3516 = vmatprep.subr.bf16.mxu0 0
    %3517 = vmatpush1.bf16.msra.mxu0 %v3326
    %3518 = vmatprep.subr.bf16.mxu0 0
    %3519 = vmatpush1.bf16.msra.mxu0 %v3327
    %3520 = vmatprep.subr.bf16.mxu0 0
    %3521 = vmatpush1.bf16.msra.mxu0 %v3328
    %3522 = vmatprep.subr.bf16.mxu0 0
    %3523 = vmatpush1.bf16.msra.mxu0 %v3329
    %3524 = vmatprep.subr.bf16.mxu0 0
    %3525 = vmatpush1.bf16.msra.mxu0 %v3330
    %3526 = vmatprep.subr.bf16.mxu0 0
    %3527 = vmatpush1.bf16.msra.mxu0 %v3331
    %3528 = vmatprep.subr.bf16.mxu0 0
    %3529 = vmatpush1.bf16.msra.mxu0 %v3332
    %3530 = vmatprep.subr.bf16.mxu0 0
    %3531 = vmatpush1.bf16.msra.mxu0 %v3333
    %3532 = vmatprep.subr.bf16.mxu0 0
    %3533 = vmatpush1.bf16.msra.mxu0 %v3334
    %3534 = vmatprep.subr.bf16.mxu0 0
    %3535 = vmatpush1.bf16.msra.mxu0 %v3335
    %3536 = vmatprep.mubr.bf16.mxu0 %v2816
    %3537 = vmatmul.mubr.bf16.gmra.mrb[0].mxu0 %v2815
    %v3538 = vpop.f32.mrb[0].mxu0
    %v3539 = vadd.f32 %v3499, %v3538
    %v3540 = vpop.f32.mrb[0].mxu0
    %v3541 = vpop.f32.mrb[0].mxu0
    %v3542 = vpop.f32.mrb[0].mxu0
    %3543 = vdwg.mxu0
    %3544 = vmatprep.subr.bf16.mxu0 0
    %3545 = vmatpush1.bf16.msra.mxu0 %v3336
    %3546 = vmatprep.subr.bf16.mxu0 0
    %3547 = vmatpush1.bf16.msra.mxu0 %v3337
    %3548 = vmatprep.subr.bf16.mxu0 0
    %3549 = vmatpush1.bf16.msra.mxu0 %v3338
    %3550 = vmatprep.subr.bf16.mxu0 0
    %3551 = vmatpush1.bf16.msra.mxu0 %v3339
    %3552 = vmatprep.subr.bf16.mxu0 0
    %3553 = vmatpush1.bf16.msra.mxu0 %v3340
    %3554 = vmatprep.subr.bf16.mxu0 0
    %3555 = vmatpush1.bf16.msra.mxu0 %v3341
    %3556 = vmatprep.subr.bf16.mxu0 0
    %3557 = vmatpush1.bf16.msra.mxu0 %v3342
    %3558 = vmatprep.subr.bf16.mxu0 0
    %3559 = vmatpush1.bf16.msra.mxu0 %v3343
    %3560 = vmatprep.subr.bf16.mxu0 0
    %3561 = vmatpush1.bf16.msra.mxu0 %v3344
    %3562 = vmatprep.subr.bf16.mxu0 0
    %3563 = vmatpush1.bf16.msra.mxu0 %v3345
    %3564 = vmatprep.subr.bf16.mxu0 0
    %3565 = vmatpush1.bf16.msra.mxu0 %v3346
    %3566 = vmatprep.subr.bf16.mxu0 0
    %3567 = vmatpush1.bf16.msra.mxu0 %v3347
    %3568 = vmatprep.subr.bf16.mxu0 0
    %3569 = vmatpush1.bf16.msra.mxu0 %v3348
    %3570 = vmatprep.subr.bf16.mxu0 0
    %3571 = vmatpush1.bf16.msra.mxu0 %v3349
    %3572 = vmatprep.subr.bf16.mxu0 0
    %3573 = vmatpush1.bf16.msra.mxu0 %v3350
    %3574 = vmatprep.subr.bf16.mxu0 0
    %3575 = vmatpush1.bf16.msra.mxu0 %v3351
    %3576 = vmatprep.mubr.bf16.mxu0 %v2818
    %3577 = vmatmul.mubr.bf16.gmra.mrb[0].mxu0 %v2817
    %v3578 = vpop.f32.mrb[0].mxu0
    %v3579 = vadd.f32 %v3539, %v3578
    %v3580 = vpop.f32.mrb[0].mxu0
    %v3581 = vpop.f32.mrb[0].mxu0
    %v3582 = vpop.f32.mrb[0].mxu0
    %3583 = vdwg.mxu0
    %3584 = vmatprep.subr.bf16.mxu0 0
    %3585 = vmatpush1.bf16.msra.mxu0 %v3352
    %3586 = vmatprep.subr.bf16.mxu0 0
    %3587 = vmatpush1.bf16.msra.mxu0 %v3353
    %3588 = vmatprep.subr.bf16.mxu0 0
    %3589 = vmatpush1.bf16.msra.mxu0 %v3354
    %3590 = vmatprep.subr.bf16.mxu0 0
    %3591 = vmatpush1.bf16.msra.mxu0 %v3355
    %3592 = vmatprep.subr.bf16.mxu0 0
    %3593 = vmatpush1.bf16.msra.mxu0 %v3356
    %3594 = vmatprep.subr.bf16.mxu0 0
    %3595 = vmatpush1.bf16.msra.mxu0 %v3357
    %3596 = vmatprep.subr.bf16.mxu0 0
    %3597 = vmatpush1.bf16.msra.mxu0 %v3358
    %3598 = vmatprep.subr.bf16.mxu0 0
    %3599 = vmatpush1.bf16.msra.mxu0 %v3359
    %3600 = vmatprep.subr.bf16.mxu0 0
    %3601 = vmatpush1.bf16.msra.mxu0 %v3360
    %3602 = vmatprep.subr.bf16.mxu0 0
    %3603 = vmatpush1.bf16.msra.mxu0 %v3361
    %3604 = vmatprep.subr.bf16.mxu0 0
    %3605 = vmatpush1.bf16.msra.mxu0 %v3362
    %3606 = vmatprep.subr.bf16.mxu0 0
    %3607 = vmatpush1.bf16.msra.mxu0 %v3363
    %3608 = vmatprep.subr.bf16.mxu0 0
    %3609 = vmatpush1.bf16.msra.mxu0 %v3364
    %3610 = vmatprep.subr.bf16.mxu0 0
    %3611 = vmatpush1.bf16.msra.mxu0 %v3365
    %3612 = vmatprep.subr.bf16.mxu0 0
    %3613 = vmatpush1.bf16.msra.mxu0 %v3366
    %3614 = vmatprep.subr.bf16.mxu0 0
    %3615 = vmatpush1.bf16.msra.mxu0 %v3367
    %3616 = vmatprep.mubr.bf16.mxu0 %v2820
    %3617 = vmatmul.mubr.bf16.gmra.mrb[0].mxu0 %v2819
    %v3618 = vpop.f32.mrb[0].mxu0
    %v3619 = vadd.f32 %v3579, %v3618
    %v3620 = vpop.f32.mrb[0].mxu0
    %v3621 = vpop.f32.mrb[0].mxu0
    %v3622 = vpop.f32.mrb[0].mxu0
    %3623 = vdwg.mxu0
    %3624 = vmatprep.subr.bf16.mxu0 0
    %3625 = vmatpush1.bf16.msra.mxu0 %v3368
    %3626 = vmatprep.subr.bf16.mxu0 0
    %3627 = vmatpush1.bf16.msra.mxu0 %v3369
    %3628 = vmatprep.subr.bf16.mxu0 0
    %3629 = vmatpush1.bf16.msra.mxu0 %v3370
    %3630 = vmatprep.subr.bf16.mxu0 0
    %3631 = vmatpush1.bf16.msra.mxu0 %v3371
    %3632 = vmatprep.subr.bf16.mxu0 0
    %3633 = vmatpush1.bf16.msra.mxu0 %v3372
    %3634 = vmatprep.subr.bf16.mxu0 0
    %3635 = vmatpush1.bf16.msra.mxu0 %v3373
    %3636 = vmatprep.subr.bf16.mxu0 0
    %3637 = vmatpush1.bf16.msra.mxu0 %v3374
    %3638 = vmatprep.subr.bf16.mxu0 0
    %3639 = vmatpush1.bf16.msra.mxu0 %v3375
    %3640 = vmatprep.subr.bf16.mxu0 0
    %3641 = vmatpush1.bf16.msra.mxu0 %v3376
    %3642 = vmatprep.subr.bf16.mxu0 0
    %3643 = vmatpush1.bf16.msra.mxu0 %v3377
    %3644 = vmatprep.subr.bf16.mxu0 0
    %3645 = vmatpush1.bf16.msra.mxu0 %v3378
    %3646 = vmatprep.subr.bf16.mxu0 0
    %3647 = vmatpush1.bf16.msra.mxu0 %v3379
    %3648 = vmatprep.subr.bf16.mxu0 0
    %3649 = vmatpush1.bf16.msra.mxu0 %v3380
    %3650 = vmatprep.subr.bf16.mxu0 0
    %3651 = vmatpush1.bf16.msra.mxu0 %v3381
    %3652 = vmatprep.subr.bf16.mxu0 0
    %3653 = vmatpush1.bf16.msra.mxu0 %v3382
    %3654 = vmatprep.subr.bf16.mxu0 0
    %3655 = vmatpush1.bf16.msra.mxu0 %v3383
    %3656 = vmatprep.mubr.bf16.mxu0 %v2822
    %3657 = vmatmul.mubr.bf16.gmra.mrb[0].mxu0 %v2821
    %v3658 = vpop.f32.mrb[0].mxu0
    %v3659 = vadd.f32 %v3619, %v3658
    %v3660 = vpop.f32.mrb[0].mxu0
    %v3661 = vpop.f32.mrb[0].mxu0
    %v3662 = vpop.f32.mrb[0].mxu0
    %3663 = vdwg.mxu0
    %v3664 = vmax.f32 %v3659, 0.0
    %v3665 = vpack.c.bf16 %v3664, %v3664
    %v3666 = vld [vmem:[%s2 + $0x280] sm:$0xf]
    %v3667 = vld [vmem:[%s2 + $0x284] sm:$0xf]
    %v3668 = vld [vmem:[%s2 + $0x288] sm:$0xf]
    %v3669 = vld [vmem:[%s2 + $0x28c] sm:$0xf]
    %v3670 = vld [vmem:[%s2 + $0x290] sm:$0xf]
    %v3671 = vld [vmem:[%s2 + $0x294] sm:$0xf]
    %v3672 = vld [vmem:[%s2 + $0x298] sm:$0xf]
    %v3673 = vld [vmem:[%s2 + $0x29c] sm:$0xf]
    %v3674 = vld [vmem:[%s2 + $0x2a0] sm:$0xf]
    %v3675 = vld [vmem:[%s2 + $0x2a4] sm:$0xf]
    %v3676 = vld [vmem:[%s2 + $0x2a8] sm:$0xf]
    %v3677 = vld [vmem:[%s2 + $0x2ac] sm:$0xf]
    %v3678 = vld [vmem:[%s2 + $0x2b0] sm:$0xf]
    %v3679 = vld [vmem:[%s2 + $0x2b4] sm:$0xf]
    %v3680 = vld [vmem:[%s2 + $0x2b8] sm:$0xf]
    %v3681 = vld [vmem:[%s3 + $0x3] ss:$0 sm:$0xff]
    %v3697 = vunpack.c.l.b16 %v3666
    %v3698 = vunpack.c.l.b16 %v3667
    %v3699 = vunpack.c.l.b16 %v3668
    %v3700 = vunpack.c.l.b16 %v3669
    %v3701 = vunpack.c.l.b16 %v3670
    %v3702 = vunpack.c.l.b16 %v3671
    %v3703 = vunpack.c.l.b16 %v3672
    %v3704 = vunpack.c.l.b16 %v3673
    %v3705 = vunpack.c.l.b16 %v3674
    %v3706 = vunpack.c.l.b16 %v3675
    %v3707 = vunpack.c.l.b16 %v3676
    %v3708 = vunpack.c.l.b16 %v3677
    %v3709 = vunpack.c.l.b16 %v3678
    %v3710 = vunpack.c.l.b16 %v3679
    %v3711 = vunpack.c.l.b16 %v3680
    %v3712 = vpack.c.b16 %v3698, %v3697
    %v3713 = vpack.c.b16 %v3700, %v3699
    %v3714 = vpack.c.b16 %v3702, %v3701
    %v3715 = vpack.c.b16 %v3704, %v3703
    %v3716 = vpack.c.b16 %v3706, %v3705
    %v3717 = vpack.c.b16 %v3708, %v3707
    %v3718 = vpack.c.b16 %v3710, %v3709
    %v3719 = vpack.c.b16 %v3711, %v3711
    %vm3727 = vcmask 982016
    %v3729 = vsel %vm3727, %v3665, 0
    %v3732 = vsel %vm140, %v3719, 0
    %3734 = vmatprep.subr.bf16.mxu0 0
    %3735 = vmatpush1.bf16.msra.mxu0 %v3712
    %3736 = vmatprep.subr.bf16.mxu0 0
    %3737 = vmatpush1.bf16.msra.mxu0 %v3713
    %3738 = vmatprep.subr.bf16.mxu0 0
    %3739 = vmatpush1.bf16.msra.mxu0 %v3714
    %3740 = vmatprep.subr.bf16.mxu0 0
    %3741 = vmatpush1.bf16.msra.mxu0 %v3715
    %3742 = vmatprep.subr.bf16.mxu0 0
    %3743 = vmatpush1.bf16.msra.mxu0 %v3716
    %3744 = vmatprep.subr.bf16.mxu0 0
    %3745 = vmatpush1.bf16.msra.mxu0 %v3717
    %3746 = vmatprep.subr.bf16.mxu0 0
    %3747 = vmatpush1.bf16.msra.mxu0 %v3718
    %3748 = vmatprep.subr.bf16.mxu0 0
    %3749 = vmatpush1.bf16.msra.mxu0 %v3732
    %3750 = vmatprep.subr.bf16.mxu0 0
    %3751 = vmatpush1.bf16.msra.mxu0 0
    %3752 = vmatprep.subr.bf16.mxu0 0
    %3753 = vmatpush1.bf16.msra.mxu0 0
    %3754 = vmatprep.subr.bf16.mxu0 0
    %3755 = vmatpush1.bf16.msra.mxu0 0
    %3756 = vmatprep.subr.bf16.mxu0 0
    %3757 = vmatpush1.bf16.msra.mxu0 0
    %3758 = vmatprep.subr.bf16.mxu0 0
    %3759 = vmatpush1.bf16.msra.mxu0 0
    %3760 = vmatprep.subr.bf16.mxu0 0
    %3761 = vmatpush1.bf16.msra.mxu0 0
    %3762 = vmatprep.subr.bf16.mxu0 0
    %3763 = vmatpush1.bf16.msra.mxu0 0
    %3764 = vmatprep.subr.bf16.mxu0 0
    %3765 = vmatpush1.bf16.msra.mxu0 0
    %3766 = vmatprep.mubr.bf16.mxu0 0
    %3767 = vmatmul.mubr.bf16.gmra.mrb[0].mxu0 %v3729
    %v3768 = vpop.f32.mrb[0].mxu0
    %v3769 = vadd.f32 %v3681, %v3768
    %v3770 = vpop.f32.mrb[0].mxu0
    %v3771 = vpop.f32.mrb[0].mxu0
    %v3772 = vpop.f32.mrb[0].mxu0
    %3773 = vdwg.mxu0
    %v3774 = vmax.f32 %v3769, 0.0
    %v3775 = vpack.c.bf16 %v3774, %v3774
    %v3776 = vld [vmem:[%s2 + $0x2c0] sm:$0xf]
    %v3777 = vld [vmem:[%s2 + $0x2c4] sm:$0xf]
    %v3778 = vld [vmem:[%s2 + $0x2c8] sm:$0xf]
    %v3779 = vld [vmem:[%s2 + $0x2cc] sm:$0xf]
    %v3780 = vld [vmem:[%s2 + $0x2d0] sm:$0xf]
    %v3781 = vld [vmem:[%s2 + $0x2d4] sm:$0xf]
    %v3782 = vld [vmem:[%s2 + $0x2d8] sm:$0xf]
    %v3783 = vld [vmem:[%s2 + $0x2dc] sm:$0xf]
    %v3784 = vld [vmem:[%s2 + $0x2e0] sm:$0xf]
    %v3785 = vld [vmem:[%s2 + $0x2e4] sm:$0xf]
    %v3786 = vld [vmem:[%s2 + $0x2e8] sm:$0x3]
    %v3787 = vld [vmem:[%s3 + $0x4] ss:$0 sm:$0xff]
    %v3799 = vunpack.c.l.b16 %v3776
    %v3800 = vunpack.c.l.b16 %v3777
    %v3801 = vunpack.c.l.b16 %v3778
    %v3802 = vunpack.c.l.b16 %v3779
    %v3803 = vunpack.c.l.b16 %v3780
    %v3804 = vunpack.c.l.b16 %v3781
    %v3805 = vunpack.c.l.b16 %v3782
    %v3806 = vunpack.c.l.b16 %v3783
    %v3807 = vunpack.c.l.b16 %v3784
    %v3808 = vunpack.c.l.b16 %v3785
    %v3809 = vunpack.c.l.b16 %v3786
    %v3810 = vpack.c.b16 %v3800, %v3799
    %v3811 = vpack.c.b16 %v3802, %v3801
    %v3812 = vpack.c.b16 %v3804, %v3803
    %v3813 = vpack.c.b16 %v3806, %v3805
    %v3814 = vpack.c.b16 %v3808, %v3807
    %v3815 = vpack.c.b16 %v3809, %v3809
    %vm3821 = vcmask 687104
    %v3823 = vsel %vm3821, %v3775, 0
    %v3826 = vsel %vm1235, %v3815, 0
    %3828 = vmatprep.subr.bf16.mxu0 0
    %3829 = vmatpush1.bf16.msra.mxu0 %v3810
    %3830 = vmatprep.subr.bf16.mxu0 0
    %3831 = vmatpush1.bf16.msra.mxu0 %v3811
    %3832 = vmatprep.subr.bf16.mxu0 0
    %3833 = vmatpush1.bf16.msra.mxu0 %v3812
    %3834 = vmatprep.subr.bf16.mxu0 0
    %3835 = vmatpush1.bf16.msra.mxu0 %v3813
    %3836 = vmatprep.subr.bf16.mxu0 0
    %3837 = vmatpush1.bf16.msra.mxu0 %v3814
    %3838 = vmatprep.subr.bf16.mxu0 0
    %3839 = vmatpush1.bf16.msra.mxu0 %v3826
    %3840 = vmatprep.subr.bf16.mxu0 0
    %3841 = vmatpush1.bf16.msra.mxu0 0
    %3842 = vmatprep.subr.bf16.mxu0 0
    %3843 = vmatpush1.bf16.msra.mxu0 0
    %3844 = vmatprep.subr.bf16.mxu0 0
    %3845 = vmatpush1.bf16.msra.mxu0 0
    %3846 = vmatprep.subr.bf16.mxu0 0
    %3847 = vmatpush1.bf16.msra.mxu0 0
    %3848 = vmatprep.subr.bf16.mxu0 0
    %3849 = vmatpush1.bf16.msra.mxu0 0
    %3850 = vmatprep.subr.bf16.mxu0 0
    %3851 = vmatpush1.bf16.msra.mxu0 0
    %3852 = vmatprep.subr.bf16.mxu0 0
    %3853 = vmatpush1.bf16.msra.mxu0 0
    %3854 = vmatprep.subr.bf16.mxu0 0
    %3855 = vmatpush1.bf16.msra.mxu0 0
    %3856 = vmatprep.subr.bf16.mxu0 0
    %3857 = vmatpush1.bf16.msra.mxu0 0
    %3858 = vmatprep.subr.bf16.mxu0 0
    %3859 = vmatpush1.bf16.msra.mxu0 0
    %3860 = vmatprep.mubr.bf16.mxu0 0
    %3861 = vmatmul.mubr.bf16.gmra.mrb[0].mxu0 %v3823
    %v3862 = vpop.f32.mrb[0].mxu0
    %v3863 = vadd.f32 %v3787, %v3862
    %v3864 = vpop.f32.mrb[0].mxu0
    %v3865 = vpop.f32.mrb[0].mxu0
    %v3866 = vpop.f32.mrb[0].mxu0
    %3867 = vdwg.mxu0
    %vm3868 = vcmask 74752
    %v3869 = vsel %vm3868, %v3863, -inf
    %3870 = vmax.xlane.f32.xlu0 %v3869
    %v3871 = vpop.xlane.xlu0 %3870
    %v3872 = vsub.f32 %v3863, %v3871
    %v3873 = vmul.f32 %v3872, 1.442695
    %v3874 = vpow.pop %v3873
    %v3875 = vsel %vm3868, %v3874, 0.0
    %3876 = vadd.xlane.f32.xlu0 %v3875
    %v3877 = vpop.xlane.xlu0 %3876
    %v3878 = vrcp.pop %v3877
    %v3879 = vmul.f32 %v3874, %v3878
    %3880 = vst.msk [vmem:[#allocation5] sm:$0x3] %vm3868, %v3879
    // Predicated region
    $region22: #{forward.1} parent=1 // pred_check
      _
    $region23: #{forward.1} parent=1 // pred_check_branch
      %3882 = sbr.rel (0) target = $region25
    $region24: #{forward.1} parent=1 // pred_region
      %s3884 = ssub.s32 32, 32
      %3885 = vsyncadd [#allocation6], %s3884
      %s3887 = sshll.u32 [#allocation5], 4
      %s3888 = int_to_ptr.vmem [resolvable:$true] %s3887
      %3890 = dma.vmem_to_hbm [thread:$0]  %s3888, 32, %s5, [#allocation6]
    $region25: #{forward.1} parent=1 // pred_fallthru
      _
    // Predicated region
    $region26: #{forward.1} parent=1 // pred_check
      _
    $region27: #{forward.1} parent=1 // pred_check_branch
      %3892 = sbr.rel (0) target = $region29
    $region28: #{forward.1} parent=1 // pred_region
      %3893 = dma.done [#allocation6], 32
    $region29: #{forward.1} parent=1 // pred_fallthru
      _
    %3894 = vsyncpa [#allocation6], 1

</llo_original>
